<compile_context>
chip_gen: v6e
topology: v6e:2x2x1
jax: 0.10.0
libtpu: 0.0.40
codegen_flags: <defaults>
</compile_context>

<pallas_src>
import functools
import numpy as np
import jax
import jax.numpy as jnp
from jax import lax
from jax.experimental import pallas as pl
from jax.experimental.pallas import tpu as pltpu

# ---- model hyper-parameters (c1 == c2 so TransformerBlock.conv is None) ----
B = 2            # batch
C1X = 16         # channels of x1 (passed through / concatenated)
C = 32           # c1 == c2 (transformer embedding width)
NUM_HEADS = 4
HEAD_DIM = C // NUM_HEADS
NUM_LAYERS = 2
H = W = 8
S = H * W        # sequence length = H*W

# raw (PyTorch-style) stacked-weight slot indices
IQ, IK, IV, IQI, IKI, IVI, IO, IF1, IF2 = range(9)
BQI, BKI, BVI, BO = range(4)


def _transformer_kernel(x_ref, bias_ref, wp_ref, bp_ref, wqkv_ref, bqkv_ref,
                        woT_ref, bo_ref, wmlp_ref, out_ref,
                        *, num_layers, num_heads, head_dim):
    c = x_ref.shape[0]
    L = x_ref.shape[1]                                  # = B * S (lane axis)
    X = x_ref[...]                                      # (C, B*S) f32, lanes = batch*seq

    # learnable position embedding: p + Linear(p)
    X = X + (jnp.dot(wp_ref[...], X.astype(jnp.bfloat16),
                     preferred_element_type=jnp.float32) + bp_ref[...])

    attn_bias = bias_ref[...]                           # (L, L): 0 same-image, -1e9 cross

    for l in range(num_layers):                         # static unroll (num_layers == 2)
        # Fused q/k/v: one (3C, C) x (C, L) matmul.  MHA in_proj and the 1/sqrt(dh)
        # attention scale are already folded into the weights/bias by the wrapper.
        qkv = jnp.dot(wqkv_ref[l], X.astype(jnp.bfloat16),
                      preferred_element_type=jnp.float32) + bqkv_ref[l]   # (3C, L) f32

        att = jnp.zeros((c, L), jnp.float32)
        for h in range(num_heads):                      # static unroll (num_heads == 4)
            lo = h * head_dim
            qh = qkv[lo:lo + head_dim, :].astype(jnp.bfloat16)            # (Dh, L)
            kh = qkv[c + lo:c + lo + head_dim, :].astype(jnp.bfloat16)
            vh = qkv[2 * c + lo:2 * c + lo + head_dim, :].astype(jnp.bfloat16)

            # scores: rows = key positions (sublanes), cols = query positions (lanes);
            # block-diagonal bias keeps the two lane-folded images independent.
            sc = lax.dot_general(kh, qh, (((0,), (0,)), ((), ())),
                                 preferred_element_type=jnp.float32) + attn_bias
            sc = sc - jnp.max(sc, axis=0, keepdims=True)
            p = jnp.exp(sc)                             # cross-image entries underflow to 0
            denom = jnp.sum(p, axis=0, keepdims=True)   # (1, L)

            # unnormalized head output, then post-V normalization (8x less divide work)
            oh = jnp.dot(vh, p.astype(jnp.bfloat16),
                         preferred_element_type=jnp.float32)              # (Dh, L)
            oh = oh * pl.reciprocal(denom, approx=True)

            # output projection accumulated per head (no head concat materialized)
            att = att + lax.dot_general(woT_ref[l, h], oh.astype(jnp.bfloat16),
                                        (((0,), (0,)), ((), ())),
                                        preferred_element_type=jnp.float32)

        X = X + att + bo_ref[l]                         # residual 1
        # fused MLP (fc2 @ fc1, no activation in between): residual 2
        X = X + jnp.dot(wmlp_ref[l], X.astype(jnp.bfloat16),
                        preferred_element_type=jnp.float32)

    out_ref[...] = X                                    # single lane-dense (32, 128) store


def pack_kernel_params(params):
    """Fold MHA in_proj into q/k/v, fc2 into fc1, scale into Q; stack, transpose, cast."""
    c = params["wp"].shape[0]
    dh = c // NUM_HEADS
    scale = 1.0 / float(np.sqrt(dh))
    w_all, b_all = params["w_all"], params["b_all"]
    wqkv, bqkv, woT, bo, wmlp = [], [], [], [], []
    for l in range(NUM_LAYERS):
        Wq, Wk, Wv = w_all[l, IQ], w_all[l, IK], w_all[l, IV]
        Wqi, Wki, Wvi = w_all[l, IQI], w_all[l, IKI], w_all[l, IVI]
        Wo, Wf1, Wf2 = w_all[l, IO], w_all[l, IF1], w_all[l, IF2]
        bqi, bki, bvi, bol = b_all[l, BQI], b_all[l, BKI], b_all[l, BVI], b_all[l, BO]
        wqkv.append(jnp.concatenate([scale * (Wqi @ Wq), Wki @ Wk, Wvi @ Wv], axis=0))
        bqkv.append(jnp.concatenate([scale * bqi, bki, bvi])[:, None])
        woT.append(Wo.T.reshape(NUM_HEADS, dh, c))      # per-head rows of Wo^T (sublane-aligned)
        bo.append(bol[:, None])
        wmlp.append(Wf2 @ Wf1)                          # no activation between fc1 and fc2
    return {
        "wp": params["wp"].astype(jnp.bfloat16),        # (C, C)
        "bp": params["bp"][:, None].astype(jnp.float32),        # (C, 1)
        "wqkv": jnp.stack(wqkv).astype(jnp.bfloat16),   # (L, 3C, C)
        "bqkv": jnp.stack(bqkv).astype(jnp.float32),    # (L, 3C, 1)
        "woT": jnp.stack(woT).astype(jnp.bfloat16),     # (L, H, Dh, C)
        "bo": jnp.stack(bo).astype(jnp.float32),        # (L, C, 1)
        "wmlp": jnp.stack(wmlp).astype(jnp.bfloat16),   # (L, C, C)
    }


def concat_transformer_forward(kparams, x1, x2):
    """ConcatTransformerBlock.forward([x1, x2]) with dimension=1 (channel concat)."""
    b, c1x, h, w = x1.shape
    _, c, _, _ = x2.shape
    s = h * w
    L = b * s

    # fold batch into the lane axis: (B, C, H, W) -> (C, B*S) = (32, 128)
    x2_cf = jnp.transpose(x2.reshape(b, c, s), (1, 0, 2)).reshape(c, L)

    # block-diagonal additive mask (constant-folded by XLA): keeps folded images independent
    img = jnp.arange(L, dtype=jnp.int32) // s
    attn_bias = jnp.where(img[:, None] == img[None, :], 0.0, -1e9).astype(jnp.float32)

    kernel = functools.partial(_transformer_kernel,
                               num_layers=NUM_LAYERS,
                               num_heads=NUM_HEADS,
                               head_dim=HEAD_DIM)

    def full(shape):
        return pl.BlockSpec(shape, lambda i: (0,) * len(shape))

    x2_out_cf = pl.pallas_call(
        kernel,
        out_shape=jax.ShapeDtypeStruct((c, L), jnp.float32),
        grid=(1,),                                      # single step; batch lives in lanes
        in_specs=[
            full((c, L)),
            full((L, L)),
            full(kparams["wp"].shape),
            full(kparams["bp"].shape),
            full(kparams["wqkv"].shape),
            full(kparams["bqkv"].shape),
            full(kparams["woT"].shape),
            full(kparams["bo"].shape),
            full(kparams["wmlp"].shape),
        ],
        out_specs=full((c, L)),
        compiler_params=pltpu.CompilerParams(dimension_semantics=("arbitrary",)),
    )(x2_cf, attn_bias, kparams["wp"], kparams["bp"], kparams["wqkv"],
      kparams["bqkv"], kparams["woT"], kparams["bo"], kparams["wmlp"])

    x2_out = jnp.transpose(x2_out_cf.reshape(c, b, s), (1, 0, 2)).reshape(b, c, h, w)
    # channel concat with x1 stays in XLA so x1 never flows through VMEM (per feedback)
    return jnp.concatenate([x1, x2_out], axis=1)


def init_params(key):
    k_wp, k_bp, key = jax.random.split(key, 3)
    wp = jax.random.normal(k_wp, (C, C), jnp.float32) * 0.1
    bp = jax.random.normal(k_bp, (C,), jnp.float32) * 0.05
    w_layers, b_layers = [], []
    for _ in range(NUM_LAYERS):
        key, kw, kb = jax.random.split(key, 3)
        w_layers.append(jax.random.normal(kw, (9, C, C), jnp.float32) * 0.1)
        b_layers.append(jax.random.normal(kb, (4, C), jnp.float32) * 0.05)
    return {"wp": wp, "bp": bp,
            "w_all": jnp.stack(w_layers),               # (L, 9, C, C)  PyTorch (out, in)
            "b_all": jnp.stack(b_layers)}               # (L, 4, C)


def reference_forward(params, x1, x2):
    """Pure-JAX f32 reference mirroring the PyTorch math in (B, S, C) row layout."""
    b, c, h, w = x2.shape
    s = h * w
    x = jnp.transpose(x2.reshape(b, c, s), (0, 2, 1))   # (B, S, C)
    x = x + x @ params["wp"].T + params["bp"]
    w_all, b_all = params["w_all"], params["b_all"]
    dh = c // NUM_HEADS
    for l in range(NUM_LAYERS):
        Wq, Wk, Wv = w_all[l, IQ], w_all[l, IK], w_all[l, IV]
        Wqi, Wki, Wvi = w_all[l, IQI], w_all[l, IKI], w_all[l, IVI]
        Wo, Wf1, Wf2 = w_all[l, IO], w_all[l, IF1], w_all[l, IF2]
        bqi, bki, bvi, bo = b_all[l, BQI], b_all[l, BKI], b_all[l, BVI], b_all[l, BO]
        q, k, v = x @ Wq.T, x @ Wk.T, x @ Wv.T
        Q = q @ Wqi.T + bqi
        K = k @ Wki.T + bki
        V = v @ Wvi.T + bvi
        Qh = Q.reshape(b, s, NUM_HEADS, dh)
        Kh = K.reshape(b, s, NUM_HEADS, dh)
        Vh = V.reshape(b, s, NUM_HEADS, dh)
        sc = jnp.einsum("bqhd,bkhd->bhqk", Qh, Kh) / np.sqrt(dh)
        a = jax.nn.softmax(sc, axis=-1)
        o = jnp.einsum("bhqk,bkhd->bqhd", a, Vh).reshape(b, s, c)
        x = (o @ Wo.T + bo) + x
        x = (x @ Wf1.T) @ Wf2.T + x
    x2_out = jnp.transpose(x, (0, 2, 1)).reshape(b, c, h, w)
    return jnp.concatenate([x1, x2_out], axis=1)


# TODO(synk): when c1 != c2, TransformerBlock prepends Conv(c1,c2)=Conv2d+BatchNorm+SiLU;
# this example uses c1 == c2 (conv is None), matching the module's own branch.

if __name__ == "__main__":
    key = jax.random.PRNGKey(0)
    kp, k1, k2 = jax.random.split(key, 3)
    params = init_params(kp)
    kparams = pack_kernel_params(params)                # fused / stacked / bf16 weights
    x1 = jax.random.normal(k1, (B, C1X, H, W), jnp.float32)
    x2 = jax.random.normal(k2, (B, C, H, W), jnp.float32)

    fwd = jax.jit(concat_transformer_forward)
    out = fwd(kparams, x1, x2)
    jax.block_until_ready(out)

    ref = reference_forward(params, x1, x2)
    # Tolerance deliberately relaxed vs. the f32 reference: bf16 MXU operands + approx
    # reciprocal (per the v6e/v7x feedback); structural fusions alone are exact to ~1e-6.
    np.testing.assert_allclose(np.asarray(out), np.asarray(ref), rtol=5e-2, atol=5e-2)
    assert out.shape == (B, C1X + C, H, W)
    print("KERNEL_OK")
</pallas_src>

<mosaic_0001>
module attributes {stable_mosaic.version = 11 : i64} {
  func.func @_transformer_kernel(%arg0: i32, %arg1: memref<32x128xf32, #tpu.memory_space<vmem>>, %arg2: memref<128x128xf32, #tpu.memory_space<vmem>>, %arg3: memref<32x32xbf16, #tpu.memory_space<vmem>>, %arg4: memref<32x1xf32, #tpu.memory_space<vmem>>, %arg5: memref<2x96x32xbf16, #tpu.memory_space<vmem>>, %arg6: memref<2x96x1xf32, #tpu.memory_space<vmem>>, %arg7: memref<2x4x8x32xbf16, #tpu.memory_space<vmem>>, %arg8: memref<2x32x1xf32, #tpu.memory_space<vmem>>, %arg9: memref<2x32x32xbf16, #tpu.memory_space<vmem>>, %arg10: memref<32x128xf32, #tpu.memory_space<vmem>>) attributes {dimension_semantics = [#tpu.dimension_semantics<arbitrary>], iteration_bounds = array<i64: 1>, scalar_prefetch = 0 : i64, scratch_operands = 0 : i64, tpu.core_type = #tpu.core_type<tc>, window_params = [{pipeline_mode = #tpu.pipeline_mode<synchronous>, transform_indices = @transform_0, window_bounds = array<i64: 32, 128>}, {pipeline_mode = #tpu.pipeline_mode<synchronous>, transform_indices = @transform_1, window_bounds = array<i64: 128, 128>}, {pipeline_mode = #tpu.pipeline_mode<synchronous>, transform_indices = @transform_2, window_bounds = array<i64: 32, 32>}, {pipeline_mode = #tpu.pipeline_mode<synchronous>, transform_indices = @transform_3, window_bounds = array<i64: 32, 1>}, {pipeline_mode = #tpu.pipeline_mode<synchronous>, transform_indices = @transform_4, window_bounds = array<i64: 2, 96, 32>}, {pipeline_mode = #tpu.pipeline_mode<synchronous>, transform_indices = @transform_5, window_bounds = array<i64: 2, 96, 1>}, {pipeline_mode = #tpu.pipeline_mode<synchronous>, transform_indices = @transform_6, window_bounds = array<i64: 2, 4, 8, 32>}, {pipeline_mode = #tpu.pipeline_mode<synchronous>, transform_indices = @transform_7, window_bounds = array<i64: 2, 32, 1>}, {pipeline_mode = #tpu.pipeline_mode<synchronous>, transform_indices = @transform_8, window_bounds = array<i64: 2, 32, 32>}, {pipeline_mode = #tpu.pipeline_mode<synchronous>, transform_indices = @transform_9, window_bounds = array<i64: 32, 128>}]} {
    %c0 = arith.constant 0 : index
    %c0_0 = arith.constant 0 : index
    %0 = vector.load %arg1[%c0, %c0_0] : memref<32x128xf32, #tpu.memory_space<vmem>>, vector<32x128xf32>
    %c0_1 = arith.constant 0 : index
    %c0_2 = arith.constant 0 : index
    %1 = vector.load %arg3[%c0_1, %c0_2] : memref<32x32xbf16, #tpu.memory_space<vmem>>, vector<32x32xbf16>
    %2 = arith.truncf %0 : vector<32x128xf32> to vector<32x128xbf16>
    %cst = arith.constant dense<0.000000e+00> : vector<32x128xf32>
    %3 = tpu.matmul %1, %2, %cst {dimension_numbers = #tpu.dot_dimension_numbers<[1], [0], [0], [1], [0, 0, 1, 1], [], []>} : vector<32x32xbf16>, vector<32x128xbf16>, vector<32x128xf32> -> vector<32x128xf32>
    %c0_3 = arith.constant 0 : index
    %c0_4 = arith.constant 0 : index
    %4 = vector.load %arg4[%c0_3, %c0_4] : memref<32x1xf32, #tpu.memory_space<vmem>>, vector<32x1xf32>
    %5 = vector.broadcast %4 : vector<32x1xf32> to vector<32x128xf32>
    %6 = arith.addf %3, %5 : vector<32x128xf32>
    %7 = arith.addf %0, %6 : vector<32x128xf32>
    %c0_5 = arith.constant 0 : index
    %c0_6 = arith.constant 0 : index
    %8 = vector.load %arg2[%c0_5, %c0_6] : memref<128x128xf32, #tpu.memory_space<vmem>>, vector<128x128xf32>
    %c0_7 = arith.constant 0 : index
    %c0_8 = arith.constant 0 : index
    %c0_9 = arith.constant 0 : index
    %9 = vector.load %arg5[%c0_7, %c0_8, %c0_9] : memref<2x96x32xbf16, #tpu.memory_space<vmem>>, vector<1x96x32xbf16>
    %10 = vector.shape_cast %9 : vector<1x96x32xbf16> to vector<96x32xbf16>
    %11 = arith.truncf %7 : vector<32x128xf32> to vector<32x128xbf16>
    %cst_10 = arith.constant dense<0.000000e+00> : vector<96x128xf32>
    %12 = tpu.matmul %10, %11, %cst_10 {dimension_numbers = #tpu.dot_dimension_numbers<[1], [0], [0], [1], [0, 0, 1, 1], [], []>} : vector<96x32xbf16>, vector<32x128xbf16>, vector<96x128xf32> -> vector<96x128xf32>
    %c0_11 = arith.constant 0 : index
    %c0_12 = arith.constant 0 : index
    %c0_13 = arith.constant 0 : index
    %13 = vector.load %arg6[%c0_11, %c0_12, %c0_13] : memref<2x96x1xf32, #tpu.memory_space<vmem>>, vector<1x96x1xf32>
    %14 = vector.shape_cast %13 : vector<1x96x1xf32> to vector<96x1xf32>
    %15 = vector.broadcast %14 : vector<96x1xf32> to vector<96x128xf32>
    %16 = arith.addf %12, %15 : vector<96x128xf32>
    %cst_14 = arith.constant 0.000000e+00 : f32
    %17 = vector.broadcast %cst_14 : f32 to vector<32x128xf32>
    %18 = vector.extract_strided_slice %16 {offsets = [0, 0], sizes = [8, 128], strides = [1, 1]} : vector<96x128xf32> to vector<8x128xf32>
    %19 = arith.truncf %18 : vector<8x128xf32> to vector<8x128xbf16>
    %20 = vector.extract_strided_slice %16 {offsets = [32, 0], sizes = [8, 128], strides = [1, 1]} : vector<96x128xf32> to vector<8x128xf32>
    %21 = arith.truncf %20 : vector<8x128xf32> to vector<8x128xbf16>
    %22 = vector.extract_strided_slice %16 {offsets = [64, 0], sizes = [8, 128], strides = [1, 1]} : vector<96x128xf32> to vector<8x128xf32>
    %23 = arith.truncf %22 : vector<8x128xf32> to vector<8x128xbf16>
    %cst_15 = arith.constant dense<0.000000e+00> : vector<128x128xf32>
    %24 = tpu.matmul %21, %19, %cst_15 {dimension_numbers = #tpu.dot_dimension_numbers<[0], [0], [1], [1], [0, 1, 1, 1], [], []>} : vector<8x128xbf16>, vector<8x128xbf16>, vector<128x128xf32> -> vector<128x128xf32>
    %25 = arith.addf %24, %8 : vector<128x128xf32>
    %cst_16 = arith.constant dense<0xFF800000> : vector<128xf32>
    %26 = vector.multi_reduction <maximumf>, %25, %cst_16 [0] : vector<128x128xf32> to vector<128xf32>
    %27 = vector.shape_cast %26 : vector<128xf32> to vector<1x128xf32>
    %28 = vector.broadcast %27 : vector<1x128xf32> to vector<128x128xf32>
    %29 = arith.subf %25, %28 : vector<128x128xf32>
    %30 = math.exp %29 : vector<128x128xf32>
    %cst_17 = arith.constant dense<0.000000e+00> : vector<128xf32>
    %31 = vector.multi_reduction <add>, %30, %cst_17 [0] : vector<128x128xf32> to vector<128xf32>
    %32 = vector.shape_cast %31 : vector<128xf32> to vector<1x128xf32>
    %33 = arith.truncf %30 : vector<128x128xf32> to vector<128x128xbf16>
    %cst_18 = arith.constant dense<0.000000e+00> : vector<8x128xf32>
    %34 = tpu.matmul %23, %33, %cst_18 {dimension_numbers = #tpu.dot_dimension_numbers<[1], [0], [0], [1], [0, 0, 1, 1], [], []>} : vector<8x128xbf16>, vector<128x128xbf16>, vector<8x128xf32> -> vector<8x128xf32>
    %35 = tpu.reciprocal %32 {approx = true} : vector<1x128xf32> -> vector<1x128xf32>
    %36 = vector.broadcast %35 : vector<1x128xf32> to vector<8x128xf32>
    %37 = arith.mulf %34, %36 : vector<8x128xf32>
    %c0_19 = arith.constant 0 : index
    %c0_20 = arith.constant 0 : index
    %c0_21 = arith.constant 0 : index
    %c0_22 = arith.constant 0 : index
    %38 = vector.load %arg7[%c0_19, %c0_20, %c0_21, %c0_22] : memref<2x4x8x32xbf16, #tpu.memory_space<vmem>>, vector<1x1x8x32xbf16>
    %39 = vector.shape_cast %38 : vector<1x1x8x32xbf16> to vector<8x32xbf16>
    %40 = arith.truncf %37 : vector<8x128xf32> to vector<8x128xbf16>
    %cst_23 = arith.constant dense<0.000000e+00> : vector<32x128xf32>
    %41 = tpu.matmul %39, %40, %cst_23 {dimension_numbers = #tpu.dot_dimension_numbers<[0], [0], [1], [1], [0, 1, 1, 1], [], []>} : vector<8x32xbf16>, vector<8x128xbf16>, vector<32x128xf32> -> vector<32x128xf32>
    %42 = arith.addf %17, %41 : vector<32x128xf32>
    %43 = vector.extract_strided_slice %16 {offsets = [8, 0], sizes = [8, 128], strides = [1, 1]} : vector<96x128xf32> to vector<8x128xf32>
    %44 = arith.truncf %43 : vector<8x128xf32> to vector<8x128xbf16>
    %45 = vector.extract_strided_slice %16 {offsets = [40, 0], sizes = [8, 128], strides = [1, 1]} : vector<96x128xf32> to vector<8x128xf32>
    %46 = arith.truncf %45 : vector<8x128xf32> to vector<8x128xbf16>
    %47 = vector.extract_strided_slice %16 {offsets = [72, 0], sizes = [8, 128], strides = [1, 1]} : vector<96x128xf32> to vector<8x128xf32>
    %48 = arith.truncf %47 : vector<8x128xf32> to vector<8x128xbf16>
    %cst_24 = arith.constant dense<0.000000e+00> : vector<128x128xf32>
    %49 = tpu.matmul %46, %44, %cst_24 {dimension_numbers = #tpu.dot_dimension_numbers<[0], [0], [1], [1], [0, 1, 1, 1], [], []>} : vector<8x128xbf16>, vector<8x128xbf16>, vector<128x128xf32> -> vector<128x128xf32>
    %50 = arith.addf %49, %8 : vector<128x128xf32>
    %cst_25 = arith.constant dense<0xFF800000> : vector<128xf32>
    %51 = vector.multi_reduction <maximumf>, %50, %cst_25 [0] : vector<128x128xf32> to vector<128xf32>
    %52 = vector.shape_cast %51 : vector<128xf32> to vector<1x128xf32>
    %53 = vector.broadcast %52 : vector<1x128xf32> to vector<128x128xf32>
    %54 = arith.subf %50, %53 : vector<128x128xf32>
    %55 = math.exp %54 : vector<128x128xf32>
    %cst_26 = arith.constant dense<0.000000e+00> : vector<128xf32>
    %56 = vector.multi_reduction <add>, %55, %cst_26 [0] : vector<128x128xf32> to vector<128xf32>
    %57 = vector.shape_cast %56 : vector<128xf32> to vector<1x128xf32>
    %58 = arith.truncf %55 : vector<128x128xf32> to vector<128x128xbf16>
    %cst_27 = arith.constant dense<0.000000e+00> : vector<8x128xf32>
    %59 = tpu.matmul %48, %58, %cst_27 {dimension_numbers = #tpu.dot_dimension_numbers<[1], [0], [0], [1], [0, 0, 1, 1], [], []>} : vector<8x128xbf16>, vector<128x128xbf16>, vector<8x128xf32> -> vector<8x128xf32>
    %60 = tpu.reciprocal %57 {approx = true} : vector<1x128xf32> -> vector<1x128xf32>
    %61 = vector.broadcast %60 : vector<1x128xf32> to vector<8x128xf32>
    %62 = arith.mulf %59, %61 : vector<8x128xf32>
    %c0_28 = arith.constant 0 : index
    %c1 = arith.constant 1 : index
    %c0_29 = arith.constant 0 : index
    %c0_30 = arith.constant 0 : index
    %63 = vector.load %arg7[%c0_28, %c1, %c0_29, %c0_30] : memref<2x4x8x32xbf16, #tpu.memory_space<vmem>>, vector<1x1x8x32xbf16>
    %64 = vector.shape_cast %63 : vector<1x1x8x32xbf16> to vector<8x32xbf16>
    %65 = arith.truncf %62 : vector<8x128xf32> to vector<8x128xbf16>
    %cst_31 = arith.constant dense<0.000000e+00> : vector<32x128xf32>
    %66 = tpu.matmul %64, %65, %cst_31 {dimension_numbers = #tpu.dot_dimension_numbers<[0], [0], [1], [1], [0, 1, 1, 1], [], []>} : vector<8x32xbf16>, vector<8x128xbf16>, vector<32x128xf32> -> vector<32x128xf32>
    %67 = arith.addf %42, %66 : vector<32x128xf32>
    %68 = vector.extract_strided_slice %16 {offsets = [16, 0], sizes = [8, 128], strides = [1, 1]} : vector<96x128xf32> to vector<8x128xf32>
    %69 = arith.truncf %68 : vector<8x128xf32> to vector<8x128xbf16>
    %70 = vector.extract_strided_slice %16 {offsets = [48, 0], sizes = [8, 128], strides = [1, 1]} : vector<96x128xf32> to vector<8x128xf32>
    %71 = arith.truncf %70 : vector<8x128xf32> to vector<8x128xbf16>
    %72 = vector.extract_strided_slice %16 {offsets = [80, 0], sizes = [8, 128], strides = [1, 1]} : vector<96x128xf32> to vector<8x128xf32>
    %73 = arith.truncf %72 : vector<8x128xf32> to vector<8x128xbf16>
    %cst_32 = arith.constant dense<0.000000e+00> : vector<128x128xf32>
    %74 = tpu.matmul %71, %69, %cst_32 {dimension_numbers = #tpu.dot_dimension_numbers<[0], [0], [1], [1], [0, 1, 1, 1], [], []>} : vector<8x128xbf16>, vector<8x128xbf16>, vector<128x128xf32> -> vector<128x128xf32>
    %75 = arith.addf %74, %8 : vector<128x128xf32>
    %cst_33 = arith.constant dense<0xFF800000> : vector<128xf32>
    %76 = vector.multi_reduction <maximumf>, %75, %cst_33 [0] : vector<128x128xf32> to vector<128xf32>
    %77 = vector.shape_cast %76 : vector<128xf32> to vector<1x128xf32>
    %78 = vector.broadcast %77 : vector<1x128xf32> to vector<128x128xf32>
    %79 = arith.subf %75, %78 : vector<128x128xf32>
    %80 = math.exp %79 : vector<128x128xf32>
    %cst_34 = arith.constant dense<0.000000e+00> : vector<128xf32>
    %81 = vector.multi_reduction <add>, %80, %cst_34 [0] : vector<128x128xf32> to vector<128xf32>
    %82 = vector.shape_cast %81 : vector<128xf32> to vector<1x128xf32>
    %83 = arith.truncf %80 : vector<128x128xf32> to vector<128x128xbf16>
    %cst_35 = arith.constant dense<0.000000e+00> : vector<8x128xf32>
    %84 = tpu.matmul %73, %83, %cst_35 {dimension_numbers = #tpu.dot_dimension_numbers<[1], [0], [0], [1], [0, 0, 1, 1], [], []>} : vector<8x128xbf16>, vector<128x128xbf16>, vector<8x128xf32> -> vector<8x128xf32>
    %85 = tpu.reciprocal %82 {approx = true} : vector<1x128xf32> -> vector<1x128xf32>
    %86 = vector.broadcast %85 : vector<1x128xf32> to vector<8x128xf32>
    %87 = arith.mulf %84, %86 : vector<8x128xf32>
    %c0_36 = arith.constant 0 : index
    %c2 = arith.constant 2 : index
    %c0_37 = arith.constant 0 : index
    %c0_38 = arith.constant 0 : index
    %88 = vector.load %arg7[%c0_36, %c2, %c0_37, %c0_38] : memref<2x4x8x32xbf16, #tpu.memory_space<vmem>>, vector<1x1x8x32xbf16>
    %89 = vector.shape_cast %88 : vector<1x1x8x32xbf16> to vector<8x32xbf16>
    %90 = arith.truncf %87 : vector<8x128xf32> to vector<8x128xbf16>
    %cst_39 = arith.constant dense<0.000000e+00> : vector<32x128xf32>
    %91 = tpu.matmul %89, %90, %cst_39 {dimension_numbers = #tpu.dot_dimension_numbers<[0], [0], [1], [1], [0, 1, 1, 1], [], []>} : vector<8x32xbf16>, vector<8x128xbf16>, vector<32x128xf32> -> vector<32x128xf32>
    %92 = arith.addf %67, %91 : vector<32x128xf32>
    %93 = vector.extract_strided_slice %16 {offsets = [24, 0], sizes = [8, 128], strides = [1, 1]} : vector<96x128xf32> to vector<8x128xf32>
    %94 = arith.truncf %93 : vector<8x128xf32> to vector<8x128xbf16>
    %95 = vector.extract_strided_slice %16 {offsets = [56, 0], sizes = [8, 128], strides = [1, 1]} : vector<96x128xf32> to vector<8x128xf32>
    %96 = arith.truncf %95 : vector<8x128xf32> to vector<8x128xbf16>
    %97 = vector.extract_strided_slice %16 {offsets = [88, 0], sizes = [8, 128], strides = [1, 1]} : vector<96x128xf32> to vector<8x128xf32>
    %98 = arith.truncf %97 : vector<8x128xf32> to vector<8x128xbf16>
    %cst_40 = arith.constant dense<0.000000e+00> : vector<128x128xf32>
    %99 = tpu.matmul %96, %94, %cst_40 {dimension_numbers = #tpu.dot_dimension_numbers<[0], [0], [1], [1], [0, 1, 1, 1], [], []>} : vector<8x128xbf16>, vector<8x128xbf16>, vector<128x128xf32> -> vector<128x128xf32>
    %100 = arith.addf %99, %8 : vector<128x128xf32>
    %cst_41 = arith.constant dense<0xFF800000> : vector<128xf32>
    %101 = vector.multi_reduction <maximumf>, %100, %cst_41 [0] : vector<128x128xf32> to vector<128xf32>
    %102 = vector.shape_cast %101 : vector<128xf32> to vector<1x128xf32>
    %103 = vector.broadcast %102 : vector<1x128xf32> to vector<128x128xf32>
    %104 = arith.subf %100, %103 : vector<128x128xf32>
    %105 = math.exp %104 : vector<128x128xf32>
    %cst_42 = arith.constant dense<0.000000e+00> : vector<128xf32>
    %106 = vector.multi_reduction <add>, %105, %cst_42 [0] : vector<128x128xf32> to vector<128xf32>
    %107 = vector.shape_cast %106 : vector<128xf32> to vector<1x128xf32>
    %108 = arith.truncf %105 : vector<128x128xf32> to vector<128x128xbf16>
    %cst_43 = arith.constant dense<0.000000e+00> : vector<8x128xf32>
    %109 = tpu.matmul %98, %108, %cst_43 {dimension_numbers = #tpu.dot_dimension_numbers<[1], [0], [0], [1], [0, 0, 1, 1], [], []>} : vector<8x128xbf16>, vector<128x128xbf16>, vector<8x128xf32> -> vector<8x128xf32>
    %110 = tpu.reciprocal %107 {approx = true} : vector<1x128xf32> -> vector<1x128xf32>
    %111 = vector.broadcast %110 : vector<1x128xf32> to vector<8x128xf32>
    %112 = arith.mulf %109, %111 : vector<8x128xf32>
    %c0_44 = arith.constant 0 : index
    %c3 = arith.constant 3 : index
    %c0_45 = arith.constant 0 : index
    %c0_46 = arith.constant 0 : index
    %113 = vector.load %arg7[%c0_44, %c3, %c0_45, %c0_46] : memref<2x4x8x32xbf16, #tpu.memory_space<vmem>>, vector<1x1x8x32xbf16>
    %114 = vector.shape_cast %113 : vector<1x1x8x32xbf16> to vector<8x32xbf16>
    %115 = arith.truncf %112 : vector<8x128xf32> to vector<8x128xbf16>
    %cst_47 = arith.constant dense<0.000000e+00> : vector<32x128xf32>
    %116 = tpu.matmul %114, %115, %cst_47 {dimension_numbers = #tpu.dot_dimension_numbers<[0], [0], [1], [1], [0, 1, 1, 1], [], []>} : vector<8x32xbf16>, vector<8x128xbf16>, vector<32x128xf32> -> vector<32x128xf32>
    %117 = arith.addf %92, %116 : vector<32x128xf32>
    %118 = arith.addf %7, %117 : vector<32x128xf32>
    %c0_48 = arith.constant 0 : index
    %c0_49 = arith.constant 0 : index
    %c0_50 = arith.constant 0 : index
    %119 = vector.load %arg8[%c0_48, %c0_49, %c0_50] : memref<2x32x1xf32, #tpu.memory_space<vmem>>, vector<1x32x1xf32>
    %120 = vector.shape_cast %119 : vector<1x32x1xf32> to vector<32x1xf32>
    %121 = vector.broadcast %120 : vector<32x1xf32> to vector<32x128xf32>
    %122 = arith.addf %118, %121 : vector<32x128xf32>
    %c0_51 = arith.constant 0 : index
    %c0_52 = arith.constant 0 : index
    %c0_53 = arith.constant 0 : index
    %123 = vector.load %arg9[%c0_51, %c0_52, %c0_53] : memref<2x32x32xbf16, #tpu.memory_space<vmem>>, vector<1x32x32xbf16>
    %124 = vector.shape_cast %123 : vector<1x32x32xbf16> to vector<32x32xbf16>
    %125 = arith.truncf %122 : vector<32x128xf32> to vector<32x128xbf16>
    %cst_54 = arith.constant dense<0.000000e+00> : vector<32x128xf32>
    %126 = tpu.matmul %124, %125, %cst_54 {dimension_numbers = #tpu.dot_dimension_numbers<[1], [0], [0], [1], [0, 0, 1, 1], [], []>} : vector<32x32xbf16>, vector<32x128xbf16>, vector<32x128xf32> -> vector<32x128xf32>
    %127 = arith.addf %122, %126 : vector<32x128xf32>
    %c1_55 = arith.constant 1 : index
    %c0_56 = arith.constant 0 : index
    %c0_57 = arith.constant 0 : index
    %128 = vector.load %arg5[%c1_55, %c0_56, %c0_57] : memref<2x96x32xbf16, #tpu.memory_space<vmem>>, vector<1x96x32xbf16>
    %129 = vector.shape_cast %128 : vector<1x96x32xbf16> to vector<96x32xbf16>
    %130 = arith.truncf %127 : vector<32x128xf32> to vector<32x128xbf16>
    %cst_58 = arith.constant dense<0.000000e+00> : vector<96x128xf32>
    %131 = tpu.matmul %129, %130, %cst_58 {dimension_numbers = #tpu.dot_dimension_numbers<[1], [0], [0], [1], [0, 0, 1, 1], [], []>} : vector<96x32xbf16>, vector<32x128xbf16>, vector<96x128xf32> -> vector<96x128xf32>
    %c1_59 = arith.constant 1 : index
    %c0_60 = arith.constant 0 : index
    %c0_61 = arith.constant 0 : index
    %132 = vector.load %arg6[%c1_59, %c0_60, %c0_61] : memref<2x96x1xf32, #tpu.memory_space<vmem>>, vector<1x96x1xf32>
    %133 = vector.shape_cast %132 : vector<1x96x1xf32> to vector<96x1xf32>
    %134 = vector.broadcast %133 : vector<96x1xf32> to vector<96x128xf32>
    %135 = arith.addf %131, %134 : vector<96x128xf32>
    %cst_62 = arith.constant 0.000000e+00 : f32
    %136 = vector.broadcast %cst_62 : f32 to vector<32x128xf32>
    %137 = vector.extract_strided_slice %135 {offsets = [0, 0], sizes = [8, 128], strides = [1, 1]} : vector<96x128xf32> to vector<8x128xf32>
    %138 = arith.truncf %137 : vector<8x128xf32> to vector<8x128xbf16>
    %139 = vector.extract_strided_slice %135 {offsets = [32, 0], sizes = [8, 128], strides = [1, 1]} : vector<96x128xf32> to vector<8x128xf32>
    %140 = arith.truncf %139 : vector<8x128xf32> to vector<8x128xbf16>
    %141 = vector.extract_strided_slice %135 {offsets = [64, 0], sizes = [8, 128], strides = [1, 1]} : vector<96x128xf32> to vector<8x128xf32>
    %142 = arith.truncf %141 : vector<8x128xf32> to vector<8x128xbf16>
    %cst_63 = arith.constant dense<0.000000e+00> : vector<128x128xf32>
    %143 = tpu.matmul %140, %138, %cst_63 {dimension_numbers = #tpu.dot_dimension_numbers<[0], [0], [1], [1], [0, 1, 1, 1], [], []>} : vector<8x128xbf16>, vector<8x128xbf16>, vector<128x128xf32> -> vector<128x128xf32>
    %144 = arith.addf %143, %8 : vector<128x128xf32>
    %cst_64 = arith.constant dense<0xFF800000> : vector<128xf32>
    %145 = vector.multi_reduction <maximumf>, %144, %cst_64 [0] : vector<128x128xf32> to vector<128xf32>
    %146 = vector.shape_cast %145 : vector<128xf32> to vector<1x128xf32>
    %147 = vector.broadcast %146 : vector<1x128xf32> to vector<128x128xf32>
    %148 = arith.subf %144, %147 : vector<128x128xf32>
    %149 = math.exp %148 : vector<128x128xf32>
    %cst_65 = arith.constant dense<0.000000e+00> : vector<128xf32>
    %150 = vector.multi_reduction <add>, %149, %cst_65 [0] : vector<128x128xf32> to vector<128xf32>
    %151 = vector.shape_cast %150 : vector<128xf32> to vector<1x128xf32>
    %152 = arith.truncf %149 : vector<128x128xf32> to vector<128x128xbf16>
    %cst_66 = arith.constant dense<0.000000e+00> : vector<8x128xf32>
    %153 = tpu.matmul %142, %152, %cst_66 {dimension_numbers = #tpu.dot_dimension_numbers<[1], [0], [0], [1], [0, 0, 1, 1], [], []>} : vector<8x128xbf16>, vector<128x128xbf16>, vector<8x128xf32> -> vector<8x128xf32>
    %154 = tpu.reciprocal %151 {approx = true} : vector<1x128xf32> -> vector<1x128xf32>
    %155 = vector.broadcast %154 : vector<1x128xf32> to vector<8x128xf32>
    %156 = arith.mulf %153, %155 : vector<8x128xf32>
    %c1_67 = arith.constant 1 : index
    %c0_68 = arith.constant 0 : index
    %c0_69 = arith.constant 0 : index
    %c0_70 = arith.constant 0 : index
    %157 = vector.load %arg7[%c1_67, %c0_68, %c0_69, %c0_70] : memref<2x4x8x32xbf16, #tpu.memory_space<vmem>>, vector<1x1x8x32xbf16>
    %158 = vector.shape_cast %157 : vector<1x1x8x32xbf16> to vector<8x32xbf16>
    %159 = arith.truncf %156 : vector<8x128xf32> to vector<8x128xbf16>
    %cst_71 = arith.constant dense<0.000000e+00> : vector<32x128xf32>
    %160 = tpu.matmul %158, %159, %cst_71 {dimension_numbers = #tpu.dot_dimension_numbers<[0], [0], [1], [1], [0, 1, 1, 1], [], []>} : vector<8x32xbf16>, vector<8x128xbf16>, vector<32x128xf32> -> vector<32x128xf32>
    %161 = arith.addf %136, %160 : vector<32x128xf32>
    %162 = vector.extract_strided_slice %135 {offsets = [8, 0], sizes = [8, 128], strides = [1, 1]} : vector<96x128xf32> to vector<8x128xf32>
    %163 = arith.truncf %162 : vector<8x128xf32> to vector<8x128xbf16>
    %164 = vector.extract_strided_slice %135 {offsets = [40, 0], sizes = [8, 128], strides = [1, 1]} : vector<96x128xf32> to vector<8x128xf32>
    %165 = arith.truncf %164 : vector<8x128xf32> to vector<8x128xbf16>
    %166 = vector.extract_strided_slice %135 {offsets = [72, 0], sizes = [8, 128], strides = [1, 1]} : vector<96x128xf32> to vector<8x128xf32>
    %167 = arith.truncf %166 : vector<8x128xf32> to vector<8x128xbf16>
    %cst_72 = arith.constant dense<0.000000e+00> : vector<128x128xf32>
    %168 = tpu.matmul %165, %163, %cst_72 {dimension_numbers = #tpu.dot_dimension_numbers<[0], [0], [1], [1], [0, 1, 1, 1], [], []>} : vector<8x128xbf16>, vector<8x128xbf16>, vector<128x128xf32> -> vector<128x128xf32>
    %169 = arith.addf %168, %8 : vector<128x128xf32>
    %cst_73 = arith.constant dense<0xFF800000> : vector<128xf32>
    %170 = vector.multi_reduction <maximumf>, %169, %cst_73 [0] : vector<128x128xf32> to vector<128xf32>
    %171 = vector.shape_cast %170 : vector<128xf32> to vector<1x128xf32>
    %172 = vector.broadcast %171 : vector<1x128xf32> to vector<128x128xf32>
    %173 = arith.subf %169, %172 : vector<128x128xf32>
    %174 = math.exp %173 : vector<128x128xf32>
    %cst_74 = arith.constant dense<0.000000e+00> : vector<128xf32>
    %175 = vector.multi_reduction <add>, %174, %cst_74 [0] : vector<128x128xf32> to vector<128xf32>
    %176 = vector.shape_cast %175 : vector<128xf32> to vector<1x128xf32>
    %177 = arith.truncf %174 : vector<128x128xf32> to vector<128x128xbf16>
    %cst_75 = arith.constant dense<0.000000e+00> : vector<8x128xf32>
    %178 = tpu.matmul %167, %177, %cst_75 {dimension_numbers = #tpu.dot_dimension_numbers<[1], [0], [0], [1], [0, 0, 1, 1], [], []>} : vector<8x128xbf16>, vector<128x128xbf16>, vector<8x128xf32> -> vector<8x128xf32>
    %179 = tpu.reciprocal %176 {approx = true} : vector<1x128xf32> -> vector<1x128xf32>
    %180 = vector.broadcast %179 : vector<1x128xf32> to vector<8x128xf32>
    %181 = arith.mulf %178, %180 : vector<8x128xf32>
    %c1_76 = arith.constant 1 : index
    %c1_77 = arith.constant 1 : index
    %c0_78 = arith.constant 0 : index
    %c0_79 = arith.constant 0 : index
    %182 = vector.load %arg7[%c1_76, %c1_77, %c0_78, %c0_79] : memref<2x4x8x32xbf16, #tpu.memory_space<vmem>>, vector<1x1x8x32xbf16>
    %183 = vector.shape_cast %182 : vector<1x1x8x32xbf16> to vector<8x32xbf16>
    %184 = arith.truncf %181 : vector<8x128xf32> to vector<8x128xbf16>
    %cst_80 = arith.constant dense<0.000000e+00> : vector<32x128xf32>
    %185 = tpu.matmul %183, %184, %cst_80 {dimension_numbers = #tpu.dot_dimension_numbers<[0], [0], [1], [1], [0, 1, 1, 1], [], []>} : vector<8x32xbf16>, vector<8x128xbf16>, vector<32x128xf32> -> vector<32x128xf32>
    %186 = arith.addf %161, %185 : vector<32x128xf32>
    %187 = vector.extract_strided_slice %135 {offsets = [16, 0], sizes = [8, 128], strides = [1, 1]} : vector<96x128xf32> to vector<8x128xf32>
    %188 = arith.truncf %187 : vector<8x128xf32> to vector<8x128xbf16>
    %189 = vector.extract_strided_slice %135 {offsets = [48, 0], sizes = [8, 128], strides = [1, 1]} : vector<96x128xf32> to vector<8x128xf32>
    %190 = arith.truncf %189 : vector<8x128xf32> to vector<8x128xbf16>
    %191 = vector.extract_strided_slice %135 {offsets = [80, 0], sizes = [8, 128], strides = [1, 1]} : vector<96x128xf32> to vector<8x128xf32>
    %192 = arith.truncf %191 : vector<8x128xf32> to vector<8x128xbf16>
    %cst_81 = arith.constant dense<0.000000e+00> : vector<128x128xf32>
    %193 = tpu.matmul %190, %188, %cst_81 {dimension_numbers = #tpu.dot_dimension_numbers<[0], [0], [1], [1], [0, 1, 1, 1], [], []>} : vector<8x128xbf16>, vector<8x128xbf16>, vector<128x128xf32> -> vector<128x128xf32>
    %194 = arith.addf %193, %8 : vector<128x128xf32>
    %cst_82 = arith.constant dense<0xFF800000> : vector<128xf32>
    %195 = vector.multi_reduction <maximumf>, %194, %cst_82 [0] : vector<128x128xf32> to vector<128xf32>
    %196 = vector.shape_cast %195 : vector<128xf32> to vector<1x128xf32>
    %197 = vector.broadcast %196 : vector<1x128xf32> to vector<128x128xf32>
    %198 = arith.subf %194, %197 : vector<128x128xf32>
    %199 = math.exp %198 : vector<128x128xf32>
    %cst_83 = arith.constant dense<0.000000e+00> : vector<128xf32>
    %200 = vector.multi_reduction <add>, %199, %cst_83 [0] : vector<128x128xf32> to vector<128xf32>
    %201 = vector.shape_cast %200 : vector<128xf32> to vector<1x128xf32>
    %202 = arith.truncf %199 : vector<128x128xf32> to vector<128x128xbf16>
    %cst_84 = arith.constant dense<0.000000e+00> : vector<8x128xf32>
    %203 = tpu.matmul %192, %202, %cst_84 {dimension_numbers = #tpu.dot_dimension_numbers<[1], [0], [0], [1], [0, 0, 1, 1], [], []>} : vector<8x128xbf16>, vector<128x128xbf16>, vector<8x128xf32> -> vector<8x128xf32>
    %204 = tpu.reciprocal %201 {approx = true} : vector<1x128xf32> -> vector<1x128xf32>
    %205 = vector.broadcast %204 : vector<1x128xf32> to vector<8x128xf32>
    %206 = arith.mulf %203, %205 : vector<8x128xf32>
    %c1_85 = arith.constant 1 : index
    %c2_86 = arith.constant 2 : index
    %c0_87 = arith.constant 0 : index
    %c0_88 = arith.constant 0 : index
    %207 = vector.load %arg7[%c1_85, %c2_86, %c0_87, %c0_88] : memref<2x4x8x32xbf16, #tpu.memory_space<vmem>>, vector<1x1x8x32xbf16>
    %208 = vector.shape_cast %207 : vector<1x1x8x32xbf16> to vector<8x32xbf16>
    %209 = arith.truncf %206 : vector<8x128xf32> to vector<8x128xbf16>
    %cst_89 = arith.constant dense<0.000000e+00> : vector<32x128xf32>
    %210 = tpu.matmul %208, %209, %cst_89 {dimension_numbers = #tpu.dot_dimension_numbers<[0], [0], [1], [1], [0, 1, 1, 1], [], []>} : vector<8x32xbf16>, vector<8x128xbf16>, vector<32x128xf32> -> vector<32x128xf32>
    %211 = arith.addf %186, %210 : vector<32x128xf32>
    %212 = vector.extract_strided_slice %135 {offsets = [24, 0], sizes = [8, 128], strides = [1, 1]} : vector<96x128xf32> to vector<8x128xf32>
    %213 = arith.truncf %212 : vector<8x128xf32> to vector<8x128xbf16>
    %214 = vector.extract_strided_slice %135 {offsets = [56, 0], sizes = [8, 128], strides = [1, 1]} : vector<96x128xf32> to vector<8x128xf32>
    %215 = arith.truncf %214 : vector<8x128xf32> to vector<8x128xbf16>
    %216 = vector.extract_strided_slice %135 {offsets = [88, 0], sizes = [8, 128], strides = [1, 1]} : vector<96x128xf32> to vector<8x128xf32>
    %217 = arith.truncf %216 : vector<8x128xf32> to vector<8x128xbf16>
    %cst_90 = arith.constant dense<0.000000e+00> : vector<128x128xf32>
    %218 = tpu.matmul %215, %213, %cst_90 {dimension_numbers = #tpu.dot_dimension_numbers<[0], [0], [1], [1], [0, 1, 1, 1], [], []>} : vector<8x128xbf16>, vector<8x128xbf16>, vector<128x128xf32> -> vector<128x128xf32>
    %219 = arith.addf %218, %8 : vector<128x128xf32>
    %cst_91 = arith.constant dense<0xFF800000> : vector<128xf32>
    %220 = vector.multi_reduction <maximumf>, %219, %cst_91 [0] : vector<128x128xf32> to vector<128xf32>
    %221 = vector.shape_cast %220 : vector<128xf32> to vector<1x128xf32>
    %222 = vector.broadcast %221 : vector<1x128xf32> to vector<128x128xf32>
    %223 = arith.subf %219, %222 : vector<128x128xf32>
    %224 = math.exp %223 : vector<128x128xf32>
    %cst_92 = arith.constant dense<0.000000e+00> : vector<128xf32>
    %225 = vector.multi_reduction <add>, %224, %cst_92 [0] : vector<128x128xf32> to vector<128xf32>
    %226 = vector.shape_cast %225 : vector<128xf32> to vector<1x128xf32>
    %227 = arith.truncf %224 : vector<128x128xf32> to vector<128x128xbf16>
    %cst_93 = arith.constant dense<0.000000e+00> : vector<8x128xf32>
    %228 = tpu.matmul %217, %227, %cst_93 {dimension_numbers = #tpu.dot_dimension_numbers<[1], [0], [0], [1], [0, 0, 1, 1], [], []>} : vector<8x128xbf16>, vector<128x128xbf16>, vector<8x128xf32> -> vector<8x128xf32>
    %229 = tpu.reciprocal %226 {approx = true} : vector<1x128xf32> -> vector<1x128xf32>
    %230 = vector.broadcast %229 : vector<1x128xf32> to vector<8x128xf32>
    %231 = arith.mulf %228, %230 : vector<8x128xf32>
    %c1_94 = arith.constant 1 : index
    %c3_95 = arith.constant 3 : index
    %c0_96 = arith.constant 0 : index
    %c0_97 = arith.constant 0 : index
    %232 = vector.load %arg7[%c1_94, %c3_95, %c0_96, %c0_97] : memref<2x4x8x32xbf16, #tpu.memory_space<vmem>>, vector<1x1x8x32xbf16>
    %233 = vector.shape_cast %232 : vector<1x1x8x32xbf16> to vector<8x32xbf16>
    %234 = arith.truncf %231 : vector<8x128xf32> to vector<8x128xbf16>
    %cst_98 = arith.constant dense<0.000000e+00> : vector<32x128xf32>
    %235 = tpu.matmul %233, %234, %cst_98 {dimension_numbers = #tpu.dot_dimension_numbers<[0], [0], [1], [1], [0, 1, 1, 1], [], []>} : vector<8x32xbf16>, vector<8x128xbf16>, vector<32x128xf32> -> vector<32x128xf32>
    %236 = arith.addf %211, %235 : vector<32x128xf32>
    %237 = arith.addf %127, %236 : vector<32x128xf32>
    %c1_99 = arith.constant 1 : index
    %c0_100 = arith.constant 0 : index
    %c0_101 = arith.constant 0 : index
    %238 = vector.load %arg8[%c1_99, %c0_100, %c0_101] : memref<2x32x1xf32, #tpu.memory_space<vmem>>, vector<1x32x1xf32>
    %239 = vector.shape_cast %238 : vector<1x32x1xf32> to vector<32x1xf32>
    %240 = vector.broadcast %239 : vector<32x1xf32> to vector<32x128xf32>
    %241 = arith.addf %237, %240 : vector<32x128xf32>
    %c1_102 = arith.constant 1 : index
    %c0_103 = arith.constant 0 : index
    %c0_104 = arith.constant 0 : index
    %242 = vector.load %arg9[%c1_102, %c0_103, %c0_104] : memref<2x32x32xbf16, #tpu.memory_space<vmem>>, vector<1x32x32xbf16>
    %243 = vector.shape_cast %242 : vector<1x32x32xbf16> to vector<32x32xbf16>
    %244 = arith.truncf %241 : vector<32x128xf32> to vector<32x128xbf16>
    %cst_105 = arith.constant dense<0.000000e+00> : vector<32x128xf32>
    %245 = tpu.matmul %243, %244, %cst_105 {dimension_numbers = #tpu.dot_dimension_numbers<[1], [0], [0], [1], [0, 0, 1, 1], [], []>} : vector<32x32xbf16>, vector<32x128xbf16>, vector<32x128xf32> -> vector<32x128xf32>
    %246 = arith.addf %241, %245 : vector<32x128xf32>
    %c0_106 = arith.constant 0 : index
    %c0_107 = arith.constant 0 : index
    %247 = vector.load %arg10[%c0_106, %c0_107] : memref<32x128xf32, #tpu.memory_space<vmem>>, vector<32x128xf32>
    tpu.vector_store %arg10[%c0_106, %c0_107], %246 {strides = array<i32>} : memref<32x128xf32, #tpu.memory_space<vmem>>, vector<32x128xf32>,
    return
  }
  func.func @transform_0(%arg0: i32) -> (i32, i32) {
    %c0_i32 = arith.constant 0 : i32
    %c0_i32_0 = arith.constant 0 : i32
    %c0_i32_1 = arith.constant 0 : i32
    return %c0_i32, %c0_i32_0 : i32, i32
  }
  func.func @transform_1(%arg0: i32) -> (i32, i32) {
    %c0_i32 = arith.constant 0 : i32
    %c0_i32_0 = arith.constant 0 : i32
    %c0_i32_1 = arith.constant 0 : i32
    return %c0_i32, %c0_i32_0 : i32, i32
  }
  func.func @transform_2(%arg0: i32) -> (i32, i32) {
    %c0_i32 = arith.constant 0 : i32
    %c0_i32_0 = arith.constant 0 : i32
    %c0_i32_1 = arith.constant 0 : i32
    return %c0_i32, %c0_i32_0 : i32, i32
  }
  func.func @transform_3(%arg0: i32) -> (i32, i32) {
    %c0_i32 = arith.constant 0 : i32
    %c0_i32_0 = arith.constant 0 : i32
    %c0_i32_1 = arith.constant 0 : i32
    return %c0_i32, %c0_i32_0 : i32, i32
  }
  func.func @transform_4(%arg0: i32) -> (i32, i32, i32) {
    %c0_i32 = arith.constant 0 : i32
    %c0_i32_0 = arith.constant 0 : i32
    %c0_i32_1 = arith.constant 0 : i32
    %c0_i32_2 = arith.constant 0 : i32
    return %c0_i32, %c0_i32_0, %c0_i32_1 : i32, i32, i32
  }
  func.func @transform_5(%arg0: i32) -> (i32, i32, i32) {
    %c0_i32 = arith.constant 0 : i32
    %c0_i32_0 = arith.constant 0 : i32
    %c0_i32_1 = arith.constant 0 : i32
    %c0_i32_2 = arith.constant 0 : i32
    return %c0_i32, %c0_i32_0, %c0_i32_1 : i32, i32, i32
  }
  func.func @transform_6(%arg0: i32) -> (i32, i32, i32, i32) {
    %c0_i32 = arith.constant 0 : i32
    %c0_i32_0 = arith.constant 0 : i32
    %c0_i32_1 = arith.constant 0 : i32
    %c0_i32_2 = arith.constant 0 : i32
    %c0_i32_3 = arith.constant 0 : i32
    return %c0_i32, %c0_i32_0, %c0_i32_1, %c0_i32_2 : i32, i32, i32, i32
  }
  func.func @transform_7(%arg0: i32) -> (i32, i32, i32) {
    %c0_i32 = arith.constant 0 : i32
    %c0_i32_0 = arith.constant 0 : i32
    %c0_i32_1 = arith.constant 0 : i32
    %c0_i32_2 = arith.constant 0 : i32
    return %c0_i32, %c0_i32_0, %c0_i32_1 : i32, i32, i32
  }
  func.func @transform_8(%arg0: i32) -> (i32, i32, i32) {
    %c0_i32 = arith.constant 0 : i32
    %c0_i32_0 = arith.constant 0 : i32
    %c0_i32_1 = arith.constant 0 : i32
    %c0_i32_2 = arith.constant 0 : i32
    return %c0_i32, %c0_i32_0, %c0_i32_1 : i32, i32, i32
  }
  func.func @transform_9(%arg0: i32) -> (i32, i32) {
    %c0_i32 = arith.constant 0 : i32
    %c0_i32_0 = arith.constant 0 : i32
    %c0_i32_1 = arith.constant 0 : i32
    return %c0_i32, %c0_i32_0 : i32, i32
  }
}

</mosaic_0001>

<llo_original>
// kernel: concat_transformer_forward.1
$region0: #{concat_transformer_forward.1}
  #allocation0 [shape = 'u32[]', space=smem, size = 0x4, offset = 0x4, fixed_abs, tag = 'smem constant byte address 0x4 - core index']
  #allocation1 [shape = 'u32[144,128]{1,0:T(1,128)}', space=vmem, size = 0x12000, scoped, tag = 'internal scratch']
  %s0 = inlined_call_operand.vmem [shape: f32[32,128], index: 0, kind: input, shape index: {}]
  %s1 = inlined_call_operand.vmem [shape: f32[128,128], index: 1, kind: input, shape index: {}]
  %s2 = inlined_call_operand.vmem [shape: bf16[32,32], index: 2, kind: input, shape index: {}]
  %s3 = inlined_call_operand.vmem [shape: f32[32,1], index: 3, kind: input, shape index: {}]
  %s4 = inlined_call_operand.vmem [shape: bf16[2,96,32], index: 4, kind: input, shape index: {}]
  %s5 = inlined_call_operand.vmem [shape: f32[2,96,1], index: 5, kind: input, shape index: {}]
  %s6 = inlined_call_operand.vmem [shape: bf16[2,4,8,32], index: 6, kind: input, shape index: {}]
  %s7 = inlined_call_operand.vmem [shape: f32[2,32,1], index: 7, kind: input, shape index: {}]
  %s8 = inlined_call_operand.vmem [shape: bf16[2,32,32], index: 8, kind: input, shape index: {}]
  %s9 = inlined_call_operand.vmem [shape: f32[32,128], index: 9, kind: output, shape index: {}]
  %s10 = sld [smem:[#allocation0]]
  $region46: #{concat_transformer_forward.1} parent=0
    _
  %s12 = ssub.s32 1, %s10
  %s13 = scalar_select 0, %s12, %s10
  // Predicated region
  $region2: #{concat_transformer_forward.1} parent=0 // pred_check
    _
  $region3: #{concat_transformer_forward.1} parent=0 // pred_check_branch
    %15 = sbr.rel (0) target = $region5
  $region4: #{concat_transformer_forward.1} parent=0 // pred_region
    _
  $region5: #{concat_transformer_forward.1} parent=0 // pred_fallthru
    _
  // Predicated region
  $region6: #{concat_transformer_forward.1} parent=0 // pred_check
    _
  $region7: #{concat_transformer_forward.1} parent=0 // pred_check_branch
    %17 = sbr.rel (0) target = $region9
  $region8: #{concat_transformer_forward.1} parent=0 // pred_region
    _
  $region9: #{concat_transformer_forward.1} parent=0 // pred_fallthru
    _
  // Predicated region
  $region10: #{concat_transformer_forward.1} parent=0 // pred_check
    _
  $region11: #{concat_transformer_forward.1} parent=0 // pred_check_branch
    %19 = sbr.rel (0) target = $region13
  $region12: #{concat_transformer_forward.1} parent=0 // pred_region
    _
  $region13: #{concat_transformer_forward.1} parent=0 // pred_fallthru
    _
  // Predicated region
  $region14: #{concat_transformer_forward.1} parent=0 // pred_check
    _
  $region15: #{concat_transformer_forward.1} parent=0 // pred_check_branch
    %21 = sbr.rel (0) target = $region17
  $region16: #{concat_transformer_forward.1} parent=0 // pred_region
    _
  $region17: #{concat_transformer_forward.1} parent=0 // pred_fallthru
    _
  // Predicated region
  $region18: #{concat_transformer_forward.1} parent=0 // pred_check
    _
  $region19: #{concat_transformer_forward.1} parent=0 // pred_check_branch
    %23 = sbr.rel (0) target = $region21
  $region20: #{concat_transformer_forward.1} parent=0 // pred_region
    _
  $region21: #{concat_transformer_forward.1} parent=0 // pred_fallthru
    _
  // Predicated region
  $region22: #{concat_transformer_forward.1} parent=0 // pred_check
    _
  $region23: #{concat_transformer_forward.1} parent=0 // pred_check_branch
    %25 = sbr.rel (0) target = $region25
  $region24: #{concat_transformer_forward.1} parent=0 // pred_region
    _
  $region25: #{concat_transformer_forward.1} parent=0 // pred_fallthru
    _
  // Predicated region
  $region26: #{concat_transformer_forward.1} parent=0 // pred_check
    _
  $region27: #{concat_transformer_forward.1} parent=0 // pred_check_branch
    %27 = sbr.rel (0) target = $region29
  $region28: #{concat_transformer_forward.1} parent=0 // pred_region
    _
  $region29: #{concat_transformer_forward.1} parent=0 // pred_fallthru
    _
  // Predicated region
  $region30: #{concat_transformer_forward.1} parent=0 // pred_check
    _
  $region31: #{concat_transformer_forward.1} parent=0 // pred_check_branch
    %29 = sbr.rel (0) target = $region33
  $region32: #{concat_transformer_forward.1} parent=0 // pred_region
    _
  $region33: #{concat_transformer_forward.1} parent=0 // pred_fallthru
    _
  // Predicated region
  $region34: #{concat_transformer_forward.1} parent=0 // pred_check
    _
  $region35: #{concat_transformer_forward.1} parent=0 // pred_check_branch
    %31 = sbr.rel (0) target = $region37
  $region36: #{concat_transformer_forward.1} parent=0 // pred_region
    _
  $region37: #{concat_transformer_forward.1} parent=0 // pred_fallthru
    _
  %v33 = vld [vmem:[%s0] sm:$0xff]
  %v34 = vld [vmem:[%s0 + $0x8] sm:$0xff]
  %v35 = vld [vmem:[%s0 + $0x10] sm:$0xff]
  %v36 = vld [vmem:[%s0 + $0x18] sm:$0xff]
  %v37 = vld [vmem:[%s2] sm:$0xf]
  %v38 = vld [vmem:[%s2 + $0x4] sm:$0xf]
  %v39 = vld [vmem:[%s2 + $0x8] sm:$0xf]
  %v40 = vld [vmem:[%s2 + $0xc] sm:$0xf]
  %v41 = vpack.c.bf16 %v34, %v33
  %v42 = vpack.c.bf16 %v36, %v35
  %v43 = vld [vmem:[%s3] sm:$0xff]
  %v44 = vld [vmem:[%s3 + $0x8] sm:$0xff]
  %v45 = vld [vmem:[%s3 + $0x10] sm:$0xff]
  %v46 = vld [vmem:[%s3 + $0x18] sm:$0xff]
  %48 = vset.pattern.permute.xlu0 0
  %49 = vperm.xlu0 %48, %v43
  %v50 = vpop.permute.xlu0 %49
  %53 = vset.pattern.permute.xlu0 0
  %54 = vperm.xlu0 %53, %v44
  %v55 = vpop.permute.xlu0 %54
  %58 = vset.pattern.permute.xlu0 0
  %59 = vperm.xlu0 %58, %v45
  %v60 = vpop.permute.xlu0 %59
  %63 = vset.pattern.permute.xlu0 0
  %64 = vperm.xlu0 %63, %v46
  %v65 = vpop.permute.xlu0 %64
  %v71 = vunpack.c.l.b16 %v37
  %v72 = vunpack.c.l.b16 %v38
  %v73 = vunpack.c.l.b16 %v39
  %v74 = vunpack.c.l.b16 %v40
  %v75 = vpack.c.b16 %v72, %v71
  %v76 = vpack.c.b16 %v74, %v73
  %vm77 = vcmask 261120
  %v79 = vsel %vm77, %v75, 0
  %v82 = vsel %vm77, %v76, 0
  %84 = vmatprep.subr.bf16.mxu0 0
  %85 = vmatpush1.bf16.msra.mxu0 0
  %86 = vmatprep.subr.bf16.mxu0 0
  %87 = vmatpush1.bf16.msra.mxu0 0
  %88 = vmatprep.subr.bf16.mxu0 0
  %89 = vmatpush1.bf16.msra.mxu0 0
  %90 = vmatprep.subr.bf16.mxu0 0
  %91 = vmatpush1.bf16.msra.mxu0 0
  %92 = vmatprep.subr.bf16.mxu0 0
  %93 = vmatpush1.bf16.msra.mxu0 0
  %94 = vmatprep.subr.bf16.mxu0 0
  %95 = vmatpush1.bf16.msra.mxu0 0
  %96 = vmatprep.subr.bf16.mxu0 0
  %97 = vmatpush1.bf16.msra.mxu0 %v42
  %98 = vmatprep.subr.bf16.mxu0 0
  %99 = vmatpush1.bf16.msra.mxu0 %v41
  %100 = vmatprep.subr.bf16.mxu0 0
  %101 = vmatpush2.bf16.msra.mxu0 0
  %102 = vmatprep.subr.bf16.mxu0 0
  %103 = vmatpush2.bf16.msra.mxu0 0
  %104 = vmatprep.subr.bf16.mxu0 0
  %105 = vmatpush2.bf16.msra.mxu0 0
  %106 = vmatprep.subr.bf16.mxu0 0
  %107 = vmatpush2.bf16.msra.mxu0 0
  %108 = vmatprep.subr.bf16.mxu0 0
  %109 = vmatpush2.bf16.msra.mxu0 0
  %110 = vmatprep.subr.bf16.mxu0 0
  %111 = vmatpush2.bf16.msra.mxu0 0
  %112 = vmatprep.subr.bf16.mxu0 0
  %113 = vmatpush2.bf16.msra.mxu0 0
  %114 = vmatprep.subr.bf16.mxu0 0
  %115 = vmatpush2.bf16.msra.mxu0 0
  %116 = vmatprep.mubr.bf16.mxu0 0
  %117 = vmatmul.mubr.bf16.gmra.mxu0 %v79
  %v118 = vpop.f32.mrf.mxu0
  %v119 = vadd.f32 %v50, %v118
  %v120 = vpop.f32.mrf.mxu0
  %v121 = vpop.f32.mrf.mxu0
  %v122 = vadd.f32 %v55, %v121
  %v123 = vpop.f32.mrf.mxu0
  %124 = vmatprep.mubr.bf16.mxu0 0
  %125 = vmatmul.mubr.bf16.gmra.mxu0 %v82
  %v126 = vpop.f32.mrf.mxu0
  %v127 = vadd.f32 %v60, %v126
  %v128 = vpop.f32.mrf.mxu0
  %v129 = vpop.f32.mrf.mxu0
  %v130 = vadd.f32 %v65, %v129
  %v131 = vpop.f32.mrf.mxu0
  %132 = vdwg.mxu0
  %v133 = vadd.f32 %v33, %v119
  %v134 = vadd.f32 %v34, %v122
  %v135 = vadd.f32 %v35, %v127
  %v136 = vadd.f32 %v36, %v130
  %v137 = vld [vmem:[%s1] sm:$0xff]
  %v138 = vld [vmem:[%s1 + $0x8] sm:$0xff]
  %v139 = vld [vmem:[%s1 + $0x10] sm:$0xff]
  %v140 = vld [vmem:[%s1 + $0x18] sm:$0xff]
  %v141 = vld [vmem:[%s1 + $0x20] sm:$0xff]
  %v142 = vld [vmem:[%s1 + $0x28] sm:$0xff]
  %v143 = vld [vmem:[%s1 + $0x30] sm:$0xff]
  %v144 = vld [vmem:[%s1 + $0x38] sm:$0xff]
  %v145 = vld [vmem:[%s1 + $0x40] sm:$0xff]
  %v146 = vld [vmem:[%s1 + $0x48] sm:$0xff]
  %v147 = vld [vmem:[%s1 + $0x50] sm:$0xff]
  %v148 = vld [vmem:[%s1 + $0x58] sm:$0xff]
  %v149 = vld [vmem:[%s1 + $0x60] sm:$0xff]
  %v150 = vld [vmem:[%s1 + $0x68] sm:$0xff]
  %v151 = vld [vmem:[%s1 + $0x70] sm:$0xff]
  %v152 = vld [vmem:[%s1 + $0x78] sm:$0xff]
  %v153 = vld [vmem:[%s4] sm:$0xf]
  %v154 = vld [vmem:[%s4 + $0x4] sm:$0xf]
  %v155 = vld [vmem:[%s4 + $0x8] sm:$0xf]
  %v156 = vld [vmem:[%s4 + $0xc] sm:$0xf]
  %v157 = vld [vmem:[%s4 + $0x10] sm:$0xf]
  %v158 = vld [vmem:[%s4 + $0x14] sm:$0xf]
  %v159 = vld [vmem:[%s4 + $0x18] sm:$0xf]
  %v160 = vld [vmem:[%s4 + $0x1c] sm:$0xf]
  %v161 = vld [vmem:[%s4 + $0x20] sm:$0xf]
  %v162 = vld [vmem:[%s4 + $0x24] sm:$0xf]
  %v163 = vld [vmem:[%s4 + $0x28] sm:$0xf]
  %v164 = vld [vmem:[%s4 + $0x2c] sm:$0xf]
  %v165 = vpack.c.bf16 %v134, %v133
  %v166 = vpack.c.bf16 %v136, %v135
  %v167 = vld [vmem:[%s5] sm:$0xff]
  %v168 = vld [vmem:[%s5 + $0x8] sm:$0xff]
  %v169 = vld [vmem:[%s5 + $0x10] sm:$0xff]
  %v170 = vld [vmem:[%s5 + $0x18] sm:$0xff]
  %v171 = vld [vmem:[%s5 + $0x20] sm:$0xff]
  %v172 = vld [vmem:[%s5 + $0x28] sm:$0xff]
  %v173 = vld [vmem:[%s5 + $0x30] sm:$0xff]
  %v174 = vld [vmem:[%s5 + $0x38] sm:$0xff]
  %v175 = vld [vmem:[%s5 + $0x40] sm:$0xff]
  %v176 = vld [vmem:[%s5 + $0x48] sm:$0xff]
  %v177 = vld [vmem:[%s5 + $0x50] sm:$0xff]
  %v178 = vld [vmem:[%s5 + $0x58] sm:$0xff]
  %180 = vset.pattern.permute.xlu0 0
  %181 = vperm.xlu0 %180, %v167
  %v182 = vpop.permute.xlu0 %181
  %185 = vset.pattern.permute.xlu0 0
  %186 = vperm.xlu0 %185, %v168
  %v187 = vpop.permute.xlu0 %186
  %190 = vset.pattern.permute.xlu0 0
  %191 = vperm.xlu0 %190, %v169
  %v192 = vpop.permute.xlu0 %191
  %195 = vset.pattern.permute.xlu0 0
  %196 = vperm.xlu0 %195, %v170
  %v197 = vpop.permute.xlu0 %196
  %200 = vset.pattern.permute.xlu0 0
  %201 = vperm.xlu0 %200, %v171
  %v202 = vpop.permute.xlu0 %201
  %205 = vset.pattern.permute.xlu0 0
  %206 = vperm.xlu0 %205, %v172
  %v207 = vpop.permute.xlu0 %206
  %210 = vset.pattern.permute.xlu0 0
  %211 = vperm.xlu0 %210, %v173
  %v212 = vpop.permute.xlu0 %211
  %215 = vset.pattern.permute.xlu0 0
  %216 = vperm.xlu0 %215, %v174
  %v217 = vpop.permute.xlu0 %216
  %220 = vset.pattern.permute.xlu0 0
  %221 = vperm.xlu0 %220, %v175
  %v222 = vpop.permute.xlu0 %221
  %225 = vset.pattern.permute.xlu0 0
  %226 = vperm.xlu0 %225, %v176
  %v227 = vpop.permute.xlu0 %226
  %230 = vset.pattern.permute.xlu0 0
  %231 = vperm.xlu0 %230, %v177
  %v232 = vpop.permute.xlu0 %231
  %235 = vset.pattern.permute.xlu0 0
  %236 = vperm.xlu0 %235, %v178
  %v237 = vpop.permute.xlu0 %236
  %v251 = vunpack.c.l.b16 %v153
  %v252 = vunpack.c.l.b16 %v154
  %v253 = vunpack.c.l.b16 %v155
  %v254 = vunpack.c.l.b16 %v156
  %v255 = vunpack.c.l.b16 %v157
  %v256 = vunpack.c.l.b16 %v158
  %v257 = vunpack.c.l.b16 %v159
  %v258 = vunpack.c.l.b16 %v160
  %v259 = vunpack.c.l.b16 %v161
  %v260 = vunpack.c.l.b16 %v162
  %v261 = vunpack.c.l.b16 %v163
  %v262 = vunpack.c.l.b16 %v164
  %v263 = vpack.c.b16 %v252, %v251
  %v264 = vpack.c.b16 %v254, %v253
  %v265 = vpack.c.b16 %v256, %v255
  %v266 = vpack.c.b16 %v258, %v257
  %v267 = vpack.c.b16 %v260, %v259
  %v268 = vpack.c.b16 %v262, %v261
  %v270 = vsel %vm77, %v263, 0
  %v273 = vsel %vm77, %v264, 0
  %v276 = vsel %vm77, %v265, 0
  %v279 = vsel %vm77, %v266, 0
  %v282 = vsel %vm77, %v267, 0
  %v285 = vsel %vm77, %v268, 0
  %287 = vmatprep.subr.bf16.mxu0 0
  %288 = vmatpush1.bf16.msra.mxu0 0
  %289 = vmatprep.subr.bf16.mxu0 0
  %290 = vmatpush1.bf16.msra.mxu0 0
  %291 = vmatprep.subr.bf16.mxu0 0
  %292 = vmatpush1.bf16.msra.mxu0 0
  %293 = vmatprep.subr.bf16.mxu0 0
  %294 = vmatpush1.bf16.msra.mxu0 0
  %295 = vmatprep.subr.bf16.mxu0 0
  %296 = vmatpush1.bf16.msra.mxu0 0
  %297 = vmatprep.subr.bf16.mxu0 0
  %298 = vmatpush1.bf16.msra.mxu0 0
  %299 = vmatprep.subr.bf16.mxu0 0
  %300 = vmatpush1.bf16.msra.mxu0 %v166
  %301 = vmatprep.subr.bf16.mxu0 0
  %302 = vmatpush1.bf16.msra.mxu0 %v165
  %303 = vmatprep.subr.bf16.mxu0 0
  %304 = vmatpush2.bf16.msra.mxu0 0
  %305 = vmatprep.subr.bf16.mxu0 0
  %306 = vmatpush2.bf16.msra.mxu0 0
  %307 = vmatprep.subr.bf16.mxu0 0
  %308 = vmatpush2.bf16.msra.mxu0 0
  %309 = vmatprep.subr.bf16.mxu0 0
  %310 = vmatpush2.bf16.msra.mxu0 0
  %311 = vmatprep.subr.bf16.mxu0 0
  %312 = vmatpush2.bf16.msra.mxu0 0
  %313 = vmatprep.subr.bf16.mxu0 0
  %314 = vmatpush2.bf16.msra.mxu0 0
  %315 = vmatprep.subr.bf16.mxu0 0
  %316 = vmatpush2.bf16.msra.mxu0 0
  %317 = vmatprep.subr.bf16.mxu0 0
  %318 = vmatpush2.bf16.msra.mxu0 0
  %319 = vmatprep.mubr.bf16.mxu0 0
  %320 = vmatmul.mubr.bf16.gmra.mxu0 %v270
  %v321 = vpop.f32.mrf.mxu0
  %v322 = vadd.f32 %v182, %v321
  %v323 = vpop.f32.mrf.mxu0
  %v324 = vpop.f32.mrf.mxu0
  %v325 = vadd.f32 %v187, %v324
  %v326 = vpop.f32.mrf.mxu0
  %327 = vmatprep.mubr.bf16.mxu0 0
  %328 = vmatmul.mubr.bf16.gmra.mxu0 %v273
  %v329 = vpop.f32.mrf.mxu0
  %v330 = vadd.f32 %v192, %v329
  %v331 = vpop.f32.mrf.mxu0
  %v332 = vpop.f32.mrf.mxu0
  %v333 = vadd.f32 %v197, %v332
  %v334 = vpop.f32.mrf.mxu0
  %335 = vmatprep.mubr.bf16.mxu0 0
  %336 = vmatmul.mubr.bf16.gmra.mxu0 %v276
  %v337 = vpop.f32.mrf.mxu0
  %v338 = vadd.f32 %v202, %v337
  %v339 = vpop.f32.mrf.mxu0
  %v340 = vpop.f32.mrf.mxu0
  %v341 = vadd.f32 %v207, %v340
  %v342 = vpop.f32.mrf.mxu0
  %343 = vmatprep.mubr.bf16.mxu0 0
  %344 = vmatmul.mubr.bf16.gmra.mxu0 %v279
  %v345 = vpop.f32.mrf.mxu0
  %v346 = vadd.f32 %v212, %v345
  %v347 = vpop.f32.mrf.mxu0
  %v348 = vpop.f32.mrf.mxu0
  %v349 = vadd.f32 %v217, %v348
  %v350 = vpop.f32.mrf.mxu0
  %351 = vmatprep.mubr.bf16.mxu0 0
  %352 = vmatmul.mubr.bf16.gmra.mxu0 %v282
  %v353 = vpop.f32.mrf.mxu0
  %v354 = vadd.f32 %v222, %v353
  %v355 = vpop.f32.mrf.mxu0
  %v356 = vpop.f32.mrf.mxu0
  %v357 = vadd.f32 %v227, %v356
  %v358 = vpop.f32.mrf.mxu0
  %359 = vmatprep.mubr.bf16.mxu0 0
  %360 = vmatmul.mubr.bf16.gmra.mxu0 %v285
  %v361 = vpop.f32.mrf.mxu0
  %v362 = vadd.f32 %v232, %v361
  %v363 = vpop.f32.mrf.mxu0
  %v364 = vpop.f32.mrf.mxu0
  %v365 = vadd.f32 %v237, %v364
  %v366 = vpop.f32.mrf.mxu0
  %367 = vdwg.mxu0
  %v368 = vpack.c.bf16 %v322, %v322
  %v369 = vpack.c.bf16 %v338, %v338
  %v370 = vpack.c.bf16 %v354, %v354
  %371 = vxpose.xlu0.c.b16.start [1/8] %v369, 128
  %372 = vxpose.xlu0.c.b16.cont [2/8] 0, 128
  %373 = vxpose.xlu0.c.b16.cont [3/8] 0, 128
  %374 = vxpose.xlu0.c.b16.cont [4/8] 0, 128
  %375 = vxpose.xlu0.c.b16.cont [5/8] 0, 128
  %376 = vxpose.xlu0.c.b16.cont [6/8] 0, 128
  %377 = vxpose.xlu0.c.b16.cont [7/8] 0, 128
  %378 = vxpose.xlu0.c.b16.end [8/8] 0, 128
  %v379 = vpop.trf.xlu0
  %v380 = vpop.trf.xlu0
  %v381 = vpop.trf.xlu0
  %v382 = vpop.trf.xlu0
  %v383 = vpop.trf.xlu0
  %v384 = vpop.trf.xlu0
  %v385 = vpop.trf.xlu0
  %v386 = vpop.trf.xlu0
  %vm387 = vcmask 64512
  %v389 = vsel %vm387, %v379, 0
  %v392 = vsel %vm387, %v380, 0
  %v395 = vsel %vm387, %v381, 0
  %v398 = vsel %vm387, %v382, 0
  %v401 = vsel %vm387, %v383, 0
  %v404 = vsel %vm387, %v384, 0
  %v407 = vsel %vm387, %v385, 0
  %v410 = vsel %vm387, %v386, 0
  %vm412 = vcmask 1043456
  %v414 = vsel %vm412, %v368, 0
  %416 = vmatprep.subr.bf16.mxu0 0
  %417 = vmatpush1.bf16.msra.mxu0 0
  %418 = vmatprep.subr.bf16.mxu0 0
  %419 = vmatpush1.bf16.msra.mxu0 0
  %420 = vmatprep.subr.bf16.mxu0 0
  %421 = vmatpush1.bf16.msra.mxu0 0
  %422 = vmatprep.subr.bf16.mxu0 0
  %423 = vmatpush1.bf16.msra.mxu0 0
  %424 = vmatprep.subr.bf16.mxu0 0
  %425 = vmatpush1.bf16.msra.mxu0 0
  %426 = vmatprep.subr.bf16.mxu0 0
  %427 = vmatpush1.bf16.msra.mxu0 0
  %428 = vmatprep.subr.bf16.mxu0 0
  %429 = vmatpush1.bf16.msra.mxu0 0
  %430 = vmatprep.subr.bf16.mxu0 0
  %431 = vmatpush1.bf16.msra.mxu0 %v414
  %432 = vmatprep.subr.bf16.mxu0 0
  %433 = vmatpush2.bf16.msra.mxu0 0
  %434 = vmatprep.subr.bf16.mxu0 0
  %435 = vmatpush2.bf16.msra.mxu0 0
  %436 = vmatprep.subr.bf16.mxu0 0
  %437 = vmatpush2.bf16.msra.mxu0 0
  %438 = vmatprep.subr.bf16.mxu0 0
  %439 = vmatpush2.bf16.msra.mxu0 0
  %440 = vmatprep.subr.bf16.mxu0 0
  %441 = vmatpush2.bf16.msra.mxu0 0
  %442 = vmatprep.subr.bf16.mxu0 0
  %443 = vmatpush2.bf16.msra.mxu0 0
  %444 = vmatprep.subr.bf16.mxu0 0
  %445 = vmatpush2.bf16.msra.mxu0 0
  %446 = vmatprep.subr.bf16.mxu0 0
  %447 = vmatpush2.bf16.msra.mxu0 0
  %448 = vmatprep.mubr.bf16.mxu0 0
  %449 = vmatmul.mubr.bf16.gmra.mxu0 %v389
  %v450 = vpop.f32.mrf.mxu0
  %v451 = vadd.f32 %v137, %v450
  %v452 = vpop.f32.mrf.mxu0
  %v453 = vpop.f32.mrf.mxu0
  %v454 = vadd.f32 %v138, %v453
  %v455 = vpop.f32.mrf.mxu0
  %456 = vmatprep.mubr.bf16.mxu0 0
  %457 = vmatmul.mubr.bf16.gmra.mxu0 %v392
  %v458 = vpop.f32.mrf.mxu0
  %v459 = vadd.f32 %v139, %v458
  %v460 = vpop.f32.mrf.mxu0
  %v461 = vpop.f32.mrf.mxu0
  %v462 = vadd.f32 %v140, %v461
  %v463 = vpop.f32.mrf.mxu0
  %464 = vmatprep.mubr.bf16.mxu0 0
  %465 = vmatmul.mubr.bf16.gmra.mxu0 %v395
  %v466 = vpop.f32.mrf.mxu0
  %v467 = vadd.f32 %v141, %v466
  %v468 = vpop.f32.mrf.mxu0
  %v469 = vpop.f32.mrf.mxu0
  %v470 = vadd.f32 %v142, %v469
  %v471 = vpop.f32.mrf.mxu0
  %472 = vmatprep.mubr.bf16.mxu0 0
  %473 = vmatmul.mubr.bf16.gmra.mxu0 %v398
  %v474 = vpop.f32.mrf.mxu0
  %v475 = vadd.f32 %v143, %v474
  %v476 = vpop.f32.mrf.mxu0
  %v477 = vpop.f32.mrf.mxu0
  %v478 = vadd.f32 %v144, %v477
  %v479 = vpop.f32.mrf.mxu0
  %480 = vmatprep.mubr.bf16.mxu0 0
  %481 = vmatmul.mubr.bf16.gmra.mxu0 %v401
  %v482 = vpop.f32.mrf.mxu0
  %v483 = vadd.f32 %v145, %v482
  %v484 = vpop.f32.mrf.mxu0
  %v485 = vpop.f32.mrf.mxu0
  %v486 = vadd.f32 %v146, %v485
  %v487 = vpop.f32.mrf.mxu0
  %488 = vmatprep.mubr.bf16.mxu0 0
  %489 = vmatmul.mubr.bf16.gmra.mxu0 %v404
  %v490 = vpop.f32.mrf.mxu0
  %v491 = vadd.f32 %v147, %v490
  %v492 = vpop.f32.mrf.mxu0
  %v493 = vpop.f32.mrf.mxu0
  %v494 = vadd.f32 %v148, %v493
  %v495 = vpop.f32.mrf.mxu0
  %496 = vmatprep.mubr.bf16.mxu0 0
  %497 = vmatmul.mubr.bf16.gmra.mxu0 %v407
  %v498 = vpop.f32.mrf.mxu0
  %v499 = vadd.f32 %v149, %v498
  %v500 = vpop.f32.mrf.mxu0
  %v501 = vpop.f32.mrf.mxu0
  %v502 = vadd.f32 %v150, %v501
  %v503 = vpop.f32.mrf.mxu0
  %504 = vmatprep.mubr.bf16.mxu0 0
  %505 = vmatmul.mubr.bf16.gmra.mxu0 %v410
  %v506 = vpop.f32.mrf.mxu0
  %v507 = vadd.f32 %v151, %v506
  %v508 = vpop.f32.mrf.mxu0
  %v509 = vpop.f32.mrf.mxu0
  %v510 = vadd.f32 %v152, %v509
  %v511 = vpop.f32.mrf.mxu0
  %512 = vdwg.mxu0
  %v513 = vmax.f32 %v451, %v467
  %v514 = vmax.f32 %v454, %v470
  %v515 = vmax.f32 %v459, %v475
  %v516 = vmax.f32 %v462, %v478
  %v517 = vmax.f32 %v513, %v483
  %v518 = vmax.f32 %v514, %v486
  %v519 = vmax.f32 %v515, %v491
  %v520 = vmax.f32 %v516, %v494
  %v521 = vmax.f32 %v517, %v499
  %v522 = vmax.f32 %v518, %v502
  %v523 = vmax.f32 %v519, %v507
  %v524 = vmax.f32 %v520, %v510
  %v525 = vmax.f32 %v521, %v522
  %v526 = vmax.f32 %v523, %v524
  %v527 = vmax.f32 %v525, %v526
  %v528 = vrot.slane %v527, 4
  %v529 = vmax.f32 %v527, %v528
  %v530 = vrot.slane %v529, 2
  %v531 = vmax.f32 %v529, %v530
  %v532 = vrot.slane %v531, 1
  %v533 = vmax.f32 %v531, %v532
  %v534 = vsub.f32 %v451, %v533
  %v535 = vsub.f32 %v454, %v533
  %v536 = vsub.f32 %v459, %v533
  %v537 = vsub.f32 %v462, %v533
  %v538 = vsub.f32 %v467, %v533
  %v539 = vsub.f32 %v470, %v533
  %v540 = vsub.f32 %v475, %v533
  %v541 = vsub.f32 %v478, %v533
  %v542 = vsub.f32 %v483, %v533
  %v543 = vsub.f32 %v486, %v533
  %v544 = vsub.f32 %v491, %v533
  %v545 = vsub.f32 %v494, %v533
  %v546 = vsub.f32 %v499, %v533
  %v547 = vsub.f32 %v502, %v533
  %v548 = vsub.f32 %v507, %v533
  %v549 = vsub.f32 %v510, %v533
  %v550 = vmul.f32 %v534, 1.442695
  %v551 = vpow.pop %v550
  %v552 = vmul.f32 %v535, 1.442695
  %v553 = vpow.pop %v552
  %v554 = vmul.f32 %v536, 1.442695
  %v555 = vpow.pop %v554
  %v556 = vmul.f32 %v537, 1.442695
  %v557 = vpow.pop %v556
  %v558 = vmul.f32 %v538, 1.442695
  %v559 = vpow.pop %v558
  %v560 = vmul.f32 %v539, 1.442695
  %v561 = vpow.pop %v560
  %v562 = vmul.f32 %v540, 1.442695
  %v563 = vpow.pop %v562
  %v564 = vmul.f32 %v541, 1.442695
  %v565 = vpow.pop %v564
  %v566 = vmul.f32 %v542, 1.442695
  %v567 = vpow.pop %v566
  %v568 = vmul.f32 %v543, 1.442695
  %v569 = vpow.pop %v568
  %v570 = vmul.f32 %v544, 1.442695
  %v571 = vpow.pop %v570
  %v572 = vmul.f32 %v545, 1.442695
  %v573 = vpow.pop %v572
  %v574 = vmul.f32 %v546, 1.442695
  %v575 = vpow.pop %v574
  %v576 = vmul.f32 %v547, 1.442695
  %v577 = vpow.pop %v576
  %v578 = vmul.f32 %v548, 1.442695
  %v579 = vpow.pop %v578
  %v580 = vmul.f32 %v549, 1.442695
  %v581 = vpow.pop %v580
  %v582 = vadd.f32 %v551, %v553
  %v583 = vadd.f32 %v582, %v555
  %v584 = vadd.f32 %v583, %v557
  %v585 = vadd.f32 %v584, %v559
  %v586 = vadd.f32 %v585, %v561
  %v587 = vadd.f32 %v586, %v563
  %v588 = vadd.f32 %v587, %v565
  %v589 = vadd.f32 %v588, %v567
  %v590 = vadd.f32 %v589, %v569
  %v591 = vadd.f32 %v590, %v571
  %v592 = vadd.f32 %v591, %v573
  %v593 = vadd.f32 %v592, %v575
  %v594 = vadd.f32 %v593, %v577
  %v595 = vadd.f32 %v594, %v579
  %v596 = vadd.f32 %v595, %v581
  %v597 = vrot.slane %v596, 4
  %v598 = vadd.f32 %v596, %v597
  %v599 = vrot.slane %v598, 2
  %v600 = vadd.f32 %v598, %v599
  %v601 = vrot.slane %v600, 1
  %v602 = vadd.f32 %v600, %v601
  %v603 = vpack.c.bf16 %v553, %v551
  %v604 = vpack.c.bf16 %v557, %v555
  %v605 = vpack.c.bf16 %v561, %v559
  %v606 = vpack.c.bf16 %v565, %v563
  %v607 = vpack.c.bf16 %v569, %v567
  %v608 = vpack.c.bf16 %v573, %v571
  %v609 = vpack.c.bf16 %v577, %v575
  %v610 = vpack.c.bf16 %v581, %v579
  %611 = vmatprep.subr.bf16.mxu0 0
  %612 = vmatpush1.bf16.msra.mxu0 %v610
  %613 = vmatprep.subr.bf16.mxu0 0
  %614 = vmatpush1.bf16.msra.mxu0 %v609
  %615 = vmatprep.subr.bf16.mxu0 0
  %616 = vmatpush1.bf16.msra.mxu0 %v608
  %617 = vmatprep.subr.bf16.mxu0 0
  %618 = vmatpush1.bf16.msra.mxu0 %v607
  %619 = vmatprep.subr.bf16.mxu0 0
  %620 = vmatpush1.bf16.msra.mxu0 %v606
  %621 = vmatprep.subr.bf16.mxu0 0
  %622 = vmatpush1.bf16.msra.mxu0 %v605
  %623 = vmatprep.subr.bf16.mxu0 0
  %624 = vmatpush1.bf16.msra.mxu0 %v604
  %625 = vmatprep.subr.bf16.mxu0 0
  %626 = vmatpush1.bf16.msra.mxu0 %v603
  %627 = vmatprep.subr.bf16.mxu0 0
  %628 = vmatpush2.bf16.msra.mxu0 0
  %629 = vmatprep.subr.bf16.mxu0 0
  %630 = vmatpush2.bf16.msra.mxu0 0
  %631 = vmatprep.subr.bf16.mxu0 0
  %632 = vmatpush2.bf16.msra.mxu0 0
  %633 = vmatprep.subr.bf16.mxu0 0
  %634 = vmatpush2.bf16.msra.mxu0 0
  %635 = vmatprep.subr.bf16.mxu0 0
  %636 = vmatpush2.bf16.msra.mxu0 0
  %637 = vmatprep.subr.bf16.mxu0 0
  %638 = vmatpush2.bf16.msra.mxu0 0
  %639 = vmatprep.subr.bf16.mxu0 0
  %640 = vmatpush2.bf16.msra.mxu0 0
  %641 = vmatprep.subr.bf16.mxu0 0
  %642 = vmatpush2.bf16.msra.mxu0 0
  %643 = vmatprep.mubr.bf16.mxu0 0
  %644 = vmatmul.mubr.bf16.gmra.mxu0 %v370
  %v645 = vpop.f32.mrf.mxu0
  %v646 = vadd.f32 0.0, %v645
  %v647 = vpop.f32.mrf.mxu0
  %v648 = vpop.f32.mrf.mxu0
  %v649 = vpop.f32.mrf.mxu0
  %650 = vdwg.mxu0
  %v651 = vrcp.pop %v602
  %v652 = vmul.f32 %v646, %v651
  %v653 = vld [vmem:[%s6] sm:$0xf]
  %v654 = vpack.c.bf16 %v652, %v652
  %v655 = vpack.c.bf16 %v325, %v325
  %v656 = vpack.c.bf16 %v341, %v341
  %v657 = vpack.c.bf16 %v357, %v357
  %658 = vxpose.xlu0.c.b16.start [1/8] %v656, 128
  %659 = vxpose.xlu0.c.b16.cont [2/8] 0, 128
  %660 = vxpose.xlu0.c.b16.cont [3/8] 0, 128
  %661 = vxpose.xlu0.c.b16.cont [4/8] 0, 128
  %662 = vxpose.xlu0.c.b16.cont [5/8] 0, 128
  %663 = vxpose.xlu0.c.b16.cont [6/8] 0, 128
  %664 = vxpose.xlu0.c.b16.cont [7/8] 0, 128
  %665 = vxpose.xlu0.c.b16.end [8/8] 0, 128
  %v666 = vpop.trf.xlu0
  %v667 = vpop.trf.xlu0
  %v668 = vpop.trf.xlu0
  %v669 = vpop.trf.xlu0
  %v670 = vpop.trf.xlu0
  %v671 = vpop.trf.xlu0
  %v672 = vpop.trf.xlu0
  %v673 = vpop.trf.xlu0
  %v675 = vsel %vm387, %v666, 0
  %v678 = vsel %vm387, %v667, 0
  %v681 = vsel %vm387, %v668, 0
  %v684 = vsel %vm387, %v669, 0
  %v687 = vsel %vm387, %v670, 0
  %v690 = vsel %vm387, %v671, 0
  %v693 = vsel %vm387, %v672, 0
  %v696 = vsel %vm387, %v673, 0
  %v699 = vsel %vm412, %v655, 0
  %701 = vmatprep.subr.bf16.mxu0 0
  %702 = vmatpush1.bf16.msra.mxu0 0
  %703 = vmatprep.subr.bf16.mxu0 0
  %704 = vmatpush1.bf16.msra.mxu0 0
  %705 = vmatprep.subr.bf16.mxu0 0
  %706 = vmatpush1.bf16.msra.mxu0 0
  %707 = vmatprep.subr.bf16.mxu0 0
  %708 = vmatpush1.bf16.msra.mxu0 0
  %709 = vmatprep.subr.bf16.mxu0 0
  %710 = vmatpush1.bf16.msra.mxu0 0
  %711 = vmatprep.subr.bf16.mxu0 0
  %712 = vmatpush1.bf16.msra.mxu0 0
  %713 = vmatprep.subr.bf16.mxu0 0
  %714 = vmatpush1.bf16.msra.mxu0 0
  %715 = vmatprep.subr.bf16.mxu0 0
  %716 = vmatpush1.bf16.msra.mxu0 %v699
  %717 = vmatprep.subr.bf16.mxu0 0
  %718 = vmatpush2.bf16.msra.mxu0 0
  %719 = vmatprep.subr.bf16.mxu0 0
  %720 = vmatpush2.bf16.msra.mxu0 0
  %721 = vmatprep.subr.bf16.mxu0 0
  %722 = vmatpush2.bf16.msra.mxu0 0
  %723 = vmatprep.subr.bf16.mxu0 0
  %724 = vmatpush2.bf16.msra.mxu0 0
  %725 = vmatprep.subr.bf16.mxu0 0
  %726 = vmatpush2.bf16.msra.mxu0 0
  %727 = vmatprep.subr.bf16.mxu0 0
  %728 = vmatpush2.bf16.msra.mxu0 0
  %729 = vmatprep.subr.bf16.mxu0 0
  %730 = vmatpush2.bf16.msra.mxu0 0
  %731 = vmatprep.subr.bf16.mxu0 0
  %732 = vmatpush2.bf16.msra.mxu0 0
  %733 = vmatprep.mubr.bf16.mxu0 0
  %734 = vmatmul.mubr.bf16.gmra.mxu0 %v675
  %v735 = vpop.f32.mrf.mxu0
  %v736 = vadd.f32 %v137, %v735
  %v737 = vpop.f32.mrf.mxu0
  %v738 = vpop.f32.mrf.mxu0
  %v739 = vadd.f32 %v138, %v738
  %v740 = vpop.f32.mrf.mxu0
  %741 = vmatprep.mubr.bf16.mxu0 0
  %742 = vmatmul.mubr.bf16.gmra.mxu0 %v678
  %v743 = vpop.f32.mrf.mxu0
  %v744 = vadd.f32 %v139, %v743
  %v745 = vpop.f32.mrf.mxu0
  %v746 = vpop.f32.mrf.mxu0
  %v747 = vadd.f32 %v140, %v746
  %v748 = vpop.f32.mrf.mxu0
  %749 = vmatprep.mubr.bf16.mxu0 0
  %750 = vmatmul.mubr.bf16.gmra.mxu0 %v681
  %v751 = vpop.f32.mrf.mxu0
  %v752 = vadd.f32 %v141, %v751
  %v753 = vpop.f32.mrf.mxu0
  %v754 = vpop.f32.mrf.mxu0
  %v755 = vadd.f32 %v142, %v754
  %v756 = vpop.f32.mrf.mxu0
  %757 = vmatprep.mubr.bf16.mxu0 0
  %758 = vmatmul.mubr.bf16.gmra.mxu0 %v684
  %v759 = vpop.f32.mrf.mxu0
  %v760 = vadd.f32 %v143, %v759
  %v761 = vpop.f32.mrf.mxu0
  %v762 = vpop.f32.mrf.mxu0
  %v763 = vadd.f32 %v144, %v762
  %v764 = vpop.f32.mrf.mxu0
  %765 = vmatprep.mubr.bf16.mxu0 0
  %766 = vmatmul.mubr.bf16.gmra.mxu0 %v687
  %v767 = vpop.f32.mrf.mxu0
  %v768 = vadd.f32 %v145, %v767
  %v769 = vpop.f32.mrf.mxu0
  %v770 = vpop.f32.mrf.mxu0
  %v771 = vadd.f32 %v146, %v770
  %v772 = vpop.f32.mrf.mxu0
  %773 = vmatprep.mubr.bf16.mxu0 0
  %774 = vmatmul.mubr.bf16.gmra.mxu0 %v690
  %v775 = vpop.f32.mrf.mxu0
  %v776 = vadd.f32 %v147, %v775
  %v777 = vpop.f32.mrf.mxu0
  %v778 = vpop.f32.mrf.mxu0
  %v779 = vadd.f32 %v148, %v778
  %v780 = vpop.f32.mrf.mxu0
  %781 = vmatprep.mubr.bf16.mxu0 0
  %782 = vmatmul.mubr.bf16.gmra.mxu0 %v693
  %v783 = vpop.f32.mrf.mxu0
  %v784 = vadd.f32 %v149, %v783
  %v785 = vpop.f32.mrf.mxu0
  %v786 = vpop.f32.mrf.mxu0
  %v787 = vadd.f32 %v150, %v786
  %v788 = vpop.f32.mrf.mxu0
  %789 = vmatprep.mubr.bf16.mxu0 0
  %790 = vmatmul.mubr.bf16.gmra.mxu0 %v696
  %v791 = vpop.f32.mrf.mxu0
  %v792 = vadd.f32 %v151, %v791
  %v793 = vpop.f32.mrf.mxu0
  %v794 = vpop.f32.mrf.mxu0
  %v795 = vadd.f32 %v152, %v794
  %v796 = vpop.f32.mrf.mxu0
  %797 = vdwg.mxu0
  %v798 = vmax.f32 %v736, %v752
  %v799 = vmax.f32 %v739, %v755
  %v800 = vmax.f32 %v744, %v760
  %v801 = vmax.f32 %v747, %v763
  %v802 = vmax.f32 %v798, %v768
  %v803 = vmax.f32 %v799, %v771
  %v804 = vmax.f32 %v800, %v776
  %v805 = vmax.f32 %v801, %v779
  %v806 = vmax.f32 %v802, %v784
  %v807 = vmax.f32 %v803, %v787
  %v808 = vmax.f32 %v804, %v792
  %v809 = vmax.f32 %v805, %v795
  %v810 = vmax.f32 %v806, %v807
  %v811 = vmax.f32 %v808, %v809
  %v812 = vmax.f32 %v810, %v811
  %v813 = vrot.slane %v812, 4
  %v814 = vmax.f32 %v812, %v813
  %v815 = vrot.slane %v814, 2
  %v816 = vmax.f32 %v814, %v815
  %v817 = vrot.slane %v816, 1
  %v818 = vmax.f32 %v816, %v817
  %v819 = vsub.f32 %v736, %v818
  %v820 = vsub.f32 %v739, %v818
  %v821 = vsub.f32 %v744, %v818
  %v822 = vsub.f32 %v747, %v818
  %v823 = vsub.f32 %v752, %v818
  %v824 = vsub.f32 %v755, %v818
  %v825 = vsub.f32 %v760, %v818
  %v826 = vsub.f32 %v763, %v818
  %v827 = vsub.f32 %v768, %v818
  %v828 = vsub.f32 %v771, %v818
  %v829 = vsub.f32 %v776, %v818
  %v830 = vsub.f32 %v779, %v818
  %v831 = vsub.f32 %v784, %v818
  %v832 = vsub.f32 %v787, %v818
  %v833 = vsub.f32 %v792, %v818
  %v834 = vsub.f32 %v795, %v818
  %v835 = vmul.f32 %v819, 1.442695
  %v836 = vpow.pop %v835
  %v837 = vmul.f32 %v820, 1.442695
  %v838 = vpow.pop %v837
  %v839 = vmul.f32 %v821, 1.442695
  %v840 = vpow.pop %v839
  %v841 = vmul.f32 %v822, 1.442695
  %v842 = vpow.pop %v841
  %v843 = vmul.f32 %v823, 1.442695
  %v844 = vpow.pop %v843
  %v845 = vmul.f32 %v824, 1.442695
  %v846 = vpow.pop %v845
  %v847 = vmul.f32 %v825, 1.442695
  %v848 = vpow.pop %v847
  %v849 = vmul.f32 %v826, 1.442695
  %v850 = vpow.pop %v849
  %v851 = vmul.f32 %v827, 1.442695
  %v852 = vpow.pop %v851
  %v853 = vmul.f32 %v828, 1.442695
  %v854 = vpow.pop %v853
  %v855 = vmul.f32 %v829, 1.442695
  %v856 = vpow.pop %v855
  %v857 = vmul.f32 %v830, 1.442695
  %v858 = vpow.pop %v857
  %v859 = vmul.f32 %v831, 1.442695
  %v860 = vpow.pop %v859
  %v861 = vmul.f32 %v832, 1.442695
  %v862 = vpow.pop %v861
  %v863 = vmul.f32 %v833, 1.442695
  %v864 = vpow.pop %v863
  %v865 = vmul.f32 %v834, 1.442695
  %v866 = vpow.pop %v865
  %v867 = vadd.f32 %v836, %v838
  %v868 = vadd.f32 %v867, %v840
  %v869 = vadd.f32 %v868, %v842
  %v870 = vadd.f32 %v869, %v844
  %v871 = vadd.f32 %v870, %v846
  %v872 = vadd.f32 %v871, %v848
  %v873 = vadd.f32 %v872, %v850
  %v874 = vadd.f32 %v873, %v852
  %v875 = vadd.f32 %v874, %v854
  %v876 = vadd.f32 %v875, %v856
  %v877 = vadd.f32 %v876, %v858
  %v878 = vadd.f32 %v877, %v860
  %v879 = vadd.f32 %v878, %v862
  %v880 = vadd.f32 %v879, %v864
  %v881 = vadd.f32 %v880, %v866
  %v882 = vrot.slane %v881, 4
  %v883 = vadd.f32 %v881, %v882
  %v884 = vrot.slane %v883, 2
  %v885 = vadd.f32 %v883, %v884
  %v886 = vrot.slane %v885, 1
  %v887 = vadd.f32 %v885, %v886
  %v888 = vpack.c.bf16 %v838, %v836
  %v889 = vpack.c.bf16 %v842, %v840
  %v890 = vpack.c.bf16 %v846, %v844
  %v891 = vpack.c.bf16 %v850, %v848
  %v892 = vpack.c.bf16 %v854, %v852
  %v893 = vpack.c.bf16 %v858, %v856
  %v894 = vpack.c.bf16 %v862, %v860
  %v895 = vpack.c.bf16 %v866, %v864
  %896 = vmatprep.subr.bf16.mxu0 0
  %897 = vmatpush1.bf16.msra.mxu0 %v895
  %898 = vmatprep.subr.bf16.mxu0 0
  %899 = vmatpush1.bf16.msra.mxu0 %v894
  %900 = vmatprep.subr.bf16.mxu0 0
  %901 = vmatpush1.bf16.msra.mxu0 %v893
  %902 = vmatprep.subr.bf16.mxu0 0
  %903 = vmatpush1.bf16.msra.mxu0 %v892
  %904 = vmatprep.subr.bf16.mxu0 0
  %905 = vmatpush1.bf16.msra.mxu0 %v891
  %906 = vmatprep.subr.bf16.mxu0 0
  %907 = vmatpush1.bf16.msra.mxu0 %v890
  %908 = vmatprep.subr.bf16.mxu0 0
  %909 = vmatpush1.bf16.msra.mxu0 %v889
  %910 = vmatprep.subr.bf16.mxu0 0
  %911 = vmatpush1.bf16.msra.mxu0 %v888
  %912 = vmatprep.subr.bf16.mxu0 0
  %913 = vmatpush2.bf16.msra.mxu0 0
  %914 = vmatprep.subr.bf16.mxu0 0
  %915 = vmatpush2.bf16.msra.mxu0 0
  %916 = vmatprep.subr.bf16.mxu0 0
  %917 = vmatpush2.bf16.msra.mxu0 0
  %918 = vmatprep.subr.bf16.mxu0 0
  %919 = vmatpush2.bf16.msra.mxu0 0
  %920 = vmatprep.subr.bf16.mxu0 0
  %921 = vmatpush2.bf16.msra.mxu0 0
  %922 = vmatprep.subr.bf16.mxu0 0
  %923 = vmatpush2.bf16.msra.mxu0 0
  %924 = vmatprep.subr.bf16.mxu0 0
  %925 = vmatpush2.bf16.msra.mxu0 0
  %926 = vmatprep.subr.bf16.mxu0 0
  %927 = vmatpush2.bf16.msra.mxu0 0
  %928 = vmatprep.mubr.bf16.mxu0 0
  %929 = vmatmul.mubr.bf16.gmra.mxu0 %v657
  %v930 = vpop.f32.mrf.mxu0
  %v931 = vadd.f32 0.0, %v930
  %v932 = vpop.f32.mrf.mxu0
  %v933 = vpop.f32.mrf.mxu0
  %v934 = vpop.f32.mrf.mxu0
  %935 = vdwg.mxu0
  %v936 = vrcp.pop %v887
  %v937 = vmul.f32 %v931, %v936
  %s938 = scalar_lea.vmem %s6, 4
  %v939 = vld [vmem:[%s938] sm:$0xf]
  %v940 = vpack.c.bf16 %v937, %v937
  %941 = vxpose.xlu0.c.b16.start [1/8] %v939, 128
  %942 = vxpose.xlu0.c.b16.cont [2/8] 0, 128
  %943 = vxpose.xlu0.c.b16.cont [3/8] 0, 128
  %944 = vxpose.xlu0.c.b16.cont [4/8] 0, 128
  %945 = vxpose.xlu0.c.b16.cont [5/8] 0, 128
  %946 = vxpose.xlu0.c.b16.cont [6/8] 0, 128
  %947 = vxpose.xlu0.c.b16.cont [7/8] 0, 128
  %948 = vxpose.xlu0.c.b16.end [8/8] 0, 128
  %v949 = vpop.trf.xlu0
  %v950 = vpop.trf.xlu0
  %v951 = vpop.trf.xlu0
  %v952 = vpop.trf.xlu0
  %v953 = vpop.trf.xlu0
  %v954 = vpop.trf.xlu0
  %v955 = vpop.trf.xlu0
  %v956 = vpop.trf.xlu0
  %v958 = vsel %vm387, %v949, 0
  %v961 = vsel %vm387, %v950, 0
  %v964 = vsel %vm412, %v940, 0
  %966 = vmatprep.subr.bf16.mxu0 0
  %967 = vmatpush1.bf16.msra.mxu0 0
  %968 = vmatprep.subr.bf16.mxu0 0
  %969 = vmatpush1.bf16.msra.mxu0 0
  %970 = vmatprep.subr.bf16.mxu0 0
  %971 = vmatpush1.bf16.msra.mxu0 0
  %972 = vmatprep.subr.bf16.mxu0 0
  %973 = vmatpush1.bf16.msra.mxu0 0
  %974 = vmatprep.subr.bf16.mxu0 0
  %975 = vmatpush1.bf16.msra.mxu0 0
  %976 = vmatprep.subr.bf16.mxu0 0
  %977 = vmatpush1.bf16.msra.mxu0 0
  %978 = vmatprep.subr.bf16.mxu0 0
  %979 = vmatpush1.bf16.msra.mxu0 0
  %980 = vmatprep.subr.bf16.mxu0 0
  %981 = vmatpush1.bf16.msra.mxu0 %v964
  %982 = vmatprep.subr.bf16.mxu0 0
  %983 = vmatpush2.bf16.msra.mxu0 0
  %984 = vmatprep.subr.bf16.mxu0 0
  %985 = vmatpush2.bf16.msra.mxu0 0
  %986 = vmatprep.subr.bf16.mxu0 0
  %987 = vmatpush2.bf16.msra.mxu0 0
  %988 = vmatprep.subr.bf16.mxu0 0
  %989 = vmatpush2.bf16.msra.mxu0 0
  %990 = vmatprep.subr.bf16.mxu0 0
  %991 = vmatpush2.bf16.msra.mxu0 0
  %992 = vmatprep.subr.bf16.mxu0 0
  %993 = vmatpush2.bf16.msra.mxu0 0
  %994 = vmatprep.subr.bf16.mxu0 0
  %995 = vmatpush2.bf16.msra.mxu0 0
  %996 = vmatprep.subr.bf16.mxu0 0
  %997 = vmatpush2.bf16.msra.mxu0 0
  %998 = vmatprep.mubr.bf16.mxu0 0
  %999 = vmatmul.mubr.bf16.gmra.mxu0 %v958
  %v1000 = vpop.f32.mrf.mxu0
  %v1001 = vadd.f32 0.0, %v1000
  %v1002 = vpop.f32.mrf.mxu0
  %v1003 = vpop.f32.mrf.mxu0
  %v1004 = vadd.f32 0.0, %v1003
  %v1005 = vpop.f32.mrf.mxu0
  %1006 = vmatprep.mubr.bf16.mxu0 0
  %1007 = vmatmul.mubr.bf16.gmra.mxu0 %v961
  %v1008 = vpop.f32.mrf.mxu0
  %v1009 = vadd.f32 0.0, %v1008
  %v1010 = vpop.f32.mrf.mxu0
  %v1011 = vpop.f32.mrf.mxu0
  %v1012 = vadd.f32 0.0, %v1011
  %v1013 = vpop.f32.mrf.mxu0
  %1014 = vdwg.mxu0
  %1015 = vxpose.xlu0.c.b16.start [1/8] %v653, 128
  %1016 = vxpose.xlu0.c.b16.cont [2/8] 0, 128
  %1017 = vxpose.xlu0.c.b16.cont [3/8] 0, 128
  %1018 = vxpose.xlu0.c.b16.cont [4/8] 0, 128
  %1019 = vxpose.xlu0.c.b16.cont [5/8] 0, 128
  %1020 = vxpose.xlu0.c.b16.cont [6/8] 0, 128
  %1021 = vxpose.xlu0.c.b16.cont [7/8] 0, 128
  %1022 = vxpose.xlu0.c.b16.end [8/8] 0, 128
  %v1023 = vpop.trf.xlu0
  %v1024 = vpop.trf.xlu0
  %v1025 = vpop.trf.xlu0
  %v1026 = vpop.trf.xlu0
  %v1027 = vpop.trf.xlu0
  %v1028 = vpop.trf.xlu0
  %v1029 = vpop.trf.xlu0
  %v1030 = vpop.trf.xlu0
  %v1032 = vsel %vm387, %v1023, 0
  %v1035 = vsel %vm387, %v1024, 0
  %v1038 = vsel %vm412, %v654, 0
  %1040 = vmatprep.subr.bf16.mxu0 0
  %1041 = vmatpush1.bf16.msra.mxu0 0
  %1042 = vmatprep.subr.bf16.mxu0 0
  %1043 = vmatpush1.bf16.msra.mxu0 0
  %1044 = vmatprep.subr.bf16.mxu0 0
  %1045 = vmatpush1.bf16.msra.mxu0 0
  %1046 = vmatprep.subr.bf16.mxu0 0
  %1047 = vmatpush1.bf16.msra.mxu0 0
  %1048 = vmatprep.subr.bf16.mxu0 0
  %1049 = vmatpush1.bf16.msra.mxu0 0
  %1050 = vmatprep.subr.bf16.mxu0 0
  %1051 = vmatpush1.bf16.msra.mxu0 0
  %1052 = vmatprep.subr.bf16.mxu0 0
  %1053 = vmatpush1.bf16.msra.mxu0 0
  %1054 = vmatprep.subr.bf16.mxu0 0
  %1055 = vmatpush1.bf16.msra.mxu0 %v1038
  %1056 = vmatprep.subr.bf16.mxu0 0
  %1057 = vmatpush2.bf16.msra.mxu0 0
  %1058 = vmatprep.subr.bf16.mxu0 0
  %1059 = vmatpush2.bf16.msra.mxu0 0
  %1060 = vmatprep.subr.bf16.mxu0 0
  %1061 = vmatpush2.bf16.msra.mxu0 0
  %1062 = vmatprep.subr.bf16.mxu0 0
  %1063 = vmatpush2.bf16.msra.mxu0 0
  %1064 = vmatprep.subr.bf16.mxu0 0
  %1065 = vmatpush2.bf16.msra.mxu0 0
  %1066 = vmatprep.subr.bf16.mxu0 0
  %1067 = vmatpush2.bf16.msra.mxu0 0
  %1068 = vmatprep.subr.bf16.mxu0 0
  %1069 = vmatpush2.bf16.msra.mxu0 0
  %1070 = vmatprep.subr.bf16.mxu0 0
  %1071 = vmatpush2.bf16.msra.mxu0 0
  %1072 = vmatprep.mubr.bf16.mxu0 0
  %1073 = vmatmul.mubr.bf16.gmra.mxu0 %v1032
  %v1074 = vpop.f32.mrf.mxu0
  %v1075 = vadd.f32 %v1001, %v1074
  %v1076 = vpop.f32.mrf.mxu0
  %v1077 = vpop.f32.mrf.mxu0
  %v1078 = vadd.f32 %v1004, %v1077
  %v1079 = vpop.f32.mrf.mxu0
  %1080 = vmatprep.mubr.bf16.mxu0 0
  %1081 = vmatmul.mubr.bf16.gmra.mxu0 %v1035
  %v1082 = vpop.f32.mrf.mxu0
  %v1083 = vadd.f32 %v1009, %v1082
  %v1084 = vpop.f32.mrf.mxu0
  %v1085 = vpop.f32.mrf.mxu0
  %v1086 = vadd.f32 %v1012, %v1085
  %v1087 = vpop.f32.mrf.mxu0
  %1088 = vdwg.mxu0
  %v1089 = vpack.c.bf16 %v330, %v330
  %v1090 = vpack.c.bf16 %v346, %v346
  %v1091 = vpack.c.bf16 %v362, %v362
  %1092 = vxpose.xlu0.c.b16.start [1/8] %v1090, 128
  %1093 = vxpose.xlu0.c.b16.cont [2/8] 0, 128
  %1094 = vxpose.xlu0.c.b16.cont [3/8] 0, 128
  %1095 = vxpose.xlu0.c.b16.cont [4/8] 0, 128
  %1096 = vxpose.xlu0.c.b16.cont [5/8] 0, 128
  %1097 = vxpose.xlu0.c.b16.cont [6/8] 0, 128
  %1098 = vxpose.xlu0.c.b16.cont [7/8] 0, 128
  %1099 = vxpose.xlu0.c.b16.end [8/8] 0, 128
  %v1100 = vpop.trf.xlu0
  %v1101 = vpop.trf.xlu0
  %v1102 = vpop.trf.xlu0
  %v1103 = vpop.trf.xlu0
  %v1104 = vpop.trf.xlu0
  %v1105 = vpop.trf.xlu0
  %v1106 = vpop.trf.xlu0
  %v1107 = vpop.trf.xlu0
  %v1109 = vsel %vm387, %v1100, 0
  %v1112 = vsel %vm387, %v1101, 0
  %v1115 = vsel %vm387, %v1102, 0
  %v1118 = vsel %vm387, %v1103, 0
  %v1121 = vsel %vm387, %v1104, 0
  %v1124 = vsel %vm387, %v1105, 0
  %v1127 = vsel %vm387, %v1106, 0
  %v1130 = vsel %vm387, %v1107, 0
  %v1133 = vsel %vm412, %v1089, 0
  %1135 = vmatprep.subr.bf16.mxu0 0
  %1136 = vmatpush1.bf16.msra.mxu0 0
  %1137 = vmatprep.subr.bf16.mxu0 0
  %1138 = vmatpush1.bf16.msra.mxu0 0
  %1139 = vmatprep.subr.bf16.mxu0 0
  %1140 = vmatpush1.bf16.msra.mxu0 0
  %1141 = vmatprep.subr.bf16.mxu0 0
  %1142 = vmatpush1.bf16.msra.mxu0 0
  %1143 = vmatprep.subr.bf16.mxu0 0
  %1144 = vmatpush1.bf16.msra.mxu0 0
  %1145 = vmatprep.subr.bf16.mxu0 0
  %1146 = vmatpush1.bf16.msra.mxu0 0
  %1147 = vmatprep.subr.bf16.mxu0 0
  %1148 = vmatpush1.bf16.msra.mxu0 0
  %1149 = vmatprep.subr.bf16.mxu0 0
  %1150 = vmatpush1.bf16.msra.mxu0 %v1133
  %1151 = vmatprep.subr.bf16.mxu0 0
  %1152 = vmatpush2.bf16.msra.mxu0 0
  %1153 = vmatprep.subr.bf16.mxu0 0
  %1154 = vmatpush2.bf16.msra.mxu0 0
  %1155 = vmatprep.subr.bf16.mxu0 0
  %1156 = vmatpush2.bf16.msra.mxu0 0
  %1157 = vmatprep.subr.bf16.mxu0 0
  %1158 = vmatpush2.bf16.msra.mxu0 0
  %1159 = vmatprep.subr.bf16.mxu0 0
  %1160 = vmatpush2.bf16.msra.mxu0 0
  %1161 = vmatprep.subr.bf16.mxu0 0
  %1162 = vmatpush2.bf16.msra.mxu0 0
  %1163 = vmatprep.subr.bf16.mxu0 0
  %1164 = vmatpush2.bf16.msra.mxu0 0
  %1165 = vmatprep.subr.bf16.mxu0 0
  %1166 = vmatpush2.bf16.msra.mxu0 0
  %1167 = vmatprep.mubr.bf16.mxu0 0
  %1168 = vmatmul.mubr.bf16.gmra.mxu0 %v1109
  %v1169 = vpop.f32.mrf.mxu0
  %v1170 = vadd.f32 %v137, %v1169
  %v1171 = vpop.f32.mrf.mxu0
  %v1172 = vpop.f32.mrf.mxu0
  %v1173 = vadd.f32 %v138, %v1172
  %v1174 = vpop.f32.mrf.mxu0
  %1175 = vmatprep.mubr.bf16.mxu0 0
  %1176 = vmatmul.mubr.bf16.gmra.mxu0 %v1112
  %v1177 = vpop.f32.mrf.mxu0
  %v1178 = vadd.f32 %v139, %v1177
  %v1179 = vpop.f32.mrf.mxu0
  %v1180 = vpop.f32.mrf.mxu0
  %v1181 = vadd.f32 %v140, %v1180
  %v1182 = vpop.f32.mrf.mxu0
  %1183 = vmatprep.mubr.bf16.mxu0 0
  %1184 = vmatmul.mubr.bf16.gmra.mxu0 %v1115
  %v1185 = vpop.f32.mrf.mxu0
  %v1186 = vadd.f32 %v141, %v1185
  %v1187 = vpop.f32.mrf.mxu0
  %v1188 = vpop.f32.mrf.mxu0
  %v1189 = vadd.f32 %v142, %v1188
  %v1190 = vpop.f32.mrf.mxu0
  %1191 = vmatprep.mubr.bf16.mxu0 0
  %1192 = vmatmul.mubr.bf16.gmra.mxu0 %v1118
  %v1193 = vpop.f32.mrf.mxu0
  %v1194 = vadd.f32 %v143, %v1193
  %v1195 = vpop.f32.mrf.mxu0
  %v1196 = vpop.f32.mrf.mxu0
  %v1197 = vadd.f32 %v144, %v1196
  %v1198 = vpop.f32.mrf.mxu0
  %1199 = vmatprep.mubr.bf16.mxu0 0
  %1200 = vmatmul.mubr.bf16.gmra.mxu0 %v1121
  %v1201 = vpop.f32.mrf.mxu0
  %v1202 = vadd.f32 %v145, %v1201
  %v1203 = vpop.f32.mrf.mxu0
  %v1204 = vpop.f32.mrf.mxu0
  %v1205 = vadd.f32 %v146, %v1204
  %v1206 = vpop.f32.mrf.mxu0
  %1207 = vmatprep.mubr.bf16.mxu0 0
  %1208 = vmatmul.mubr.bf16.gmra.mxu0 %v1124
  %v1209 = vpop.f32.mrf.mxu0
  %v1210 = vadd.f32 %v147, %v1209
  %v1211 = vpop.f32.mrf.mxu0
  %v1212 = vpop.f32.mrf.mxu0
  %v1213 = vadd.f32 %v148, %v1212
  %v1214 = vpop.f32.mrf.mxu0
  %1215 = vmatprep.mubr.bf16.mxu0 0
  %1216 = vmatmul.mubr.bf16.gmra.mxu0 %v1127
  %v1217 = vpop.f32.mrf.mxu0
  %v1218 = vadd.f32 %v149, %v1217
  %v1219 = vpop.f32.mrf.mxu0
  %v1220 = vpop.f32.mrf.mxu0
  %v1221 = vadd.f32 %v150, %v1220
  %v1222 = vpop.f32.mrf.mxu0
  %1223 = vmatprep.mubr.bf16.mxu0 0
  %1224 = vmatmul.mubr.bf16.gmra.mxu0 %v1130
  %v1225 = vpop.f32.mrf.mxu0
  %v1226 = vadd.f32 %v151, %v1225
  %v1227 = vpop.f32.mrf.mxu0
  %v1228 = vpop.f32.mrf.mxu0
  %v1229 = vadd.f32 %v152, %v1228
  %v1230 = vpop.f32.mrf.mxu0
  %1231 = vdwg.mxu0
  %v1232 = vmax.f32 %v1170, %v1186
  %v1233 = vmax.f32 %v1173, %v1189
  %v1234 = vmax.f32 %v1178, %v1194
  %v1235 = vmax.f32 %v1181, %v1197
  %v1236 = vmax.f32 %v1232, %v1202
  %v1237 = vmax.f32 %v1233, %v1205
  %v1238 = vmax.f32 %v1234, %v1210
  %v1239 = vmax.f32 %v1235, %v1213
  %v1240 = vmax.f32 %v1236, %v1218
  %v1241 = vmax.f32 %v1237, %v1221
  %v1242 = vmax.f32 %v1238, %v1226
  %v1243 = vmax.f32 %v1239, %v1229
  %v1244 = vmax.f32 %v1240, %v1241
  %v1245 = vmax.f32 %v1242, %v1243
  %v1246 = vmax.f32 %v1244, %v1245
  %v1247 = vrot.slane %v1246, 4
  %v1248 = vmax.f32 %v1246, %v1247
  %v1249 = vrot.slane %v1248, 2
  %v1250 = vmax.f32 %v1248, %v1249
  %v1251 = vrot.slane %v1250, 1
  %v1252 = vmax.f32 %v1250, %v1251
  %v1253 = vsub.f32 %v1170, %v1252
  %v1254 = vsub.f32 %v1173, %v1252
  %v1255 = vsub.f32 %v1178, %v1252
  %v1256 = vsub.f32 %v1181, %v1252
  %v1257 = vsub.f32 %v1186, %v1252
  %v1258 = vsub.f32 %v1189, %v1252
  %v1259 = vsub.f32 %v1194, %v1252
  %v1260 = vsub.f32 %v1197, %v1252
  %v1261 = vsub.f32 %v1202, %v1252
  %v1262 = vsub.f32 %v1205, %v1252
  %v1263 = vsub.f32 %v1210, %v1252
  %v1264 = vsub.f32 %v1213, %v1252
  %v1265 = vsub.f32 %v1218, %v1252
  %v1266 = vsub.f32 %v1221, %v1252
  %v1267 = vsub.f32 %v1226, %v1252
  %v1268 = vsub.f32 %v1229, %v1252
  %v1269 = vmul.f32 %v1253, 1.442695
  %v1270 = vpow.pop %v1269
  %v1271 = vmul.f32 %v1254, 1.442695
  %v1272 = vpow.pop %v1271
  %v1273 = vmul.f32 %v1255, 1.442695
  %v1274 = vpow.pop %v1273
  %v1275 = vmul.f32 %v1256, 1.442695
  %v1276 = vpow.pop %v1275
  %v1277 = vmul.f32 %v1257, 1.442695
  %v1278 = vpow.pop %v1277
  %v1279 = vmul.f32 %v1258, 1.442695
  %v1280 = vpow.pop %v1279
  %v1281 = vmul.f32 %v1259, 1.442695
  %v1282 = vpow.pop %v1281
  %v1283 = vmul.f32 %v1260, 1.442695
  %v1284 = vpow.pop %v1283
  %v1285 = vmul.f32 %v1261, 1.442695
  %v1286 = vpow.pop %v1285
  %v1287 = vmul.f32 %v1262, 1.442695
  %v1288 = vpow.pop %v1287
  %v1289 = vmul.f32 %v1263, 1.442695
  %v1290 = vpow.pop %v1289
  %v1291 = vmul.f32 %v1264, 1.442695
  %v1292 = vpow.pop %v1291
  %v1293 = vmul.f32 %v1265, 1.442695
  %v1294 = vpow.pop %v1293
  %v1295 = vmul.f32 %v1266, 1.442695
  %v1296 = vpow.pop %v1295
  %v1297 = vmul.f32 %v1267, 1.442695
  %v1298 = vpow.pop %v1297
  %v1299 = vmul.f32 %v1268, 1.442695
  %v1300 = vpow.pop %v1299
  %v1301 = vadd.f32 %v1270, %v1272
  %v1302 = vadd.f32 %v1301, %v1274
  %v1303 = vadd.f32 %v1302, %v1276
  %v1304 = vadd.f32 %v1303, %v1278
  %v1305 = vadd.f32 %v1304, %v1280
  %v1306 = vadd.f32 %v1305, %v1282
  %v1307 = vadd.f32 %v1306, %v1284
  %v1308 = vadd.f32 %v1307, %v1286
  %v1309 = vadd.f32 %v1308, %v1288
  %v1310 = vadd.f32 %v1309, %v1290
  %v1311 = vadd.f32 %v1310, %v1292
  %v1312 = vadd.f32 %v1311, %v1294
  %v1313 = vadd.f32 %v1312, %v1296
  %v1314 = vadd.f32 %v1313, %v1298
  %v1315 = vadd.f32 %v1314, %v1300
  %v1316 = vrot.slane %v1315, 4
  %v1317 = vadd.f32 %v1315, %v1316
  %v1318 = vrot.slane %v1317, 2
  %v1319 = vadd.f32 %v1317, %v1318
  %v1320 = vrot.slane %v1319, 1
  %v1321 = vadd.f32 %v1319, %v1320
  %v1322 = vpack.c.bf16 %v1272, %v1270
  %v1323 = vpack.c.bf16 %v1276, %v1274
  %v1324 = vpack.c.bf16 %v1280, %v1278
  %v1325 = vpack.c.bf16 %v1284, %v1282
  %v1326 = vpack.c.bf16 %v1288, %v1286
  %v1327 = vpack.c.bf16 %v1292, %v1290
  %v1328 = vpack.c.bf16 %v1296, %v1294
  %v1329 = vpack.c.bf16 %v1300, %v1298
  %1330 = vmatprep.subr.bf16.mxu0 0
  %1331 = vmatpush1.bf16.msra.mxu0 %v1329
  %1332 = vmatprep.subr.bf16.mxu0 0
  %1333 = vmatpush1.bf16.msra.mxu0 %v1328
  %1334 = vmatprep.subr.bf16.mxu0 0
  %1335 = vmatpush1.bf16.msra.mxu0 %v1327
  %1336 = vmatprep.subr.bf16.mxu0 0
  %1337 = vmatpush1.bf16.msra.mxu0 %v1326
  %1338 = vmatprep.subr.bf16.mxu0 0
  %1339 = vmatpush1.bf16.msra.mxu0 %v1325
  %1340 = vmatprep.subr.bf16.mxu0 0
  %1341 = vmatpush1.bf16.msra.mxu0 %v1324
  %1342 = vmatprep.subr.bf16.mxu0 0
  %1343 = vmatpush1.bf16.msra.mxu0 %v1323
  %1344 = vmatprep.subr.bf16.mxu0 0
  %1345 = vmatpush1.bf16.msra.mxu0 %v1322
  %1346 = vmatprep.subr.bf16.mxu0 0
  %1347 = vmatpush2.bf16.msra.mxu0 0
  %1348 = vmatprep.subr.bf16.mxu0 0
  %1349 = vmatpush2.bf16.msra.mxu0 0
  %1350 = vmatprep.subr.bf16.mxu0 0
  %1351 = vmatpush2.bf16.msra.mxu0 0
  %1352 = vmatprep.subr.bf16.mxu0 0
  %1353 = vmatpush2.bf16.msra.mxu0 0
  %1354 = vmatprep.subr.bf16.mxu0 0
  %1355 = vmatpush2.bf16.msra.mxu0 0
  %1356 = vmatprep.subr.bf16.mxu0 0
  %1357 = vmatpush2.bf16.msra.mxu0 0
  %1358 = vmatprep.subr.bf16.mxu0 0
  %1359 = vmatpush2.bf16.msra.mxu0 0
  %1360 = vmatprep.subr.bf16.mxu0 0
  %1361 = vmatpush2.bf16.msra.mxu0 0
  %1362 = vmatprep.mubr.bf16.mxu0 0
  %1363 = vmatmul.mubr.bf16.gmra.mxu0 %v1091
  %v1364 = vpop.f32.mrf.mxu0
  %v1365 = vadd.f32 0.0, %v1364
  %v1366 = vpop.f32.mrf.mxu0
  %v1367 = vpop.f32.mrf.mxu0
  %v1368 = vpop.f32.mrf.mxu0
  %1369 = vdwg.mxu0
  %v1370 = vrcp.pop %v1321
  %v1371 = vmul.f32 %v1365, %v1370
  %s1372 = scalar_lea.vmem %s6, 8
  %v1373 = vld [vmem:[%s1372] sm:$0xf]
  %v1374 = vpack.c.bf16 %v1371, %v1371
  %1375 = vxpose.xlu0.c.b16.start [1/8] %v1373, 128
  %1376 = vxpose.xlu0.c.b16.cont [2/8] 0, 128
  %1377 = vxpose.xlu0.c.b16.cont [3/8] 0, 128
  %1378 = vxpose.xlu0.c.b16.cont [4/8] 0, 128
  %1379 = vxpose.xlu0.c.b16.cont [5/8] 0, 128
  %1380 = vxpose.xlu0.c.b16.cont [6/8] 0, 128
  %1381 = vxpose.xlu0.c.b16.cont [7/8] 0, 128
  %1382 = vxpose.xlu0.c.b16.end [8/8] 0, 128
  %v1383 = vpop.trf.xlu0
  %v1384 = vpop.trf.xlu0
  %v1385 = vpop.trf.xlu0
  %v1386 = vpop.trf.xlu0
  %v1387 = vpop.trf.xlu0
  %v1388 = vpop.trf.xlu0
  %v1389 = vpop.trf.xlu0
  %v1390 = vpop.trf.xlu0
  %v1392 = vsel %vm387, %v1383, 0
  %v1395 = vsel %vm387, %v1384, 0
  %v1398 = vsel %vm412, %v1374, 0
  %1400 = vmatprep.subr.bf16.mxu0 0
  %1401 = vmatpush1.bf16.msra.mxu0 0
  %1402 = vmatprep.subr.bf16.mxu0 0
  %1403 = vmatpush1.bf16.msra.mxu0 0
  %1404 = vmatprep.subr.bf16.mxu0 0
  %1405 = vmatpush1.bf16.msra.mxu0 0
  %1406 = vmatprep.subr.bf16.mxu0 0
  %1407 = vmatpush1.bf16.msra.mxu0 0
  %1408 = vmatprep.subr.bf16.mxu0 0
  %1409 = vmatpush1.bf16.msra.mxu0 0
  %1410 = vmatprep.subr.bf16.mxu0 0
  %1411 = vmatpush1.bf16.msra.mxu0 0
  %1412 = vmatprep.subr.bf16.mxu0 0
  %1413 = vmatpush1.bf16.msra.mxu0 0
  %1414 = vmatprep.subr.bf16.mxu0 0
  %1415 = vmatpush1.bf16.msra.mxu0 %v1398
  %1416 = vmatprep.subr.bf16.mxu0 0
  %1417 = vmatpush2.bf16.msra.mxu0 0
  %1418 = vmatprep.subr.bf16.mxu0 0
  %1419 = vmatpush2.bf16.msra.mxu0 0
  %1420 = vmatprep.subr.bf16.mxu0 0
  %1421 = vmatpush2.bf16.msra.mxu0 0
  %1422 = vmatprep.subr.bf16.mxu0 0
  %1423 = vmatpush2.bf16.msra.mxu0 0
  %1424 = vmatprep.subr.bf16.mxu0 0
  %1425 = vmatpush2.bf16.msra.mxu0 0
  %1426 = vmatprep.subr.bf16.mxu0 0
  %1427 = vmatpush2.bf16.msra.mxu0 0
  %1428 = vmatprep.subr.bf16.mxu0 0
  %1429 = vmatpush2.bf16.msra.mxu0 0
  %1430 = vmatprep.subr.bf16.mxu0 0
  %1431 = vmatpush2.bf16.msra.mxu0 0
  %1432 = vmatprep.mubr.bf16.mxu0 0
  %1433 = vmatmul.mubr.bf16.gmra.mxu0 %v1392
  %v1434 = vpop.f32.mrf.mxu0
  %v1435 = vadd.f32 0.0, %v1434
  %v1436 = vpop.f32.mrf.mxu0
  %v1437 = vpop.f32.mrf.mxu0
  %v1438 = vadd.f32 0.0, %v1437
  %v1439 = vpop.f32.mrf.mxu0
  %1440 = vmatprep.mubr.bf16.mxu0 0
  %1441 = vmatmul.mubr.bf16.gmra.mxu0 %v1395
  %v1442 = vpop.f32.mrf.mxu0
  %v1443 = vadd.f32 0.0, %v1442
  %v1444 = vpop.f32.mrf.mxu0
  %v1445 = vpop.f32.mrf.mxu0
  %v1446 = vadd.f32 0.0, %v1445
  %v1447 = vpop.f32.mrf.mxu0
  %1448 = vdwg.mxu0
  %v1449 = vadd.f32 %v1075, %v1435
  %v1450 = vadd.f32 %v1078, %v1438
  %v1451 = vadd.f32 %v1083, %v1443
  %v1452 = vadd.f32 %v1086, %v1446
  %v1453 = vpack.c.bf16 %v333, %v333
  %v1454 = vpack.c.bf16 %v349, %v349
  %v1455 = vpack.c.bf16 %v365, %v365
  %1456 = vxpose.xlu0.c.b16.start [1/8] %v1454, 128
  %1457 = vxpose.xlu0.c.b16.cont [2/8] 0, 128
  %1458 = vxpose.xlu0.c.b16.cont [3/8] 0, 128
  %1459 = vxpose.xlu0.c.b16.cont [4/8] 0, 128
  %1460 = vxpose.xlu0.c.b16.cont [5/8] 0, 128
  %1461 = vxpose.xlu0.c.b16.cont [6/8] 0, 128
  %1462 = vxpose.xlu0.c.b16.cont [7/8] 0, 128
  %1463 = vxpose.xlu0.c.b16.end [8/8] 0, 128
  %v1464 = vpop.trf.xlu0
  %v1465 = vpop.trf.xlu0
  %v1466 = vpop.trf.xlu0
  %v1467 = vpop.trf.xlu0
  %v1468 = vpop.trf.xlu0
  %v1469 = vpop.trf.xlu0
  %v1470 = vpop.trf.xlu0
  %v1471 = vpop.trf.xlu0
  %v1473 = vsel %vm387, %v1464, 0
  %v1476 = vsel %vm387, %v1465, 0
  %v1479 = vsel %vm387, %v1466, 0
  %v1482 = vsel %vm387, %v1467, 0
  %v1485 = vsel %vm387, %v1468, 0
  %v1488 = vsel %vm387, %v1469, 0
  %v1491 = vsel %vm387, %v1470, 0
  %v1494 = vsel %vm387, %v1471, 0
  %v1497 = vsel %vm412, %v1453, 0
  %1499 = vmatprep.subr.bf16.mxu0 0
  %1500 = vmatpush1.bf16.msra.mxu0 0
  %1501 = vmatprep.subr.bf16.mxu0 0
  %1502 = vmatpush1.bf16.msra.mxu0 0
  %1503 = vmatprep.subr.bf16.mxu0 0
  %1504 = vmatpush1.bf16.msra.mxu0 0
  %1505 = vmatprep.subr.bf16.mxu0 0
  %1506 = vmatpush1.bf16.msra.mxu0 0
  %1507 = vmatprep.subr.bf16.mxu0 0
  %1508 = vmatpush1.bf16.msra.mxu0 0
  %1509 = vmatprep.subr.bf16.mxu0 0
  %1510 = vmatpush1.bf16.msra.mxu0 0
  %1511 = vmatprep.subr.bf16.mxu0 0
  %1512 = vmatpush1.bf16.msra.mxu0 0
  %1513 = vmatprep.subr.bf16.mxu0 0
  %1514 = vmatpush1.bf16.msra.mxu0 %v1497
  %1515 = vmatprep.subr.bf16.mxu0 0
  %1516 = vmatpush2.bf16.msra.mxu0 0
  %1517 = vmatprep.subr.bf16.mxu0 0
  %1518 = vmatpush2.bf16.msra.mxu0 0
  %1519 = vmatprep.subr.bf16.mxu0 0
  %1520 = vmatpush2.bf16.msra.mxu0 0
  %1521 = vmatprep.subr.bf16.mxu0 0
  %1522 = vmatpush2.bf16.msra.mxu0 0
  %1523 = vmatprep.subr.bf16.mxu0 0
  %1524 = vmatpush2.bf16.msra.mxu0 0
  %1525 = vmatprep.subr.bf16.mxu0 0
  %1526 = vmatpush2.bf16.msra.mxu0 0
  %1527 = vmatprep.subr.bf16.mxu0 0
  %1528 = vmatpush2.bf16.msra.mxu0 0
  %1529 = vmatprep.subr.bf16.mxu0 0
  %1530 = vmatpush2.bf16.msra.mxu0 0
  %1531 = vmatprep.mubr.bf16.mxu0 0
  %1532 = vmatmul.mubr.bf16.gmra.mxu0 %v1473
  %v1533 = vpop.f32.mrf.mxu0
  %v1534 = vadd.f32 %v137, %v1533
  %v1535 = vpop.f32.mrf.mxu0
  %v1536 = vpop.f32.mrf.mxu0
  %v1537 = vadd.f32 %v138, %v1536
  %v1538 = vpop.f32.mrf.mxu0
  %1539 = vmatprep.mubr.bf16.mxu0 0
  %1540 = vmatmul.mubr.bf16.gmra.mxu0 %v1476
  %v1541 = vpop.f32.mrf.mxu0
  %v1542 = vadd.f32 %v139, %v1541
  %v1543 = vpop.f32.mrf.mxu0
  %v1544 = vpop.f32.mrf.mxu0
  %v1545 = vadd.f32 %v140, %v1544
  %v1546 = vpop.f32.mrf.mxu0
  %1547 = vmatprep.mubr.bf16.mxu0 0
  %1548 = vmatmul.mubr.bf16.gmra.mxu0 %v1479
  %v1549 = vpop.f32.mrf.mxu0
  %v1550 = vadd.f32 %v141, %v1549
  %v1551 = vpop.f32.mrf.mxu0
  %v1552 = vpop.f32.mrf.mxu0
  %v1553 = vadd.f32 %v142, %v1552
  %v1554 = vpop.f32.mrf.mxu0
  %1555 = vmatprep.mubr.bf16.mxu0 0
  %1556 = vmatmul.mubr.bf16.gmra.mxu0 %v1482
  %v1557 = vpop.f32.mrf.mxu0
  %v1558 = vadd.f32 %v143, %v1557
  %v1559 = vpop.f32.mrf.mxu0
  %v1560 = vpop.f32.mrf.mxu0
  %v1561 = vadd.f32 %v144, %v1560
  %v1562 = vpop.f32.mrf.mxu0
  %1563 = vmatprep.mubr.bf16.mxu0 0
  %1564 = vmatmul.mubr.bf16.gmra.mxu0 %v1485
  %v1565 = vpop.f32.mrf.mxu0
  %v1566 = vadd.f32 %v145, %v1565
  %v1567 = vpop.f32.mrf.mxu0
  %v1568 = vpop.f32.mrf.mxu0
  %v1569 = vadd.f32 %v146, %v1568
  %v1570 = vpop.f32.mrf.mxu0
  %1571 = vmatprep.mubr.bf16.mxu0 0
  %1572 = vmatmul.mubr.bf16.gmra.mxu0 %v1488
  %v1573 = vpop.f32.mrf.mxu0
  %v1574 = vadd.f32 %v147, %v1573
  %v1575 = vpop.f32.mrf.mxu0
  %v1576 = vpop.f32.mrf.mxu0
  %v1577 = vadd.f32 %v148, %v1576
  %v1578 = vpop.f32.mrf.mxu0
  %1579 = vmatprep.mubr.bf16.mxu0 0
  %1580 = vmatmul.mubr.bf16.gmra.mxu0 %v1491
  %v1581 = vpop.f32.mrf.mxu0
  %v1582 = vadd.f32 %v149, %v1581
  %v1583 = vpop.f32.mrf.mxu0
  %v1584 = vpop.f32.mrf.mxu0
  %v1585 = vadd.f32 %v150, %v1584
  %v1586 = vpop.f32.mrf.mxu0
  %1587 = vmatprep.mubr.bf16.mxu0 0
  %1588 = vmatmul.mubr.bf16.gmra.mxu0 %v1494
  %v1589 = vpop.f32.mrf.mxu0
  %v1590 = vadd.f32 %v151, %v1589
  %v1591 = vpop.f32.mrf.mxu0
  %v1592 = vpop.f32.mrf.mxu0
  %v1593 = vadd.f32 %v152, %v1592
  %v1594 = vpop.f32.mrf.mxu0
  %1595 = vdwg.mxu0
  %v1596 = vmax.f32 %v1534, %v1550
  %v1597 = vmax.f32 %v1537, %v1553
  %v1598 = vmax.f32 %v1542, %v1558
  %v1599 = vmax.f32 %v1545, %v1561
  %v1600 = vmax.f32 %v1596, %v1566
  %v1601 = vmax.f32 %v1597, %v1569
  %v1602 = vmax.f32 %v1598, %v1574
  %v1603 = vmax.f32 %v1599, %v1577
  %v1604 = vmax.f32 %v1600, %v1582
  %v1605 = vmax.f32 %v1601, %v1585
  %v1606 = vmax.f32 %v1602, %v1590
  %v1607 = vmax.f32 %v1603, %v1593
  %v1608 = vmax.f32 %v1604, %v1605
  %v1609 = vmax.f32 %v1606, %v1607
  %v1610 = vmax.f32 %v1608, %v1609
  %v1611 = vrot.slane %v1610, 4
  %v1612 = vmax.f32 %v1610, %v1611
  %v1613 = vrot.slane %v1612, 2
  %v1614 = vmax.f32 %v1612, %v1613
  %v1615 = vrot.slane %v1614, 1
  %v1616 = vmax.f32 %v1614, %v1615
  %v1617 = vsub.f32 %v1534, %v1616
  %v1618 = vsub.f32 %v1537, %v1616
  %v1619 = vsub.f32 %v1542, %v1616
  %v1620 = vsub.f32 %v1545, %v1616
  %v1621 = vsub.f32 %v1550, %v1616
  %v1622 = vsub.f32 %v1553, %v1616
  %v1623 = vsub.f32 %v1558, %v1616
  %v1624 = vsub.f32 %v1561, %v1616
  %v1625 = vsub.f32 %v1566, %v1616
  %v1626 = vsub.f32 %v1569, %v1616
  %v1627 = vsub.f32 %v1574, %v1616
  %v1628 = vsub.f32 %v1577, %v1616
  %v1629 = vsub.f32 %v1582, %v1616
  %v1630 = vsub.f32 %v1585, %v1616
  %v1631 = vsub.f32 %v1590, %v1616
  %v1632 = vsub.f32 %v1593, %v1616
  %v1633 = vmul.f32 %v1617, 1.442695
  %v1634 = vpow.pop %v1633
  %v1635 = vmul.f32 %v1618, 1.442695
  %v1636 = vpow.pop %v1635
  %v1637 = vmul.f32 %v1619, 1.442695
  %v1638 = vpow.pop %v1637
  %v1639 = vmul.f32 %v1620, 1.442695
  %v1640 = vpow.pop %v1639
  %v1641 = vmul.f32 %v1621, 1.442695
  %v1642 = vpow.pop %v1641
  %v1643 = vmul.f32 %v1622, 1.442695
  %v1644 = vpow.pop %v1643
  %v1645 = vmul.f32 %v1623, 1.442695
  %v1646 = vpow.pop %v1645
  %v1647 = vmul.f32 %v1624, 1.442695
  %v1648 = vpow.pop %v1647
  %v1649 = vmul.f32 %v1625, 1.442695
  %v1650 = vpow.pop %v1649
  %v1651 = vmul.f32 %v1626, 1.442695
  %v1652 = vpow.pop %v1651
  %v1653 = vmul.f32 %v1627, 1.442695
  %v1654 = vpow.pop %v1653
  %v1655 = vmul.f32 %v1628, 1.442695
  %v1656 = vpow.pop %v1655
  %v1657 = vmul.f32 %v1629, 1.442695
  %v1658 = vpow.pop %v1657
  %v1659 = vmul.f32 %v1630, 1.442695
  %v1660 = vpow.pop %v1659
  %v1661 = vmul.f32 %v1631, 1.442695
  %v1662 = vpow.pop %v1661
  %v1663 = vmul.f32 %v1632, 1.442695
  %v1664 = vpow.pop %v1663
  %v1665 = vadd.f32 %v1634, %v1636
  %v1666 = vadd.f32 %v1665, %v1638
  %v1667 = vadd.f32 %v1666, %v1640
  %v1668 = vadd.f32 %v1667, %v1642
  %v1669 = vadd.f32 %v1668, %v1644
  %v1670 = vadd.f32 %v1669, %v1646
  %v1671 = vadd.f32 %v1670, %v1648
  %v1672 = vadd.f32 %v1671, %v1650
  %v1673 = vadd.f32 %v1672, %v1652
  %v1674 = vadd.f32 %v1673, %v1654
  %v1675 = vadd.f32 %v1674, %v1656
  %v1676 = vadd.f32 %v1675, %v1658
  %v1677 = vadd.f32 %v1676, %v1660
  %v1678 = vadd.f32 %v1677, %v1662
  %v1679 = vadd.f32 %v1678, %v1664
  %v1680 = vrot.slane %v1679, 4
  %v1681 = vadd.f32 %v1679, %v1680
  %v1682 = vrot.slane %v1681, 2
  %v1683 = vadd.f32 %v1681, %v1682
  %v1684 = vrot.slane %v1683, 1
  %v1685 = vadd.f32 %v1683, %v1684
  %v1686 = vpack.c.bf16 %v1636, %v1634
  %v1687 = vpack.c.bf16 %v1640, %v1638
  %v1688 = vpack.c.bf16 %v1644, %v1642
  %v1689 = vpack.c.bf16 %v1648, %v1646
  %v1690 = vpack.c.bf16 %v1652, %v1650
  %v1691 = vpack.c.bf16 %v1656, %v1654
  %v1692 = vpack.c.bf16 %v1660, %v1658
  %v1693 = vpack.c.bf16 %v1664, %v1662
  %1694 = vmatprep.subr.bf16.mxu0 0
  %1695 = vmatpush1.bf16.msra.mxu0 %v1693
  %1696 = vmatprep.subr.bf16.mxu0 0
  %1697 = vmatpush1.bf16.msra.mxu0 %v1692
  %1698 = vmatprep.subr.bf16.mxu0 0
  %1699 = vmatpush1.bf16.msra.mxu0 %v1691
  %1700 = vmatprep.subr.bf16.mxu0 0
  %1701 = vmatpush1.bf16.msra.mxu0 %v1690
  %1702 = vmatprep.subr.bf16.mxu0 0
  %1703 = vmatpush1.bf16.msra.mxu0 %v1689
  %1704 = vmatprep.subr.bf16.mxu0 0
  %1705 = vmatpush1.bf16.msra.mxu0 %v1688
  %1706 = vmatprep.subr.bf16.mxu0 0
  %1707 = vmatpush1.bf16.msra.mxu0 %v1687
  %1708 = vmatprep.subr.bf16.mxu0 0
  %1709 = vmatpush1.bf16.msra.mxu0 %v1686
  %1710 = vmatprep.subr.bf16.mxu0 0
  %1711 = vmatpush2.bf16.msra.mxu0 0
  %1712 = vmatprep.subr.bf16.mxu0 0
  %1713 = vmatpush2.bf16.msra.mxu0 0
  %1714 = vmatprep.subr.bf16.mxu0 0
  %1715 = vmatpush2.bf16.msra.mxu0 0
  %1716 = vmatprep.subr.bf16.mxu0 0
  %1717 = vmatpush2.bf16.msra.mxu0 0
  %1718 = vmatprep.subr.bf16.mxu0 0
  %1719 = vmatpush2.bf16.msra.mxu0 0
  %1720 = vmatprep.subr.bf16.mxu0 0
  %1721 = vmatpush2.bf16.msra.mxu0 0
  %1722 = vmatprep.subr.bf16.mxu0 0
  %1723 = vmatpush2.bf16.msra.mxu0 0
  %1724 = vmatprep.subr.bf16.mxu0 0
  %1725 = vmatpush2.bf16.msra.mxu0 0
  %1726 = vmatprep.mubr.bf16.mxu0 0
  %1727 = vmatmul.mubr.bf16.gmra.mxu0 %v1455
  %v1728 = vpop.f32.mrf.mxu0
  %v1729 = vadd.f32 0.0, %v1728
  %v1730 = vpop.f32.mrf.mxu0
  %v1731 = vpop.f32.mrf.mxu0
  %v1732 = vpop.f32.mrf.mxu0
  %1733 = vdwg.mxu0
  %v1734 = vrcp.pop %v1685
  %v1735 = vmul.f32 %v1729, %v1734
  %s1736 = scalar_lea.vmem %s6, 12
  %v1737 = vld [vmem:[%s1736] sm:$0xf]
  %v1738 = vpack.c.bf16 %v1735, %v1735
  %1739 = vxpose.xlu0.c.b16.start [1/8] %v1737, 128
  %1740 = vxpose.xlu0.c.b16.cont [2/8] 0, 128
  %1741 = vxpose.xlu0.c.b16.cont [3/8] 0, 128
  %1742 = vxpose.xlu0.c.b16.cont [4/8] 0, 128
  %1743 = vxpose.xlu0.c.b16.cont [5/8] 0, 128
  %1744 = vxpose.xlu0.c.b16.cont [6/8] 0, 128
  %1745 = vxpose.xlu0.c.b16.cont [7/8] 0, 128
  %1746 = vxpose.xlu0.c.b16.end [8/8] 0, 128
  %v1747 = vpop.trf.xlu0
  %v1748 = vpop.trf.xlu0
  %v1749 = vpop.trf.xlu0
  %v1750 = vpop.trf.xlu0
  %v1751 = vpop.trf.xlu0
  %v1752 = vpop.trf.xlu0
  %v1753 = vpop.trf.xlu0
  %v1754 = vpop.trf.xlu0
  %v1756 = vsel %vm387, %v1747, 0
  %v1759 = vsel %vm387, %v1748, 0
  %v1762 = vsel %vm412, %v1738, 0
  %1764 = vmatprep.subr.bf16.mxu0 0
  %1765 = vmatpush1.bf16.msra.mxu0 0
  %1766 = vmatprep.subr.bf16.mxu0 0
  %1767 = vmatpush1.bf16.msra.mxu0 0
  %1768 = vmatprep.subr.bf16.mxu0 0
  %1769 = vmatpush1.bf16.msra.mxu0 0
  %1770 = vmatprep.subr.bf16.mxu0 0
  %1771 = vmatpush1.bf16.msra.mxu0 0
  %1772 = vmatprep.subr.bf16.mxu0 0
  %1773 = vmatpush1.bf16.msra.mxu0 0
  %1774 = vmatprep.subr.bf16.mxu0 0
  %1775 = vmatpush1.bf16.msra.mxu0 0
  %1776 = vmatprep.subr.bf16.mxu0 0
  %1777 = vmatpush1.bf16.msra.mxu0 0
  %1778 = vmatprep.subr.bf16.mxu0 0
  %1779 = vmatpush1.bf16.msra.mxu0 %v1762
  %1780 = vmatprep.subr.bf16.mxu0 0
  %1781 = vmatpush2.bf16.msra.mxu0 0
  %1782 = vmatprep.subr.bf16.mxu0 0
  %1783 = vmatpush2.bf16.msra.mxu0 0
  %1784 = vmatprep.subr.bf16.mxu0 0
  %1785 = vmatpush2.bf16.msra.mxu0 0
  %1786 = vmatprep.subr.bf16.mxu0 0
  %1787 = vmatpush2.bf16.msra.mxu0 0
  %1788 = vmatprep.subr.bf16.mxu0 0
  %1789 = vmatpush2.bf16.msra.mxu0 0
  %1790 = vmatprep.subr.bf16.mxu0 0
  %1791 = vmatpush2.bf16.msra.mxu0 0
  %1792 = vmatprep.subr.bf16.mxu0 0
  %1793 = vmatpush2.bf16.msra.mxu0 0
  %1794 = vmatprep.subr.bf16.mxu0 0
  %1795 = vmatpush2.bf16.msra.mxu0 0
  %1796 = vmatprep.mubr.bf16.mxu0 0
  %1797 = vmatmul.mubr.bf16.gmra.mxu0 %v1756
  %v1798 = vpop.f32.mrf.mxu0
  %v1799 = vadd.f32 0.0, %v1798
  %v1800 = vpop.f32.mrf.mxu0
  %v1801 = vpop.f32.mrf.mxu0
  %v1802 = vadd.f32 0.0, %v1801
  %v1803 = vpop.f32.mrf.mxu0
  %1804 = vmatprep.mubr.bf16.mxu0 0
  %1805 = vmatmul.mubr.bf16.gmra.mxu0 %v1759
  %v1806 = vpop.f32.mrf.mxu0
  %v1807 = vadd.f32 0.0, %v1806
  %v1808 = vpop.f32.mrf.mxu0
  %v1809 = vpop.f32.mrf.mxu0
  %v1810 = vadd.f32 0.0, %v1809
  %v1811 = vpop.f32.mrf.mxu0
  %1812 = vdwg.mxu0
  %v1813 = vadd.f32 %v1449, %v1799
  %v1814 = vadd.f32 %v1450, %v1802
  %v1815 = vadd.f32 %v1451, %v1807
  %v1816 = vadd.f32 %v1452, %v1810
  %v1817 = vadd.f32 %v133, %v1813
  %v1818 = vadd.f32 %v134, %v1814
  %v1819 = vadd.f32 %v135, %v1815
  %v1820 = vadd.f32 %v136, %v1816
  %v1821 = vld [vmem:[%s7] sm:$0xff]
  %v1822 = vld [vmem:[%s7 + $0x8] sm:$0xff]
  %v1823 = vld [vmem:[%s7 + $0x10] sm:$0xff]
  %v1824 = vld [vmem:[%s7 + $0x18] sm:$0xff]
  %1826 = vset.pattern.permute.xlu0 0
  %1827 = vperm.xlu0 %1826, %v1821
  %v1828 = vpop.permute.xlu0 %1827
  %1831 = vset.pattern.permute.xlu0 0
  %1832 = vperm.xlu0 %1831, %v1822
  %v1833 = vpop.permute.xlu0 %1832
  %1836 = vset.pattern.permute.xlu0 0
  %1837 = vperm.xlu0 %1836, %v1823
  %v1838 = vpop.permute.xlu0 %1837
  %1841 = vset.pattern.permute.xlu0 0
  %1842 = vperm.xlu0 %1841, %v1824
  %v1843 = vpop.permute.xlu0 %1842
  %v1845 = vadd.f32 %v1817, %v1828
  %v1846 = vadd.f32 %v1818, %v1833
  %v1847 = vadd.f32 %v1819, %v1838
  %v1848 = vadd.f32 %v1820, %v1843
  %v1849 = vld [vmem:[%s8] sm:$0xf]
  %v1850 = vld [vmem:[%s8 + $0x4] sm:$0xf]
  %v1851 = vld [vmem:[%s8 + $0x8] sm:$0xf]
  %v1852 = vld [vmem:[%s8 + $0xc] sm:$0xf]
  %v1853 = vpack.c.bf16 %v1846, %v1845
  %v1854 = vpack.c.bf16 %v1848, %v1847
  %v1859 = vunpack.c.l.b16 %v1849
  %v1860 = vunpack.c.l.b16 %v1850
  %v1861 = vunpack.c.l.b16 %v1851
  %v1862 = vunpack.c.l.b16 %v1852
  %v1863 = vpack.c.b16 %v1860, %v1859
  %v1864 = vpack.c.b16 %v1862, %v1861
  %v1866 = vsel %vm77, %v1863, 0
  %v1869 = vsel %vm77, %v1864, 0
  %1871 = vmatprep.subr.bf16.mxu0 0
  %1872 = vmatpush1.bf16.msra.mxu0 0
  %1873 = vmatprep.subr.bf16.mxu0 0
  %1874 = vmatpush1.bf16.msra.mxu0 0
  %1875 = vmatprep.subr.bf16.mxu0 0
  %1876 = vmatpush1.bf16.msra.mxu0 0
  %1877 = vmatprep.subr.bf16.mxu0 0
  %1878 = vmatpush1.bf16.msra.mxu0 0
  %1879 = vmatprep.subr.bf16.mxu0 0
  %1880 = vmatpush1.bf16.msra.mxu0 0
  %1881 = vmatprep.subr.bf16.mxu0 0
  %1882 = vmatpush1.bf16.msra.mxu0 0
  %1883 = vmatprep.subr.bf16.mxu0 0
  %1884 = vmatpush1.bf16.msra.mxu0 %v1854
  %1885 = vmatprep.subr.bf16.mxu0 0
  %1886 = vmatpush1.bf16.msra.mxu0 %v1853
  %1887 = vmatprep.subr.bf16.mxu0 0
  %1888 = vmatpush2.bf16.msra.mxu0 0
  %1889 = vmatprep.subr.bf16.mxu0 0
  %1890 = vmatpush2.bf16.msra.mxu0 0
  %1891 = vmatprep.subr.bf16.mxu0 0
  %1892 = vmatpush2.bf16.msra.mxu0 0
  %1893 = vmatprep.subr.bf16.mxu0 0
  %1894 = vmatpush2.bf16.msra.mxu0 0
  %1895 = vmatprep.subr.bf16.mxu0 0
  %1896 = vmatpush2.bf16.msra.mxu0 0
  %1897 = vmatprep.subr.bf16.mxu0 0
  %1898 = vmatpush2.bf16.msra.mxu0 0
  %1899 = vmatprep.subr.bf16.mxu0 0
  %1900 = vmatpush2.bf16.msra.mxu0 0
  %1901 = vmatprep.subr.bf16.mxu0 0
  %1902 = vmatpush2.bf16.msra.mxu0 0
  %1903 = vmatprep.mubr.bf16.mxu0 0
  %1904 = vmatmul.mubr.bf16.gmra.mxu0 %v1866
  %v1905 = vpop.f32.mrf.mxu0
  %v1906 = vadd.f32 0.0, %v1905
  %v1907 = vpop.f32.mrf.mxu0
  %v1908 = vpop.f32.mrf.mxu0
  %v1909 = vadd.f32 0.0, %v1908
  %v1910 = vpop.f32.mrf.mxu0
  %1911 = vmatprep.mubr.bf16.mxu0 0
  %1912 = vmatmul.mubr.bf16.gmra.mxu0 %v1869
  %v1913 = vpop.f32.mrf.mxu0
  %v1914 = vadd.f32 0.0, %v1913
  %v1915 = vpop.f32.mrf.mxu0
  %v1916 = vpop.f32.mrf.mxu0
  %v1917 = vadd.f32 0.0, %v1916
  %v1918 = vpop.f32.mrf.mxu0
  %1919 = vdwg.mxu0
  %v1920 = vadd.f32 %v1845, %v1906
  %v1921 = vadd.f32 %v1846, %v1909
  %v1922 = vadd.f32 %v1847, %v1914
  %v1923 = vadd.f32 %v1848, %v1917
  %s1924 = scalar_lea.vmem %s4, 48
  %v1925 = vld [vmem:[%s1924] sm:$0xf]
  %v1926 = vld [vmem:[%s1924 + $0x4] sm:$0xf]
  %v1927 = vld [vmem:[%s1924 + $0x8] sm:$0xf]
  %v1928 = vld [vmem:[%s1924 + $0xc] sm:$0xf]
  %v1929 = vld [vmem:[%s1924 + $0x10] sm:$0xf]
  %v1930 = vld [vmem:[%s1924 + $0x14] sm:$0xf]
  %v1931 = vld [vmem:[%s1924 + $0x18] sm:$0xf]
  %v1932 = vld [vmem:[%s1924 + $0x1c] sm:$0xf]
  %v1933 = vld [vmem:[%s1924 + $0x20] sm:$0xf]
  %v1934 = vld [vmem:[%s1924 + $0x24] sm:$0xf]
  %v1935 = vld [vmem:[%s1924 + $0x28] sm:$0xf]
  %v1936 = vld [vmem:[%s1924 + $0x2c] sm:$0xf]
  %v1937 = vpack.c.bf16 %v1921, %v1920
  %v1938 = vpack.c.bf16 %v1923, %v1922
  %s1939 = scalar_lea.vmem %s5, 96
  %v1940 = vld [vmem:[%s1939] sm:$0xff]
  %v1941 = vld [vmem:[%s1939 + $0x8] sm:$0xff]
  %v1942 = vld [vmem:[%s1939 + $0x10] sm:$0xff]
  %v1943 = vld [vmem:[%s1939 + $0x18] sm:$0xff]
  %v1944 = vld [vmem:[%s1939 + $0x20] sm:$0xff]
  %v1945 = vld [vmem:[%s1939 + $0x28] sm:$0xff]
  %v1946 = vld [vmem:[%s1939 + $0x30] sm:$0xff]
  %v1947 = vld [vmem:[%s1939 + $0x38] sm:$0xff]
  %v1948 = vld [vmem:[%s1939 + $0x40] sm:$0xff]
  %v1949 = vld [vmem:[%s1939 + $0x48] sm:$0xff]
  %v1950 = vld [vmem:[%s1939 + $0x50] sm:$0xff]
  %v1951 = vld [vmem:[%s1939 + $0x58] sm:$0xff]
  %1953 = vset.pattern.permute.xlu0 0
  %1954 = vperm.xlu0 %1953, %v1940
  %v1955 = vpop.permute.xlu0 %1954
  %1958 = vset.pattern.permute.xlu0 0
  %1959 = vperm.xlu0 %1958, %v1941
  %v1960 = vpop.permute.xlu0 %1959
  %1963 = vset.pattern.permute.xlu0 0
  %1964 = vperm.xlu0 %1963, %v1942
  %v1965 = vpop.permute.xlu0 %1964
  %1968 = vset.pattern.permute.xlu0 0
  %1969 = vperm.xlu0 %1968, %v1943
  %v1970 = vpop.permute.xlu0 %1969
  %1973 = vset.pattern.permute.xlu0 0
  %1974 = vperm.xlu0 %1973, %v1944
  %v1975 = vpop.permute.xlu0 %1974
  %1978 = vset.pattern.permute.xlu0 0
  %1979 = vperm.xlu0 %1978, %v1945
  %v1980 = vpop.permute.xlu0 %1979
  %1983 = vset.pattern.permute.xlu0 0
  %1984 = vperm.xlu0 %1983, %v1946
  %v1985 = vpop.permute.xlu0 %1984
  %1988 = vset.pattern.permute.xlu0 0
  %1989 = vperm.xlu0 %1988, %v1947
  %v1990 = vpop.permute.xlu0 %1989
  %1993 = vset.pattern.permute.xlu0 0
  %1994 = vperm.xlu0 %1993, %v1948
  %v1995 = vpop.permute.xlu0 %1994
  %1998 = vset.pattern.permute.xlu0 0
  %1999 = vperm.xlu0 %1998, %v1949
  %v2000 = vpop.permute.xlu0 %1999
  %2003 = vset.pattern.permute.xlu0 0
  %2004 = vperm.xlu0 %2003, %v1950
  %v2005 = vpop.permute.xlu0 %2004
  %2008 = vset.pattern.permute.xlu0 0
  %2009 = vperm.xlu0 %2008, %v1951
  %v2010 = vpop.permute.xlu0 %2009
  %v2024 = vunpack.c.l.b16 %v1925
  %v2025 = vunpack.c.l.b16 %v1926
  %v2026 = vunpack.c.l.b16 %v1927
  %v2027 = vunpack.c.l.b16 %v1928
  %v2028 = vunpack.c.l.b16 %v1929
  %v2029 = vunpack.c.l.b16 %v1930
  %v2030 = vunpack.c.l.b16 %v1931
  %v2031 = vunpack.c.l.b16 %v1932
  %v2032 = vunpack.c.l.b16 %v1933
  %v2033 = vunpack.c.l.b16 %v1934
  %v2034 = vunpack.c.l.b16 %v1935
  %v2035 = vunpack.c.l.b16 %v1936
  %v2036 = vpack.c.b16 %v2025, %v2024
  %v2037 = vpack.c.b16 %v2027, %v2026
  %v2038 = vpack.c.b16 %v2029, %v2028
  %v2039 = vpack.c.b16 %v2031, %v2030
  %v2040 = vpack.c.b16 %v2033, %v2032
  %v2041 = vpack.c.b16 %v2035, %v2034
  %v2043 = vsel %vm77, %v2036, 0
  %v2046 = vsel %vm77, %v2037, 0
  %v2049 = vsel %vm77, %v2038, 0
  %v2052 = vsel %vm77, %v2039, 0
  %v2055 = vsel %vm77, %v2040, 0
  %v2058 = vsel %vm77, %v2041, 0
  %2060 = vmatprep.subr.bf16.mxu0 0
  %2061 = vmatpush1.bf16.msra.mxu0 0
  %2062 = vmatprep.subr.bf16.mxu0 0
  %2063 = vmatpush1.bf16.msra.mxu0 0
  %2064 = vmatprep.subr.bf16.mxu0 0
  %2065 = vmatpush1.bf16.msra.mxu0 0
  %2066 = vmatprep.subr.bf16.mxu0 0
  %2067 = vmatpush1.bf16.msra.mxu0 0
  %2068 = vmatprep.subr.bf16.mxu0 0
  %2069 = vmatpush1.bf16.msra.mxu0 0
  %2070 = vmatprep.subr.bf16.mxu0 0
  %2071 = vmatpush1.bf16.msra.mxu0 0
  %2072 = vmatprep.subr.bf16.mxu0 0
  %2073 = vmatpush1.bf16.msra.mxu0 %v1938
  %2074 = vmatprep.subr.bf16.mxu0 0
  %2075 = vmatpush1.bf16.msra.mxu0 %v1937
  %2076 = vmatprep.subr.bf16.mxu0 0
  %2077 = vmatpush2.bf16.msra.mxu0 0
  %2078 = vmatprep.subr.bf16.mxu0 0
  %2079 = vmatpush2.bf16.msra.mxu0 0
  %2080 = vmatprep.subr.bf16.mxu0 0
  %2081 = vmatpush2.bf16.msra.mxu0 0
  %2082 = vmatprep.subr.bf16.mxu0 0
  %2083 = vmatpush2.bf16.msra.mxu0 0
  %2084 = vmatprep.subr.bf16.mxu0 0
  %2085 = vmatpush2.bf16.msra.mxu0 0
  %2086 = vmatprep.subr.bf16.mxu0 0
  %2087 = vmatpush2.bf16.msra.mxu0 0
  %2088 = vmatprep.subr.bf16.mxu0 0
  %2089 = vmatpush2.bf16.msra.mxu0 0
  %2090 = vmatprep.subr.bf16.mxu0 0
  %2091 = vmatpush2.bf16.msra.mxu0 0
  %2092 = vmatprep.mubr.bf16.mxu0 0
  %2093 = vmatmul.mubr.bf16.gmra.mxu0 %v2043
  %v2094 = vpop.f32.mrf.mxu0
  %v2095 = vadd.f32 %v1955, %v2094
  %v2096 = vpop.f32.mrf.mxu0
  %v2097 = vpop.f32.mrf.mxu0
  %v2098 = vadd.f32 %v1960, %v2097
  %v2099 = vpop.f32.mrf.mxu0
  %2100 = vmatprep.mubr.bf16.mxu0 0
  %2101 = vmatmul.mubr.bf16.gmra.mxu0 %v2046
  %v2102 = vpop.f32.mrf.mxu0
  %v2103 = vadd.f32 %v1965, %v2102
  %v2104 = vpop.f32.mrf.mxu0
  %v2105 = vpop.f32.mrf.mxu0
  %v2106 = vadd.f32 %v1970, %v2105
  %v2107 = vpop.f32.mrf.mxu0
  %2108 = vmatprep.mubr.bf16.mxu0 0
  %2109 = vmatmul.mubr.bf16.gmra.mxu0 %v2049
  %v2110 = vpop.f32.mrf.mxu0
  %v2111 = vadd.f32 %v1975, %v2110
  %v2112 = vpop.f32.mrf.mxu0
  %v2113 = vpop.f32.mrf.mxu0
  %v2114 = vadd.f32 %v1980, %v2113
  %v2115 = vpop.f32.mrf.mxu0
  %2116 = vmatprep.mubr.bf16.mxu0 0
  %2117 = vmatmul.mubr.bf16.gmra.mxu0 %v2052
  %v2118 = vpop.f32.mrf.mxu0
  %v2119 = vadd.f32 %v1985, %v2118
  %v2120 = vpop.f32.mrf.mxu0
  %v2121 = vpop.f32.mrf.mxu0
  %v2122 = vadd.f32 %v1990, %v2121
  %v2123 = vpop.f32.mrf.mxu0
  %2124 = vmatprep.mubr.bf16.mxu0 0
  %2125 = vmatmul.mubr.bf16.gmra.mxu0 %v2055
  %v2126 = vpop.f32.mrf.mxu0
  %v2127 = vadd.f32 %v1995, %v2126
  %v2128 = vpop.f32.mrf.mxu0
  %v2129 = vpop.f32.mrf.mxu0
  %v2130 = vadd.f32 %v2000, %v2129
  %v2131 = vpop.f32.mrf.mxu0
  %2132 = vmatprep.mubr.bf16.mxu0 0
  %2133 = vmatmul.mubr.bf16.gmra.mxu0 %v2058
  %v2134 = vpop.f32.mrf.mxu0
  %v2135 = vadd.f32 %v2005, %v2134
  %v2136 = vpop.f32.mrf.mxu0
  %v2137 = vpop.f32.mrf.mxu0
  %v2138 = vadd.f32 %v2010, %v2137
  %v2139 = vpop.f32.mrf.mxu0
  %2140 = vdwg.mxu0
  %v2141 = vpack.c.bf16 %v2095, %v2095
  %v2142 = vpack.c.bf16 %v2111, %v2111
  %v2143 = vpack.c.bf16 %v2127, %v2127
  %2144 = vxpose.xlu0.c.b16.start [1/8] %v2142, 128
  %2145 = vxpose.xlu0.c.b16.cont [2/8] 0, 128
  %2146 = vxpose.xlu0.c.b16.cont [3/8] 0, 128
  %2147 = vxpose.xlu0.c.b16.cont [4/8] 0, 128
  %2148 = vxpose.xlu0.c.b16.cont [5/8] 0, 128
  %2149 = vxpose.xlu0.c.b16.cont [6/8] 0, 128
  %2150 = vxpose.xlu0.c.b16.cont [7/8] 0, 128
  %2151 = vxpose.xlu0.c.b16.end [8/8] 0, 128
  %v2152 = vpop.trf.xlu0
  %v2153 = vpop.trf.xlu0
  %v2154 = vpop.trf.xlu0
  %v2155 = vpop.trf.xlu0
  %v2156 = vpop.trf.xlu0
  %v2157 = vpop.trf.xlu0
  %v2158 = vpop.trf.xlu0
  %v2159 = vpop.trf.xlu0
  %v2161 = vsel %vm387, %v2152, 0
  %v2164 = vsel %vm387, %v2153, 0
  %v2167 = vsel %vm387, %v2154, 0
  %v2170 = vsel %vm387, %v2155, 0
  %v2173 = vsel %vm387, %v2156, 0
  %v2176 = vsel %vm387, %v2157, 0
  %v2179 = vsel %vm387, %v2158, 0
  %v2182 = vsel %vm387, %v2159, 0
  %v2185 = vsel %vm412, %v2141, 0
  %2187 = vmatprep.subr.bf16.mxu0 0
  %2188 = vmatpush1.bf16.msra.mxu0 0
  %2189 = vmatprep.subr.bf16.mxu0 0
  %2190 = vmatpush1.bf16.msra.mxu0 0
  %2191 = vmatprep.subr.bf16.mxu0 0
  %2192 = vmatpush1.bf16.msra.mxu0 0
  %2193 = vmatprep.subr.bf16.mxu0 0
  %2194 = vmatpush1.bf16.msra.mxu0 0
  %2195 = vmatprep.subr.bf16.mxu0 0
  %2196 = vmatpush1.bf16.msra.mxu0 0
  %2197 = vmatprep.subr.bf16.mxu0 0
  %2198 = vmatpush1.bf16.msra.mxu0 0
  %2199 = vmatprep.subr.bf16.mxu0 0
  %2200 = vmatpush1.bf16.msra.mxu0 0
  %2201 = vmatprep.subr.bf16.mxu0 0
  %2202 = vmatpush1.bf16.msra.mxu0 %v2185
  %2203 = vmatprep.subr.bf16.mxu0 0
  %2204 = vmatpush2.bf16.msra.mxu0 0
  %2205 = vmatprep.subr.bf16.mxu0 0
  %2206 = vmatpush2.bf16.msra.mxu0 0
  %2207 = vmatprep.subr.bf16.mxu0 0
  %2208 = vmatpush2.bf16.msra.mxu0 0
  %2209 = vmatprep.subr.bf16.mxu0 0
  %2210 = vmatpush2.bf16.msra.mxu0 0
  %2211 = vmatprep.subr.bf16.mxu0 0
  %2212 = vmatpush2.bf16.msra.mxu0 0
  %2213 = vmatprep.subr.bf16.mxu0 0
  %2214 = vmatpush2.bf16.msra.mxu0 0
  %2215 = vmatprep.subr.bf16.mxu0 0
  %2216 = vmatpush2.bf16.msra.mxu0 0
  %2217 = vmatprep.subr.bf16.mxu0 0
  %2218 = vmatpush2.bf16.msra.mxu0 0
  %2219 = vmatprep.mubr.bf16.mxu0 0
  %2220 = vmatmul.mubr.bf16.gmra.mxu0 %v2161
  %v2221 = vpop.f32.mrf.mxu0
  %v2222 = vadd.f32 %v137, %v2221
  %v2223 = vpop.f32.mrf.mxu0
  %v2224 = vpop.f32.mrf.mxu0
  %v2225 = vadd.f32 %v138, %v2224
  %v2226 = vpop.f32.mrf.mxu0
  %2227 = vmatprep.mubr.bf16.mxu0 0
  %2228 = vmatmul.mubr.bf16.gmra.mxu0 %v2164
  %v2229 = vpop.f32.mrf.mxu0
  %v2230 = vadd.f32 %v139, %v2229
  %v2231 = vpop.f32.mrf.mxu0
  %v2232 = vpop.f32.mrf.mxu0
  %v2233 = vadd.f32 %v140, %v2232
  %v2234 = vpop.f32.mrf.mxu0
  %2235 = vmatprep.mubr.bf16.mxu0 0
  %2236 = vmatmul.mubr.bf16.gmra.mxu0 %v2167
  %v2237 = vpop.f32.mrf.mxu0
  %v2238 = vadd.f32 %v141, %v2237
  %v2239 = vpop.f32.mrf.mxu0
  %v2240 = vpop.f32.mrf.mxu0
  %v2241 = vadd.f32 %v142, %v2240
  %v2242 = vpop.f32.mrf.mxu0
  %2243 = vmatprep.mubr.bf16.mxu0 0
  %2244 = vmatmul.mubr.bf16.gmra.mxu0 %v2170
  %v2245 = vpop.f32.mrf.mxu0
  %v2246 = vadd.f32 %v143, %v2245
  %v2247 = vpop.f32.mrf.mxu0
  %v2248 = vpop.f32.mrf.mxu0
  %v2249 = vadd.f32 %v144, %v2248
  %v2250 = vpop.f32.mrf.mxu0
  %2251 = vmatprep.mubr.bf16.mxu0 0
  %2252 = vmatmul.mubr.bf16.gmra.mxu0 %v2173
  %v2253 = vpop.f32.mrf.mxu0
  %v2254 = vadd.f32 %v145, %v2253
  %v2255 = vpop.f32.mrf.mxu0
  %v2256 = vpop.f32.mrf.mxu0
  %v2257 = vadd.f32 %v146, %v2256
  %v2258 = vpop.f32.mrf.mxu0
  %2259 = vmatprep.mubr.bf16.mxu0 0
  %2260 = vmatmul.mubr.bf16.gmra.mxu0 %v2176
  %v2261 = vpop.f32.mrf.mxu0
  %v2262 = vadd.f32 %v147, %v2261
  %v2263 = vpop.f32.mrf.mxu0
  %v2264 = vpop.f32.mrf.mxu0
  %v2265 = vadd.f32 %v148, %v2264
  %v2266 = vpop.f32.mrf.mxu0
  %2267 = vmatprep.mubr.bf16.mxu0 0
  %2268 = vmatmul.mubr.bf16.gmra.mxu0 %v2179
  %v2269 = vpop.f32.mrf.mxu0
  %v2270 = vadd.f32 %v149, %v2269
  %v2271 = vpop.f32.mrf.mxu0
  %v2272 = vpop.f32.mrf.mxu0
  %v2273 = vadd.f32 %v150, %v2272
  %v2274 = vpop.f32.mrf.mxu0
  %2275 = vmatprep.mubr.bf16.mxu0 0
  %2276 = vmatmul.mubr.bf16.gmra.mxu0 %v2182
  %v2277 = vpop.f32.mrf.mxu0
  %v2278 = vadd.f32 %v151, %v2277
  %v2279 = vpop.f32.mrf.mxu0
  %v2280 = vpop.f32.mrf.mxu0
  %v2281 = vadd.f32 %v152, %v2280
  %v2282 = vpop.f32.mrf.mxu0
  %2283 = vdwg.mxu0
  %v2284 = vmax.f32 %v2222, %v2238
  %v2285 = vmax.f32 %v2225, %v2241
  %v2286 = vmax.f32 %v2230, %v2246
  %v2287 = vmax.f32 %v2233, %v2249
  %v2288 = vmax.f32 %v2284, %v2254
  %v2289 = vmax.f32 %v2285, %v2257
  %v2290 = vmax.f32 %v2286, %v2262
  %v2291 = vmax.f32 %v2287, %v2265
  %v2292 = vmax.f32 %v2288, %v2270
  %v2293 = vmax.f32 %v2289, %v2273
  %v2294 = vmax.f32 %v2290, %v2278
  %v2295 = vmax.f32 %v2291, %v2281
  %v2296 = vmax.f32 %v2292, %v2293
  %v2297 = vmax.f32 %v2294, %v2295
  %v2298 = vmax.f32 %v2296, %v2297
  %v2299 = vrot.slane %v2298, 4
  %v2300 = vmax.f32 %v2298, %v2299
  %v2301 = vrot.slane %v2300, 2
  %v2302 = vmax.f32 %v2300, %v2301
  %v2303 = vrot.slane %v2302, 1
  %v2304 = vmax.f32 %v2302, %v2303
  %v2305 = vsub.f32 %v2222, %v2304
  %v2306 = vsub.f32 %v2225, %v2304
  %v2307 = vsub.f32 %v2230, %v2304
  %v2308 = vsub.f32 %v2233, %v2304
  %v2309 = vsub.f32 %v2238, %v2304
  %v2310 = vsub.f32 %v2241, %v2304
  %v2311 = vsub.f32 %v2246, %v2304
  %v2312 = vsub.f32 %v2249, %v2304
  %v2313 = vsub.f32 %v2254, %v2304
  %v2314 = vsub.f32 %v2257, %v2304
  %v2315 = vsub.f32 %v2262, %v2304
  %v2316 = vsub.f32 %v2265, %v2304
  %v2317 = vsub.f32 %v2270, %v2304
  %v2318 = vsub.f32 %v2273, %v2304
  %v2319 = vsub.f32 %v2278, %v2304
  %v2320 = vsub.f32 %v2281, %v2304
  %v2321 = vmul.f32 %v2305, 1.442695
  %v2322 = vpow.pop %v2321
  %v2323 = vmul.f32 %v2306, 1.442695
  %v2324 = vpow.pop %v2323
  %v2325 = vmul.f32 %v2307, 1.442695
  %v2326 = vpow.pop %v2325
  %v2327 = vmul.f32 %v2308, 1.442695
  %v2328 = vpow.pop %v2327
  %v2329 = vmul.f32 %v2309, 1.442695
  %v2330 = vpow.pop %v2329
  %v2331 = vmul.f32 %v2310, 1.442695
  %v2332 = vpow.pop %v2331
  %v2333 = vmul.f32 %v2311, 1.442695
  %v2334 = vpow.pop %v2333
  %v2335 = vmul.f32 %v2312, 1.442695
  %v2336 = vpow.pop %v2335
  %v2337 = vmul.f32 %v2313, 1.442695
  %v2338 = vpow.pop %v2337
  %v2339 = vmul.f32 %v2314, 1.442695
  %v2340 = vpow.pop %v2339
  %v2341 = vmul.f32 %v2315, 1.442695
  %v2342 = vpow.pop %v2341
  %v2343 = vmul.f32 %v2316, 1.442695
  %v2344 = vpow.pop %v2343
  %v2345 = vmul.f32 %v2317, 1.442695
  %v2346 = vpow.pop %v2345
  %v2347 = vmul.f32 %v2318, 1.442695
  %v2348 = vpow.pop %v2347
  %v2349 = vmul.f32 %v2319, 1.442695
  %v2350 = vpow.pop %v2349
  %v2351 = vmul.f32 %v2320, 1.442695
  %v2352 = vpow.pop %v2351
  %v2353 = vadd.f32 %v2322, %v2324
  %v2354 = vadd.f32 %v2353, %v2326
  %v2355 = vadd.f32 %v2354, %v2328
  %v2356 = vadd.f32 %v2355, %v2330
  %v2357 = vadd.f32 %v2356, %v2332
  %v2358 = vadd.f32 %v2357, %v2334
  %v2359 = vadd.f32 %v2358, %v2336
  %v2360 = vadd.f32 %v2359, %v2338
  %v2361 = vadd.f32 %v2360, %v2340
  %v2362 = vadd.f32 %v2361, %v2342
  %v2363 = vadd.f32 %v2362, %v2344
  %v2364 = vadd.f32 %v2363, %v2346
  %v2365 = vadd.f32 %v2364, %v2348
  %v2366 = vadd.f32 %v2365, %v2350
  %v2367 = vadd.f32 %v2366, %v2352
  %v2368 = vrot.slane %v2367, 4
  %v2369 = vadd.f32 %v2367, %v2368
  %v2370 = vrot.slane %v2369, 2
  %v2371 = vadd.f32 %v2369, %v2370
  %v2372 = vrot.slane %v2371, 1
  %v2373 = vadd.f32 %v2371, %v2372
  %v2374 = vpack.c.bf16 %v2324, %v2322
  %v2375 = vpack.c.bf16 %v2328, %v2326
  %v2376 = vpack.c.bf16 %v2332, %v2330
  %v2377 = vpack.c.bf16 %v2336, %v2334
  %v2378 = vpack.c.bf16 %v2340, %v2338
  %v2379 = vpack.c.bf16 %v2344, %v2342
  %v2380 = vpack.c.bf16 %v2348, %v2346
  %v2381 = vpack.c.bf16 %v2352, %v2350
  %2382 = vmatprep.subr.bf16.mxu0 0
  %2383 = vmatpush1.bf16.msra.mxu0 %v2381
  %2384 = vmatprep.subr.bf16.mxu0 0
  %2385 = vmatpush1.bf16.msra.mxu0 %v2380
  %2386 = vmatprep.subr.bf16.mxu0 0
  %2387 = vmatpush1.bf16.msra.mxu0 %v2379
  %2388 = vmatprep.subr.bf16.mxu0 0
  %2389 = vmatpush1.bf16.msra.mxu0 %v2378
  %2390 = vmatprep.subr.bf16.mxu0 0
  %2391 = vmatpush1.bf16.msra.mxu0 %v2377
  %2392 = vmatprep.subr.bf16.mxu0 0
  %2393 = vmatpush1.bf16.msra.mxu0 %v2376
  %2394 = vmatprep.subr.bf16.mxu0 0
  %2395 = vmatpush1.bf16.msra.mxu0 %v2375
  %2396 = vmatprep.subr.bf16.mxu0 0
  %2397 = vmatpush1.bf16.msra.mxu0 %v2374
  %2398 = vmatprep.subr.bf16.mxu0 0
  %2399 = vmatpush2.bf16.msra.mxu0 0
  %2400 = vmatprep.subr.bf16.mxu0 0
  %2401 = vmatpush2.bf16.msra.mxu0 0
  %2402 = vmatprep.subr.bf16.mxu0 0
  %2403 = vmatpush2.bf16.msra.mxu0 0
  %2404 = vmatprep.subr.bf16.mxu0 0
  %2405 = vmatpush2.bf16.msra.mxu0 0
  %2406 = vmatprep.subr.bf16.mxu0 0
  %2407 = vmatpush2.bf16.msra.mxu0 0
  %2408 = vmatprep.subr.bf16.mxu0 0
  %2409 = vmatpush2.bf16.msra.mxu0 0
  %2410 = vmatprep.subr.bf16.mxu0 0
  %2411 = vmatpush2.bf16.msra.mxu0 0
  %2412 = vmatprep.subr.bf16.mxu0 0
  %2413 = vmatpush2.bf16.msra.mxu0 0
  %2414 = vmatprep.mubr.bf16.mxu0 0
  %2415 = vmatmul.mubr.bf16.gmra.mxu0 %v2143
  %v2416 = vpop.f32.mrf.mxu0
  %v2417 = vadd.f32 0.0, %v2416
  %v2418 = vpop.f32.mrf.mxu0
  %v2419 = vpop.f32.mrf.mxu0
  %v2420 = vpop.f32.mrf.mxu0
  %2421 = vdwg.mxu0
  %v2422 = vrcp.pop %v2373
  %v2423 = vmul.f32 %v2417, %v2422
  %s2424 = scalar_lea.vmem %s6, 16
  %v2425 = vld [vmem:[%s2424] sm:$0xf]
  %v2426 = vpack.c.bf16 %v2423, %v2423
  %v2427 = vpack.c.bf16 %v2098, %v2098
  %v2428 = vpack.c.bf16 %v2114, %v2114
  %v2429 = vpack.c.bf16 %v2130, %v2130
  %2430 = vxpose.xlu0.c.b16.start [1/8] %v2428, 128
  %2431 = vxpose.xlu0.c.b16.cont [2/8] 0, 128
  %2432 = vxpose.xlu0.c.b16.cont [3/8] 0, 128
  %2433 = vxpose.xlu0.c.b16.cont [4/8] 0, 128
  %2434 = vxpose.xlu0.c.b16.cont [5/8] 0, 128
  %2435 = vxpose.xlu0.c.b16.cont [6/8] 0, 128
  %2436 = vxpose.xlu0.c.b16.cont [7/8] 0, 128
  %2437 = vxpose.xlu0.c.b16.end [8/8] 0, 128
  %v2438 = vpop.trf.xlu0
  %v2439 = vpop.trf.xlu0
  %v2440 = vpop.trf.xlu0
  %v2441 = vpop.trf.xlu0
  %v2442 = vpop.trf.xlu0
  %v2443 = vpop.trf.xlu0
  %v2444 = vpop.trf.xlu0
  %v2445 = vpop.trf.xlu0
  %v2447 = vsel %vm387, %v2438, 0
  %v2450 = vsel %vm387, %v2439, 0
  %v2453 = vsel %vm387, %v2440, 0
  %v2456 = vsel %vm387, %v2441, 0
  %v2459 = vsel %vm387, %v2442, 0
  %v2462 = vsel %vm387, %v2443, 0
  %v2465 = vsel %vm387, %v2444, 0
  %v2468 = vsel %vm387, %v2445, 0
  %v2471 = vsel %vm412, %v2427, 0
  %2473 = vmatprep.subr.bf16.mxu0 0
  %2474 = vmatpush1.bf16.msra.mxu0 0
  %2475 = vmatprep.subr.bf16.mxu0 0
  %2476 = vmatpush1.bf16.msra.mxu0 0
  %2477 = vmatprep.subr.bf16.mxu0 0
  %2478 = vmatpush1.bf16.msra.mxu0 0
  %2479 = vmatprep.subr.bf16.mxu0 0
  %2480 = vmatpush1.bf16.msra.mxu0 0
  %2481 = vmatprep.subr.bf16.mxu0 0
  %2482 = vmatpush1.bf16.msra.mxu0 0
  %2483 = vmatprep.subr.bf16.mxu0 0
  %2484 = vmatpush1.bf16.msra.mxu0 0
  %2485 = vmatprep.subr.bf16.mxu0 0
  %2486 = vmatpush1.bf16.msra.mxu0 0
  %2487 = vmatprep.subr.bf16.mxu0 0
  %2488 = vmatpush1.bf16.msra.mxu0 %v2471
  %2489 = vmatprep.subr.bf16.mxu0 0
  %2490 = vmatpush2.bf16.msra.mxu0 0
  %2491 = vmatprep.subr.bf16.mxu0 0
  %2492 = vmatpush2.bf16.msra.mxu0 0
  %2493 = vmatprep.subr.bf16.mxu0 0
  %2494 = vmatpush2.bf16.msra.mxu0 0
  %2495 = vmatprep.subr.bf16.mxu0 0
  %2496 = vmatpush2.bf16.msra.mxu0 0
  %2497 = vmatprep.subr.bf16.mxu0 0
  %2498 = vmatpush2.bf16.msra.mxu0 0
  %2499 = vmatprep.subr.bf16.mxu0 0
  %2500 = vmatpush2.bf16.msra.mxu0 0
  %2501 = vmatprep.subr.bf16.mxu0 0
  %2502 = vmatpush2.bf16.msra.mxu0 0
  %2503 = vmatprep.subr.bf16.mxu0 0
  %2504 = vmatpush2.bf16.msra.mxu0 0
  %2505 = vmatprep.mubr.bf16.mxu0 0
  %2506 = vmatmul.mubr.bf16.gmra.mxu0 %v2447
  %v2507 = vpop.f32.mrf.mxu0
  %v2508 = vadd.f32 %v137, %v2507
  %v2509 = vpop.f32.mrf.mxu0
  %v2510 = vpop.f32.mrf.mxu0
  %v2511 = vadd.f32 %v138, %v2510
  %v2512 = vpop.f32.mrf.mxu0
  %2513 = vmatprep.mubr.bf16.mxu0 0
  %2514 = vmatmul.mubr.bf16.gmra.mxu0 %v2450
  %v2515 = vpop.f32.mrf.mxu0
  %v2516 = vadd.f32 %v139, %v2515
  %v2517 = vpop.f32.mrf.mxu0
  %v2518 = vpop.f32.mrf.mxu0
  %v2519 = vadd.f32 %v140, %v2518
  %v2520 = vpop.f32.mrf.mxu0
  %2521 = vmatprep.mubr.bf16.mxu0 0
  %2522 = vmatmul.mubr.bf16.gmra.mxu0 %v2453
  %v2523 = vpop.f32.mrf.mxu0
  %v2524 = vadd.f32 %v141, %v2523
  %v2525 = vpop.f32.mrf.mxu0
  %v2526 = vpop.f32.mrf.mxu0
  %v2527 = vadd.f32 %v142, %v2526
  %v2528 = vpop.f32.mrf.mxu0
  %2529 = vmatprep.mubr.bf16.mxu0 0
  %2530 = vmatmul.mubr.bf16.gmra.mxu0 %v2456
  %v2531 = vpop.f32.mrf.mxu0
  %v2532 = vadd.f32 %v143, %v2531
  %v2533 = vpop.f32.mrf.mxu0
  %v2534 = vpop.f32.mrf.mxu0
  %v2535 = vadd.f32 %v144, %v2534
  %v2536 = vpop.f32.mrf.mxu0
  %2537 = vmatprep.mubr.bf16.mxu0 0
  %2538 = vmatmul.mubr.bf16.gmra.mxu0 %v2459
  %v2539 = vpop.f32.mrf.mxu0
  %v2540 = vadd.f32 %v145, %v2539
  %v2541 = vpop.f32.mrf.mxu0
  %v2542 = vpop.f32.mrf.mxu0
  %v2543 = vadd.f32 %v146, %v2542
  %v2544 = vpop.f32.mrf.mxu0
  %2545 = vmatprep.mubr.bf16.mxu0 0
  %2546 = vmatmul.mubr.bf16.gmra.mxu0 %v2462
  %v2547 = vpop.f32.mrf.mxu0
  %v2548 = vadd.f32 %v147, %v2547
  %v2549 = vpop.f32.mrf.mxu0
  %v2550 = vpop.f32.mrf.mxu0
  %v2551 = vadd.f32 %v148, %v2550
  %v2552 = vpop.f32.mrf.mxu0
  %2553 = vmatprep.mubr.bf16.mxu0 0
  %2554 = vmatmul.mubr.bf16.gmra.mxu0 %v2465
  %v2555 = vpop.f32.mrf.mxu0
  %v2556 = vadd.f32 %v149, %v2555
  %v2557 = vpop.f32.mrf.mxu0
  %v2558 = vpop.f32.mrf.mxu0
  %v2559 = vadd.f32 %v150, %v2558
  %v2560 = vpop.f32.mrf.mxu0
  %2561 = vmatprep.mubr.bf16.mxu0 0
  %2562 = vmatmul.mubr.bf16.gmra.mxu0 %v2468
  %v2563 = vpop.f32.mrf.mxu0
  %v2564 = vadd.f32 %v151, %v2563
  %v2565 = vpop.f32.mrf.mxu0
  %v2566 = vpop.f32.mrf.mxu0
  %v2567 = vadd.f32 %v152, %v2566
  %v2568 = vpop.f32.mrf.mxu0
  %2569 = vdwg.mxu0
  %v2570 = vmax.f32 %v2508, %v2524
  %v2571 = vmax.f32 %v2511, %v2527
  %v2572 = vmax.f32 %v2516, %v2532
  %v2573 = vmax.f32 %v2519, %v2535
  %v2574 = vmax.f32 %v2570, %v2540
  %v2575 = vmax.f32 %v2571, %v2543
  %v2576 = vmax.f32 %v2572, %v2548
  %v2577 = vmax.f32 %v2573, %v2551
  %v2578 = vmax.f32 %v2574, %v2556
  %v2579 = vmax.f32 %v2575, %v2559
  %v2580 = vmax.f32 %v2576, %v2564
  %v2581 = vmax.f32 %v2577, %v2567
  %v2582 = vmax.f32 %v2578, %v2579
  %v2583 = vmax.f32 %v2580, %v2581
  %v2584 = vmax.f32 %v2582, %v2583
  %v2585 = vrot.slane %v2584, 4
  %v2586 = vmax.f32 %v2584, %v2585
  %v2587 = vrot.slane %v2586, 2
  %v2588 = vmax.f32 %v2586, %v2587
  %v2589 = vrot.slane %v2588, 1
  %v2590 = vmax.f32 %v2588, %v2589
  %v2591 = vsub.f32 %v2508, %v2590
  %v2592 = vsub.f32 %v2511, %v2590
  %v2593 = vsub.f32 %v2516, %v2590
  %v2594 = vsub.f32 %v2519, %v2590
  %v2595 = vsub.f32 %v2524, %v2590
  %v2596 = vsub.f32 %v2527, %v2590
  %v2597 = vsub.f32 %v2532, %v2590
  %v2598 = vsub.f32 %v2535, %v2590
  %v2599 = vsub.f32 %v2540, %v2590
  %v2600 = vsub.f32 %v2543, %v2590
  %v2601 = vsub.f32 %v2548, %v2590
  %v2602 = vsub.f32 %v2551, %v2590
  %v2603 = vsub.f32 %v2556, %v2590
  %v2604 = vsub.f32 %v2559, %v2590
  %v2605 = vsub.f32 %v2564, %v2590
  %v2606 = vsub.f32 %v2567, %v2590
  %v2607 = vmul.f32 %v2591, 1.442695
  %v2608 = vpow.pop %v2607
  %v2609 = vmul.f32 %v2592, 1.442695
  %v2610 = vpow.pop %v2609
  %v2611 = vmul.f32 %v2593, 1.442695
  %v2612 = vpow.pop %v2611
  %v2613 = vmul.f32 %v2594, 1.442695
  %v2614 = vpow.pop %v2613
  %v2615 = vmul.f32 %v2595, 1.442695
  %v2616 = vpow.pop %v2615
  %v2617 = vmul.f32 %v2596, 1.442695
  %v2618 = vpow.pop %v2617
  %v2619 = vmul.f32 %v2597, 1.442695
  %v2620 = vpow.pop %v2619
  %v2621 = vmul.f32 %v2598, 1.442695
  %v2622 = vpow.pop %v2621
  %v2623 = vmul.f32 %v2599, 1.442695
  %v2624 = vpow.pop %v2623
  %v2625 = vmul.f32 %v2600, 1.442695
  %v2626 = vpow.pop %v2625
  %v2627 = vmul.f32 %v2601, 1.442695
  %v2628 = vpow.pop %v2627
  %v2629 = vmul.f32 %v2602, 1.442695
  %v2630 = vpow.pop %v2629
  %v2631 = vmul.f32 %v2603, 1.442695
  %v2632 = vpow.pop %v2631
  %v2633 = vmul.f32 %v2604, 1.442695
  %v2634 = vpow.pop %v2633
  %v2635 = vmul.f32 %v2605, 1.442695
  %v2636 = vpow.pop %v2635
  %v2637 = vmul.f32 %v2606, 1.442695
  %v2638 = vpow.pop %v2637
  %v2639 = vadd.f32 %v2608, %v2610
  %v2640 = vadd.f32 %v2639, %v2612
  %v2641 = vadd.f32 %v2640, %v2614
  %v2642 = vadd.f32 %v2641, %v2616
  %v2643 = vadd.f32 %v2642, %v2618
  %v2644 = vadd.f32 %v2643, %v2620
  %v2645 = vadd.f32 %v2644, %v2622
  %v2646 = vadd.f32 %v2645, %v2624
  %v2647 = vadd.f32 %v2646, %v2626
  %v2648 = vadd.f32 %v2647, %v2628
  %v2649 = vadd.f32 %v2648, %v2630
  %v2650 = vadd.f32 %v2649, %v2632
  %v2651 = vadd.f32 %v2650, %v2634
  %v2652 = vadd.f32 %v2651, %v2636
  %v2653 = vadd.f32 %v2652, %v2638
  %v2654 = vrot.slane %v2653, 4
  %v2655 = vadd.f32 %v2653, %v2654
  %v2656 = vrot.slane %v2655, 2
  %v2657 = vadd.f32 %v2655, %v2656
  %v2658 = vrot.slane %v2657, 1
  %v2659 = vadd.f32 %v2657, %v2658
  %v2660 = vpack.c.bf16 %v2610, %v2608
  %v2661 = vpack.c.bf16 %v2614, %v2612
  %v2662 = vpack.c.bf16 %v2618, %v2616
  %v2663 = vpack.c.bf16 %v2622, %v2620
  %v2664 = vpack.c.bf16 %v2626, %v2624
  %v2665 = vpack.c.bf16 %v2630, %v2628
  %v2666 = vpack.c.bf16 %v2634, %v2632
  %v2667 = vpack.c.bf16 %v2638, %v2636
  %2668 = vmatprep.subr.bf16.mxu0 0
  %2669 = vmatpush1.bf16.msra.mxu0 %v2667
  %2670 = vmatprep.subr.bf16.mxu0 0
  %2671 = vmatpush1.bf16.msra.mxu0 %v2666
  %2672 = vmatprep.subr.bf16.mxu0 0
  %2673 = vmatpush1.bf16.msra.mxu0 %v2665
  %2674 = vmatprep.subr.bf16.mxu0 0
  %2675 = vmatpush1.bf16.msra.mxu0 %v2664
  %2676 = vmatprep.subr.bf16.mxu0 0
  %2677 = vmatpush1.bf16.msra.mxu0 %v2663
  %2678 = vmatprep.subr.bf16.mxu0 0
  %2679 = vmatpush1.bf16.msra.mxu0 %v2662
  %2680 = vmatprep.subr.bf16.mxu0 0
  %2681 = vmatpush1.bf16.msra.mxu0 %v2661
  %2682 = vmatprep.subr.bf16.mxu0 0
  %2683 = vmatpush1.bf16.msra.mxu0 %v2660
  %2684 = vmatprep.subr.bf16.mxu0 0
  %2685 = vmatpush2.bf16.msra.mxu0 0
  %2686 = vmatprep.subr.bf16.mxu0 0
  %2687 = vmatpush2.bf16.msra.mxu0 0
  %2688 = vmatprep.subr.bf16.mxu0 0
  %2689 = vmatpush2.bf16.msra.mxu0 0
  %2690 = vmatprep.subr.bf16.mxu0 0
  %2691 = vmatpush2.bf16.msra.mxu0 0
  %2692 = vmatprep.subr.bf16.mxu0 0
  %2693 = vmatpush2.bf16.msra.mxu0 0
  %2694 = vmatprep.subr.bf16.mxu0 0
  %2695 = vmatpush2.bf16.msra.mxu0 0
  %2696 = vmatprep.subr.bf16.mxu0 0
  %2697 = vmatpush2.bf16.msra.mxu0 0
  %2698 = vmatprep.subr.bf16.mxu0 0
  %2699 = vmatpush2.bf16.msra.mxu0 0
  %2700 = vmatprep.mubr.bf16.mxu0 0
  %2701 = vmatmul.mubr.bf16.gmra.mxu0 %v2429
  %v2702 = vpop.f32.mrf.mxu0
  %v2703 = vadd.f32 0.0, %v2702
  %v2704 = vpop.f32.mrf.mxu0
  %v2705 = vpop.f32.mrf.mxu0
  %v2706 = vpop.f32.mrf.mxu0
  %2707 = vdwg.mxu0
  %v2708 = vrcp.pop %v2659
  %v2709 = vmul.f32 %v2703, %v2708
  %s2710 = scalar_lea.vmem %s6, 20
  %v2711 = vld [vmem:[%s2710] sm:$0xf]
  %v2712 = vpack.c.bf16 %v2709, %v2709
  %2713 = vxpose.xlu0.c.b16.start [1/8] %v2711, 128
  %2714 = vxpose.xlu0.c.b16.cont [2/8] 0, 128
  %2715 = vxpose.xlu0.c.b16.cont [3/8] 0, 128
  %2716 = vxpose.xlu0.c.b16.cont [4/8] 0, 128
  %2717 = vxpose.xlu0.c.b16.cont [5/8] 0, 128
  %2718 = vxpose.xlu0.c.b16.cont [6/8] 0, 128
  %2719 = vxpose.xlu0.c.b16.cont [7/8] 0, 128
  %2720 = vxpose.xlu0.c.b16.end [8/8] 0, 128
  %v2721 = vpop.trf.xlu0
  %v2722 = vpop.trf.xlu0
  %v2723 = vpop.trf.xlu0
  %v2724 = vpop.trf.xlu0
  %v2725 = vpop.trf.xlu0
  %v2726 = vpop.trf.xlu0
  %v2727 = vpop.trf.xlu0
  %v2728 = vpop.trf.xlu0
  %v2730 = vsel %vm387, %v2721, 0
  %v2733 = vsel %vm387, %v2722, 0
  %v2736 = vsel %vm412, %v2712, 0
  %2738 = vmatprep.subr.bf16.mxu0 0
  %2739 = vmatpush1.bf16.msra.mxu0 0
  %2740 = vmatprep.subr.bf16.mxu0 0
  %2741 = vmatpush1.bf16.msra.mxu0 0
  %2742 = vmatprep.subr.bf16.mxu0 0
  %2743 = vmatpush1.bf16.msra.mxu0 0
  %2744 = vmatprep.subr.bf16.mxu0 0
  %2745 = vmatpush1.bf16.msra.mxu0 0
  %2746 = vmatprep.subr.bf16.mxu0 0
  %2747 = vmatpush1.bf16.msra.mxu0 0
  %2748 = vmatprep.subr.bf16.mxu0 0
  %2749 = vmatpush1.bf16.msra.mxu0 0
  %2750 = vmatprep.subr.bf16.mxu0 0
  %2751 = vmatpush1.bf16.msra.mxu0 0
  %2752 = vmatprep.subr.bf16.mxu0 0
  %2753 = vmatpush1.bf16.msra.mxu0 %v2736
  %2754 = vmatprep.subr.bf16.mxu0 0
  %2755 = vmatpush2.bf16.msra.mxu0 0
  %2756 = vmatprep.subr.bf16.mxu0 0
  %2757 = vmatpush2.bf16.msra.mxu0 0
  %2758 = vmatprep.subr.bf16.mxu0 0
  %2759 = vmatpush2.bf16.msra.mxu0 0
  %2760 = vmatprep.subr.bf16.mxu0 0
  %2761 = vmatpush2.bf16.msra.mxu0 0
  %2762 = vmatprep.subr.bf16.mxu0 0
  %2763 = vmatpush2.bf16.msra.mxu0 0
  %2764 = vmatprep.subr.bf16.mxu0 0
  %2765 = vmatpush2.bf16.msra.mxu0 0
  %2766 = vmatprep.subr.bf16.mxu0 0
  %2767 = vmatpush2.bf16.msra.mxu0 0
  %2768 = vmatprep.subr.bf16.mxu0 0
  %2769 = vmatpush2.bf16.msra.mxu0 0
  %2770 = vmatprep.mubr.bf16.mxu0 0
  %2771 = vmatmul.mubr.bf16.gmra.mxu0 %v2730
  %v2772 = vpop.f32.mrf.mxu0
  %v2773 = vadd.f32 0.0, %v2772
  %v2774 = vpop.f32.mrf.mxu0
  %v2775 = vpop.f32.mrf.mxu0
  %v2776 = vadd.f32 0.0, %v2775
  %v2777 = vpop.f32.mrf.mxu0
  %2778 = vmatprep.mubr.bf16.mxu0 0
  %2779 = vmatmul.mubr.bf16.gmra.mxu0 %v2733
  %v2780 = vpop.f32.mrf.mxu0
  %v2781 = vadd.f32 0.0, %v2780
  %v2782 = vpop.f32.mrf.mxu0
  %v2783 = vpop.f32.mrf.mxu0
  %v2784 = vadd.f32 0.0, %v2783
  %v2785 = vpop.f32.mrf.mxu0
  %2786 = vdwg.mxu0
  %2787 = vxpose.xlu0.c.b16.start [1/8] %v2425, 128
  %2788 = vxpose.xlu0.c.b16.cont [2/8] 0, 128
  %2789 = vxpose.xlu0.c.b16.cont [3/8] 0, 128
  %2790 = vxpose.xlu0.c.b16.cont [4/8] 0, 128
  %2791 = vxpose.xlu0.c.b16.cont [5/8] 0, 128
  %2792 = vxpose.xlu0.c.b16.cont [6/8] 0, 128
  %2793 = vxpose.xlu0.c.b16.cont [7/8] 0, 128
  %2794 = vxpose.xlu0.c.b16.end [8/8] 0, 128
  %v2795 = vpop.trf.xlu0
  %v2796 = vpop.trf.xlu0
  %v2797 = vpop.trf.xlu0
  %v2798 = vpop.trf.xlu0
  %v2799 = vpop.trf.xlu0
  %v2800 = vpop.trf.xlu0
  %v2801 = vpop.trf.xlu0
  %v2802 = vpop.trf.xlu0
  %v2804 = vsel %vm387, %v2795, 0
  %v2807 = vsel %vm387, %v2796, 0
  %v2810 = vsel %vm412, %v2426, 0
  %2812 = vmatprep.subr.bf16.mxu0 0
  %2813 = vmatpush1.bf16.msra.mxu0 0
  %2814 = vmatprep.subr.bf16.mxu0 0
  %2815 = vmatpush1.bf16.msra.mxu0 0
  %2816 = vmatprep.subr.bf16.mxu0 0
  %2817 = vmatpush1.bf16.msra.mxu0 0
  %2818 = vmatprep.subr.bf16.mxu0 0
  %2819 = vmatpush1.bf16.msra.mxu0 0
  %2820 = vmatprep.subr.bf16.mxu0 0
  %2821 = vmatpush1.bf16.msra.mxu0 0
  %2822 = vmatprep.subr.bf16.mxu0 0
  %2823 = vmatpush1.bf16.msra.mxu0 0
  %2824 = vmatprep.subr.bf16.mxu0 0
  %2825 = vmatpush1.bf16.msra.mxu0 0
  %2826 = vmatprep.subr.bf16.mxu0 0
  %2827 = vmatpush1.bf16.msra.mxu0 %v2810
  %2828 = vmatprep.subr.bf16.mxu0 0
  %2829 = vmatpush2.bf16.msra.mxu0 0
  %2830 = vmatprep.subr.bf16.mxu0 0
  %2831 = vmatpush2.bf16.msra.mxu0 0
  %2832 = vmatprep.subr.bf16.mxu0 0
  %2833 = vmatpush2.bf16.msra.mxu0 0
  %2834 = vmatprep.subr.bf16.mxu0 0
  %2835 = vmatpush2.bf16.msra.mxu0 0
  %2836 = vmatprep.subr.bf16.mxu0 0
  %2837 = vmatpush2.bf16.msra.mxu0 0
  %2838 = vmatprep.subr.bf16.mxu0 0
  %2839 = vmatpush2.bf16.msra.mxu0 0
  %2840 = vmatprep.subr.bf16.mxu0 0
  %2841 = vmatpush2.bf16.msra.mxu0 0
  %2842 = vmatprep.subr.bf16.mxu0 0
  %2843 = vmatpush2.bf16.msra.mxu0 0
  %2844 = vmatprep.mubr.bf16.mxu0 0
  %2845 = vmatmul.mubr.bf16.gmra.mxu0 %v2804
  %v2846 = vpop.f32.mrf.mxu0
  %v2847 = vadd.f32 %v2773, %v2846
  %v2848 = vpop.f32.mrf.mxu0
  %v2849 = vpop.f32.mrf.mxu0
  %v2850 = vadd.f32 %v2776, %v2849
  %v2851 = vpop.f32.mrf.mxu0
  %2852 = vmatprep.mubr.bf16.mxu0 0
  %2853 = vmatmul.mubr.bf16.gmra.mxu0 %v2807
  %v2854 = vpop.f32.mrf.mxu0
  %v2855 = vadd.f32 %v2781, %v2854
  %v2856 = vpop.f32.mrf.mxu0
  %v2857 = vpop.f32.mrf.mxu0
  %v2858 = vadd.f32 %v2784, %v2857
  %v2859 = vpop.f32.mrf.mxu0
  %2860 = vdwg.mxu0
  %v2861 = vpack.c.bf16 %v2103, %v2103
  %v2862 = vpack.c.bf16 %v2119, %v2119
  %v2863 = vpack.c.bf16 %v2135, %v2135
  %2864 = vxpose.xlu0.c.b16.start [1/8] %v2862, 128
  %2865 = vxpose.xlu0.c.b16.cont [2/8] 0, 128
  %2866 = vxpose.xlu0.c.b16.cont [3/8] 0, 128
  %2867 = vxpose.xlu0.c.b16.cont [4/8] 0, 128
  %2868 = vxpose.xlu0.c.b16.cont [5/8] 0, 128
  %2869 = vxpose.xlu0.c.b16.cont [6/8] 0, 128
  %2870 = vxpose.xlu0.c.b16.cont [7/8] 0, 128
  %2871 = vxpose.xlu0.c.b16.end [8/8] 0, 128
  %v2872 = vpop.trf.xlu0
  %v2873 = vpop.trf.xlu0
  %v2874 = vpop.trf.xlu0
  %v2875 = vpop.trf.xlu0
  %v2876 = vpop.trf.xlu0
  %v2877 = vpop.trf.xlu0
  %v2878 = vpop.trf.xlu0
  %v2879 = vpop.trf.xlu0
  %v2881 = vsel %vm387, %v2872, 0
  %v2884 = vsel %vm387, %v2873, 0
  %v2887 = vsel %vm387, %v2874, 0
  %v2890 = vsel %vm387, %v2875, 0
  %v2893 = vsel %vm387, %v2876, 0
  %v2896 = vsel %vm387, %v2877, 0
  %v2899 = vsel %vm387, %v2878, 0
  %v2902 = vsel %vm387, %v2879, 0
  %v2905 = vsel %vm412, %v2861, 0
  %2907 = vmatprep.subr.bf16.mxu0 0
  %2908 = vmatpush1.bf16.msra.mxu0 0
  %2909 = vmatprep.subr.bf16.mxu0 0
  %2910 = vmatpush1.bf16.msra.mxu0 0
  %2911 = vmatprep.subr.bf16.mxu0 0
  %2912 = vmatpush1.bf16.msra.mxu0 0
  %2913 = vmatprep.subr.bf16.mxu0 0
  %2914 = vmatpush1.bf16.msra.mxu0 0
  %2915 = vmatprep.subr.bf16.mxu0 0
  %2916 = vmatpush1.bf16.msra.mxu0 0
  %2917 = vmatprep.subr.bf16.mxu0 0
  %2918 = vmatpush1.bf16.msra.mxu0 0
  %2919 = vmatprep.subr.bf16.mxu0 0
  %2920 = vmatpush1.bf16.msra.mxu0 0
  %2921 = vmatprep.subr.bf16.mxu0 0
  %2922 = vmatpush1.bf16.msra.mxu0 %v2905
  %2923 = vmatprep.subr.bf16.mxu0 0
  %2924 = vmatpush2.bf16.msra.mxu0 0
  %2925 = vmatprep.subr.bf16.mxu0 0
  %2926 = vmatpush2.bf16.msra.mxu0 0
  %2927 = vmatprep.subr.bf16.mxu0 0
  %2928 = vmatpush2.bf16.msra.mxu0 0
  %2929 = vmatprep.subr.bf16.mxu0 0
  %2930 = vmatpush2.bf16.msra.mxu0 0
  %2931 = vmatprep.subr.bf16.mxu0 0
  %2932 = vmatpush2.bf16.msra.mxu0 0
  %2933 = vmatprep.subr.bf16.mxu0 0
  %2934 = vmatpush2.bf16.msra.mxu0 0
  %2935 = vmatprep.subr.bf16.mxu0 0
  %2936 = vmatpush2.bf16.msra.mxu0 0
  %2937 = vmatprep.subr.bf16.mxu0 0
  %2938 = vmatpush2.bf16.msra.mxu0 0
  %2939 = vmatprep.mubr.bf16.mxu0 0
  %2940 = vmatmul.mubr.bf16.gmra.mxu0 %v2881
  %v2941 = vpop.f32.mrf.mxu0
  %v2942 = vadd.f32 %v137, %v2941
  %v2943 = vpop.f32.mrf.mxu0
  %v2944 = vpop.f32.mrf.mxu0
  %v2945 = vadd.f32 %v138, %v2944
  %v2946 = vpop.f32.mrf.mxu0
  %2947 = vmatprep.mubr.bf16.mxu0 0
  %2948 = vmatmul.mubr.bf16.gmra.mxu0 %v2884
  %v2949 = vpop.f32.mrf.mxu0
  %v2950 = vadd.f32 %v139, %v2949
  %v2951 = vpop.f32.mrf.mxu0
  %v2952 = vpop.f32.mrf.mxu0
  %v2953 = vadd.f32 %v140, %v2952
  %v2954 = vpop.f32.mrf.mxu0
  %2955 = vmatprep.mubr.bf16.mxu0 0
  %2956 = vmatmul.mubr.bf16.gmra.mxu0 %v2887
  %v2957 = vpop.f32.mrf.mxu0
  %v2958 = vadd.f32 %v141, %v2957
  %v2959 = vpop.f32.mrf.mxu0
  %v2960 = vpop.f32.mrf.mxu0
  %v2961 = vadd.f32 %v142, %v2960
  %v2962 = vpop.f32.mrf.mxu0
  %2963 = vmatprep.mubr.bf16.mxu0 0
  %2964 = vmatmul.mubr.bf16.gmra.mxu0 %v2890
  %v2965 = vpop.f32.mrf.mxu0
  %v2966 = vadd.f32 %v143, %v2965
  %v2967 = vpop.f32.mrf.mxu0
  %v2968 = vpop.f32.mrf.mxu0
  %v2969 = vadd.f32 %v144, %v2968
  %v2970 = vpop.f32.mrf.mxu0
  %2971 = vmatprep.mubr.bf16.mxu0 0
  %2972 = vmatmul.mubr.bf16.gmra.mxu0 %v2893
  %v2973 = vpop.f32.mrf.mxu0
  %v2974 = vadd.f32 %v145, %v2973
  %v2975 = vpop.f32.mrf.mxu0
  %v2976 = vpop.f32.mrf.mxu0
  %v2977 = vadd.f32 %v146, %v2976
  %v2978 = vpop.f32.mrf.mxu0
  %2979 = vmatprep.mubr.bf16.mxu0 0
  %2980 = vmatmul.mubr.bf16.gmra.mxu0 %v2896
  %v2981 = vpop.f32.mrf.mxu0
  %v2982 = vadd.f32 %v147, %v2981
  %v2983 = vpop.f32.mrf.mxu0
  %v2984 = vpop.f32.mrf.mxu0
  %v2985 = vadd.f32 %v148, %v2984
  %v2986 = vpop.f32.mrf.mxu0
  %2987 = vmatprep.mubr.bf16.mxu0 0
  %2988 = vmatmul.mubr.bf16.gmra.mxu0 %v2899
  %v2989 = vpop.f32.mrf.mxu0
  %v2990 = vadd.f32 %v149, %v2989
  %v2991 = vpop.f32.mrf.mxu0
  %v2992 = vpop.f32.mrf.mxu0
  %v2993 = vadd.f32 %v150, %v2992
  %v2994 = vpop.f32.mrf.mxu0
  %2995 = vmatprep.mubr.bf16.mxu0 0
  %2996 = vmatmul.mubr.bf16.gmra.mxu0 %v2902
  %v2997 = vpop.f32.mrf.mxu0
  %v2998 = vadd.f32 %v151, %v2997
  %v2999 = vpop.f32.mrf.mxu0
  %v3000 = vpop.f32.mrf.mxu0
  %v3001 = vadd.f32 %v152, %v3000
  %v3002 = vpop.f32.mrf.mxu0
  %3003 = vdwg.mxu0
  %v3004 = vmax.f32 %v2942, %v2958
  %v3005 = vmax.f32 %v2945, %v2961
  %v3006 = vmax.f32 %v2950, %v2966
  %v3007 = vmax.f32 %v2953, %v2969
  %v3008 = vmax.f32 %v3004, %v2974
  %v3009 = vmax.f32 %v3005, %v2977
  %v3010 = vmax.f32 %v3006, %v2982
  %v3011 = vmax.f32 %v3007, %v2985
  %v3012 = vmax.f32 %v3008, %v2990
  %v3013 = vmax.f32 %v3009, %v2993
  %v3014 = vmax.f32 %v3010, %v2998
  %v3015 = vmax.f32 %v3011, %v3001
  %v3016 = vmax.f32 %v3012, %v3013
  %v3017 = vmax.f32 %v3014, %v3015
  %v3018 = vmax.f32 %v3016, %v3017
  %v3019 = vrot.slane %v3018, 4
  %v3020 = vmax.f32 %v3018, %v3019
  %v3021 = vrot.slane %v3020, 2
  %v3022 = vmax.f32 %v3020, %v3021
  %v3023 = vrot.slane %v3022, 1
  %v3024 = vmax.f32 %v3022, %v3023
  %v3025 = vsub.f32 %v2942, %v3024
  %v3026 = vsub.f32 %v2945, %v3024
  %v3027 = vsub.f32 %v2950, %v3024
  %v3028 = vsub.f32 %v2953, %v3024
  %v3029 = vsub.f32 %v2958, %v3024
  %v3030 = vsub.f32 %v2961, %v3024
  %v3031 = vsub.f32 %v2966, %v3024
  %v3032 = vsub.f32 %v2969, %v3024
  %v3033 = vsub.f32 %v2974, %v3024
  %v3034 = vsub.f32 %v2977, %v3024
  %v3035 = vsub.f32 %v2982, %v3024
  %v3036 = vsub.f32 %v2985, %v3024
  %v3037 = vsub.f32 %v2990, %v3024
  %v3038 = vsub.f32 %v2993, %v3024
  %v3039 = vsub.f32 %v2998, %v3024
  %v3040 = vsub.f32 %v3001, %v3024
  %v3041 = vmul.f32 %v3025, 1.442695
  %v3042 = vpow.pop %v3041
  %v3043 = vmul.f32 %v3026, 1.442695
  %v3044 = vpow.pop %v3043
  %v3045 = vmul.f32 %v3027, 1.442695
  %v3046 = vpow.pop %v3045
  %v3047 = vmul.f32 %v3028, 1.442695
  %v3048 = vpow.pop %v3047
  %v3049 = vmul.f32 %v3029, 1.442695
  %v3050 = vpow.pop %v3049
  %v3051 = vmul.f32 %v3030, 1.442695
  %v3052 = vpow.pop %v3051
  %v3053 = vmul.f32 %v3031, 1.442695
  %v3054 = vpow.pop %v3053
  %v3055 = vmul.f32 %v3032, 1.442695
  %v3056 = vpow.pop %v3055
  %v3057 = vmul.f32 %v3033, 1.442695
  %v3058 = vpow.pop %v3057
  %v3059 = vmul.f32 %v3034, 1.442695
  %v3060 = vpow.pop %v3059
  %v3061 = vmul.f32 %v3035, 1.442695
  %v3062 = vpow.pop %v3061
  %v3063 = vmul.f32 %v3036, 1.442695
  %v3064 = vpow.pop %v3063
  %v3065 = vmul.f32 %v3037, 1.442695
  %v3066 = vpow.pop %v3065
  %v3067 = vmul.f32 %v3038, 1.442695
  %v3068 = vpow.pop %v3067
  %v3069 = vmul.f32 %v3039, 1.442695
  %v3070 = vpow.pop %v3069
  %v3071 = vmul.f32 %v3040, 1.442695
  %v3072 = vpow.pop %v3071
  %v3073 = vadd.f32 %v3042, %v3044
  %v3074 = vadd.f32 %v3073, %v3046
  %v3075 = vadd.f32 %v3074, %v3048
  %v3076 = vadd.f32 %v3075, %v3050
  %v3077 = vadd.f32 %v3076, %v3052
  %v3078 = vadd.f32 %v3077, %v3054
  %v3079 = vadd.f32 %v3078, %v3056
  %v3080 = vadd.f32 %v3079, %v3058
  %v3081 = vadd.f32 %v3080, %v3060
  %v3082 = vadd.f32 %v3081, %v3062
  %v3083 = vadd.f32 %v3082, %v3064
  %v3084 = vadd.f32 %v3083, %v3066
  %v3085 = vadd.f32 %v3084, %v3068
  %v3086 = vadd.f32 %v3085, %v3070
  %v3087 = vadd.f32 %v3086, %v3072
  %v3088 = vrot.slane %v3087, 4
  %v3089 = vadd.f32 %v3087, %v3088
  %v3090 = vrot.slane %v3089, 2
  %v3091 = vadd.f32 %v3089, %v3090
  %v3092 = vrot.slane %v3091, 1
  %v3093 = vadd.f32 %v3091, %v3092
  %v3094 = vpack.c.bf16 %v3044, %v3042
  %v3095 = vpack.c.bf16 %v3048, %v3046
  %v3096 = vpack.c.bf16 %v3052, %v3050
  %v3097 = vpack.c.bf16 %v3056, %v3054
  %v3098 = vpack.c.bf16 %v3060, %v3058
  %v3099 = vpack.c.bf16 %v3064, %v3062
  %v3100 = vpack.c.bf16 %v3068, %v3066
  %v3101 = vpack.c.bf16 %v3072, %v3070
  %3102 = vmatprep.subr.bf16.mxu0 0
  %3103 = vmatpush1.bf16.msra.mxu0 %v3101
  %3104 = vmatprep.subr.bf16.mxu0 0
  %3105 = vmatpush1.bf16.msra.mxu0 %v3100
  %3106 = vmatprep.subr.bf16.mxu0 0
  %3107 = vmatpush1.bf16.msra.mxu0 %v3099
  %3108 = vmatprep.subr.bf16.mxu0 0
  %3109 = vmatpush1.bf16.msra.mxu0 %v3098
  %3110 = vmatprep.subr.bf16.mxu0 0
  %3111 = vmatpush1.bf16.msra.mxu0 %v3097
  %3112 = vmatprep.subr.bf16.mxu0 0
  %3113 = vmatpush1.bf16.msra.mxu0 %v3096
  %3114 = vmatprep.subr.bf16.mxu0 0
  %3115 = vmatpush1.bf16.msra.mxu0 %v3095
  %3116 = vmatprep.subr.bf16.mxu0 0
  %3117 = vmatpush1.bf16.msra.mxu0 %v3094
  %3118 = vmatprep.subr.bf16.mxu0 0
  %3119 = vmatpush2.bf16.msra.mxu0 0
  %3120 = vmatprep.subr.bf16.mxu0 0
  %3121 = vmatpush2.bf16.msra.mxu0 0
  %3122 = vmatprep.subr.bf16.mxu0 0
  %3123 = vmatpush2.bf16.msra.mxu0 0
  %3124 = vmatprep.subr.bf16.mxu0 0
  %3125 = vmatpush2.bf16.msra.mxu0 0
  %3126 = vmatprep.subr.bf16.mxu0 0
  %3127 = vmatpush2.bf16.msra.mxu0 0
  %3128 = vmatprep.subr.bf16.mxu0 0
  %3129 = vmatpush2.bf16.msra.mxu0 0
  %3130 = vmatprep.subr.bf16.mxu0 0
  %3131 = vmatpush2.bf16.msra.mxu0 0
  %3132 = vmatprep.subr.bf16.mxu0 0
  %3133 = vmatpush2.bf16.msra.mxu0 0
  %3134 = vmatprep.mubr.bf16.mxu0 0
  %3135 = vmatmul.mubr.bf16.gmra.mxu0 %v2863
  %v3136 = vpop.f32.mrf.mxu0
  %v3137 = vadd.f32 0.0, %v3136
  %v3138 = vpop.f32.mrf.mxu0
  %v3139 = vpop.f32.mrf.mxu0
  %v3140 = vpop.f32.mrf.mxu0
  %3141 = vdwg.mxu0
  %v3142 = vrcp.pop %v3093
  %v3143 = vmul.f32 %v3137, %v3142
  %s3144 = scalar_lea.vmem %s6, 24
  %v3145 = vld [vmem:[%s3144] sm:$0xf]
  %v3146 = vpack.c.bf16 %v3143, %v3143
  %3147 = vxpose.xlu0.c.b16.start [1/8] %v3145, 128
  %3148 = vxpose.xlu0.c.b16.cont [2/8] 0, 128
  %3149 = vxpose.xlu0.c.b16.cont [3/8] 0, 128
  %3150 = vxpose.xlu0.c.b16.cont [4/8] 0, 128
  %3151 = vxpose.xlu0.c.b16.cont [5/8] 0, 128
  %3152 = vxpose.xlu0.c.b16.cont [6/8] 0, 128
  %3153 = vxpose.xlu0.c.b16.cont [7/8] 0, 128
  %3154 = vxpose.xlu0.c.b16.end [8/8] 0, 128
  %v3155 = vpop.trf.xlu0
  %v3156 = vpop.trf.xlu0
  %v3157 = vpop.trf.xlu0
  %v3158 = vpop.trf.xlu0
  %v3159 = vpop.trf.xlu0
  %v3160 = vpop.trf.xlu0
  %v3161 = vpop.trf.xlu0
  %v3162 = vpop.trf.xlu0
  %v3164 = vsel %vm387, %v3155, 0
  %v3167 = vsel %vm387, %v3156, 0
  %v3170 = vsel %vm412, %v3146, 0
  %3172 = vmatprep.subr.bf16.mxu0 0
  %3173 = vmatpush1.bf16.msra.mxu0 0
  %3174 = vmatprep.subr.bf16.mxu0 0
  %3175 = vmatpush1.bf16.msra.mxu0 0
  %3176 = vmatprep.subr.bf16.mxu0 0
  %3177 = vmatpush1.bf16.msra.mxu0 0
  %3178 = vmatprep.subr.bf16.mxu0 0
  %3179 = vmatpush1.bf16.msra.mxu0 0
  %3180 = vmatprep.subr.bf16.mxu0 0
  %3181 = vmatpush1.bf16.msra.mxu0 0
  %3182 = vmatprep.subr.bf16.mxu0 0
  %3183 = vmatpush1.bf16.msra.mxu0 0
  %3184 = vmatprep.subr.bf16.mxu0 0
  %3185 = vmatpush1.bf16.msra.mxu0 0
  %3186 = vmatprep.subr.bf16.mxu0 0
  %3187 = vmatpush1.bf16.msra.mxu0 %v3170
  %3188 = vmatprep.subr.bf16.mxu0 0
  %3189 = vmatpush2.bf16.msra.mxu0 0
  %3190 = vmatprep.subr.bf16.mxu0 0
  %3191 = vmatpush2.bf16.msra.mxu0 0
  %3192 = vmatprep.subr.bf16.mxu0 0
  %3193 = vmatpush2.bf16.msra.mxu0 0
  %3194 = vmatprep.subr.bf16.mxu0 0
  %3195 = vmatpush2.bf16.msra.mxu0 0
  %3196 = vmatprep.subr.bf16.mxu0 0
  %3197 = vmatpush2.bf16.msra.mxu0 0
  %3198 = vmatprep.subr.bf16.mxu0 0
  %3199 = vmatpush2.bf16.msra.mxu0 0
  %3200 = vmatprep.subr.bf16.mxu0 0
  %3201 = vmatpush2.bf16.msra.mxu0 0
  %3202 = vmatprep.subr.bf16.mxu0 0
  %3203 = vmatpush2.bf16.msra.mxu0 0
  %3204 = vmatprep.mubr.bf16.mxu0 0
  %3205 = vmatmul.mubr.bf16.gmra.mxu0 %v3164
  %v3206 = vpop.f32.mrf.mxu0
  %v3207 = vadd.f32 0.0, %v3206
  %v3208 = vpop.f32.mrf.mxu0
  %v3209 = vpop.f32.mrf.mxu0
  %v3210 = vadd.f32 0.0, %v3209
  %v3211 = vpop.f32.mrf.mxu0
  %3212 = vmatprep.mubr.bf16.mxu0 0
  %3213 = vmatmul.mubr.bf16.gmra.mxu0 %v3167
  %v3214 = vpop.f32.mrf.mxu0
  %v3215 = vadd.f32 0.0, %v3214
  %v3216 = vpop.f32.mrf.mxu0
  %v3217 = vpop.f32.mrf.mxu0
  %v3218 = vadd.f32 0.0, %v3217
  %v3219 = vpop.f32.mrf.mxu0
  %3220 = vdwg.mxu0
  %v3221 = vadd.f32 %v2847, %v3207
  %v3222 = vadd.f32 %v2850, %v3210
  %v3223 = vadd.f32 %v2855, %v3215
  %v3224 = vadd.f32 %v2858, %v3218
  %v3225 = vpack.c.bf16 %v2106, %v2106
  %v3226 = vpack.c.bf16 %v2122, %v2122
  %v3227 = vpack.c.bf16 %v2138, %v2138
  %3228 = vxpose.xlu0.c.b16.start [1/8] %v3226, 128
  %3229 = vxpose.xlu0.c.b16.cont [2/8] 0, 128
  %3230 = vxpose.xlu0.c.b16.cont [3/8] 0, 128
  %3231 = vxpose.xlu0.c.b16.cont [4/8] 0, 128
  %3232 = vxpose.xlu0.c.b16.cont [5/8] 0, 128
  %3233 = vxpose.xlu0.c.b16.cont [6/8] 0, 128
  %3234 = vxpose.xlu0.c.b16.cont [7/8] 0, 128
  %3235 = vxpose.xlu0.c.b16.end [8/8] 0, 128
  %v3236 = vpop.trf.xlu0
  %v3237 = vpop.trf.xlu0
  %v3238 = vpop.trf.xlu0
  %v3239 = vpop.trf.xlu0
  %v3240 = vpop.trf.xlu0
  %v3241 = vpop.trf.xlu0
  %v3242 = vpop.trf.xlu0
  %v3243 = vpop.trf.xlu0
  %v3245 = vsel %vm387, %v3236, 0
  %v3248 = vsel %vm387, %v3237, 0
  %v3251 = vsel %vm387, %v3238, 0
  %v3254 = vsel %vm387, %v3239, 0
  %v3257 = vsel %vm387, %v3240, 0
  %v3260 = vsel %vm387, %v3241, 0
  %v3263 = vsel %vm387, %v3242, 0
  %v3266 = vsel %vm387, %v3243, 0
  %v3269 = vsel %vm412, %v3225, 0
  %3271 = vmatprep.subr.bf16.mxu0 0
  %3272 = vmatpush1.bf16.msra.mxu0 0
  %3273 = vmatprep.subr.bf16.mxu0 0
  %3274 = vmatpush1.bf16.msra.mxu0 0
  %3275 = vmatprep.subr.bf16.mxu0 0
  %3276 = vmatpush1.bf16.msra.mxu0 0
  %3277 = vmatprep.subr.bf16.mxu0 0
  %3278 = vmatpush1.bf16.msra.mxu0 0
  %3279 = vmatprep.subr.bf16.mxu0 0
  %3280 = vmatpush1.bf16.msra.mxu0 0
  %3281 = vmatprep.subr.bf16.mxu0 0
  %3282 = vmatpush1.bf16.msra.mxu0 0
  %3283 = vmatprep.subr.bf16.mxu0 0
  %3284 = vmatpush1.bf16.msra.mxu0 0
  %3285 = vmatprep.subr.bf16.mxu0 0
  %3286 = vmatpush1.bf16.msra.mxu0 %v3269
  %3287 = vmatprep.subr.bf16.mxu0 0
  %3288 = vmatpush2.bf16.msra.mxu0 0
  %3289 = vmatprep.subr.bf16.mxu0 0
  %3290 = vmatpush2.bf16.msra.mxu0 0
  %3291 = vmatprep.subr.bf16.mxu0 0
  %3292 = vmatpush2.bf16.msra.mxu0 0
  %3293 = vmatprep.subr.bf16.mxu0 0
  %3294 = vmatpush2.bf16.msra.mxu0 0
  %3295 = vmatprep.subr.bf16.mxu0 0
  %3296 = vmatpush2.bf16.msra.mxu0 0
  %3297 = vmatprep.subr.bf16.mxu0 0
  %3298 = vmatpush2.bf16.msra.mxu0 0
  %3299 = vmatprep.subr.bf16.mxu0 0
  %3300 = vmatpush2.bf16.msra.mxu0 0
  %3301 = vmatprep.subr.bf16.mxu0 0
  %3302 = vmatpush2.bf16.msra.mxu0 0
  %3303 = vmatprep.mubr.bf16.mxu0 0
  %3304 = vmatmul.mubr.bf16.gmra.mxu0 %v3245
  %v3305 = vpop.f32.mrf.mxu0
  %v3306 = vadd.f32 %v137, %v3305
  %v3307 = vpop.f32.mrf.mxu0
  %v3308 = vpop.f32.mrf.mxu0
  %v3309 = vadd.f32 %v138, %v3308
  %v3310 = vpop.f32.mrf.mxu0
  %3311 = vmatprep.mubr.bf16.mxu0 0
  %3312 = vmatmul.mubr.bf16.gmra.mxu0 %v3248
  %v3313 = vpop.f32.mrf.mxu0
  %v3314 = vadd.f32 %v139, %v3313
  %v3315 = vpop.f32.mrf.mxu0
  %v3316 = vpop.f32.mrf.mxu0
  %v3317 = vadd.f32 %v140, %v3316
  %v3318 = vpop.f32.mrf.mxu0
  %3319 = vmatprep.mubr.bf16.mxu0 0
  %3320 = vmatmul.mubr.bf16.gmra.mxu0 %v3251
  %v3321 = vpop.f32.mrf.mxu0
  %v3322 = vadd.f32 %v141, %v3321
  %v3323 = vpop.f32.mrf.mxu0
  %v3324 = vpop.f32.mrf.mxu0
  %v3325 = vadd.f32 %v142, %v3324
  %v3326 = vpop.f32.mrf.mxu0
  %3327 = vmatprep.mubr.bf16.mxu0 0
  %3328 = vmatmul.mubr.bf16.gmra.mxu0 %v3254
  %v3329 = vpop.f32.mrf.mxu0
  %v3330 = vadd.f32 %v143, %v3329
  %v3331 = vpop.f32.mrf.mxu0
  %v3332 = vpop.f32.mrf.mxu0
  %v3333 = vadd.f32 %v144, %v3332
  %v3334 = vpop.f32.mrf.mxu0
  %3335 = vmatprep.mubr.bf16.mxu0 0
  %3336 = vmatmul.mubr.bf16.gmra.mxu0 %v3257
  %v3337 = vpop.f32.mrf.mxu0
  %v3338 = vadd.f32 %v145, %v3337
  %v3339 = vpop.f32.mrf.mxu0
  %v3340 = vpop.f32.mrf.mxu0
  %v3341 = vadd.f32 %v146, %v3340
  %v3342 = vpop.f32.mrf.mxu0
  %3343 = vmatprep.mubr.bf16.mxu0 0
  %3344 = vmatmul.mubr.bf16.gmra.mxu0 %v3260
  %v3345 = vpop.f32.mrf.mxu0
  %v3346 = vadd.f32 %v147, %v3345
  %v3347 = vpop.f32.mrf.mxu0
  %v3348 = vpop.f32.mrf.mxu0
  %v3349 = vadd.f32 %v148, %v3348
  %v3350 = vpop.f32.mrf.mxu0
  %3351 = vmatprep.mubr.bf16.mxu0 0
  %3352 = vmatmul.mubr.bf16.gmra.mxu0 %v3263
  %v3353 = vpop.f32.mrf.mxu0
  %v3354 = vadd.f32 %v149, %v3353
  %v3355 = vpop.f32.mrf.mxu0
  %v3356 = vpop.f32.mrf.mxu0
  %v3357 = vadd.f32 %v150, %v3356
  %v3358 = vpop.f32.mrf.mxu0
  %3359 = vmatprep.mubr.bf16.mxu0 0
  %3360 = vmatmul.mubr.bf16.gmra.mxu0 %v3266
  %v3361 = vpop.f32.mrf.mxu0
  %v3362 = vadd.f32 %v151, %v3361
  %v3363 = vpop.f32.mrf.mxu0
  %v3364 = vpop.f32.mrf.mxu0
  %v3365 = vadd.f32 %v152, %v3364
  %v3366 = vpop.f32.mrf.mxu0
  %3367 = vdwg.mxu0
  %v3368 = vmax.f32 %v3306, %v3322
  %v3369 = vmax.f32 %v3309, %v3325
  %v3370 = vmax.f32 %v3314, %v3330
  %v3371 = vmax.f32 %v3317, %v3333
  %v3372 = vmax.f32 %v3368, %v3338
  %v3373 = vmax.f32 %v3369, %v3341
  %v3374 = vmax.f32 %v3370, %v3346
  %v3375 = vmax.f32 %v3371, %v3349
  %v3376 = vmax.f32 %v3372, %v3354
  %v3377 = vmax.f32 %v3373, %v3357
  %v3378 = vmax.f32 %v3374, %v3362
  %v3379 = vmax.f32 %v3375, %v3365
  %v3380 = vmax.f32 %v3376, %v3377
  %v3381 = vmax.f32 %v3378, %v3379
  %v3382 = vmax.f32 %v3380, %v3381
  %v3383 = vrot.slane %v3382, 4
  %v3384 = vmax.f32 %v3382, %v3383
  %v3385 = vrot.slane %v3384, 2
  %v3386 = vmax.f32 %v3384, %v3385
  %v3387 = vrot.slane %v3386, 1
  %v3388 = vmax.f32 %v3386, %v3387
  %v3389 = vsub.f32 %v3306, %v3388
  %v3390 = vsub.f32 %v3309, %v3388
  %v3391 = vsub.f32 %v3314, %v3388
  %v3392 = vsub.f32 %v3317, %v3388
  %v3393 = vsub.f32 %v3322, %v3388
  %v3394 = vsub.f32 %v3325, %v3388
  %v3395 = vsub.f32 %v3330, %v3388
  %v3396 = vsub.f32 %v3333, %v3388
  %v3397 = vsub.f32 %v3338, %v3388
  %v3398 = vsub.f32 %v3341, %v3388
  %v3399 = vsub.f32 %v3346, %v3388
  %v3400 = vsub.f32 %v3349, %v3388
  %v3401 = vsub.f32 %v3354, %v3388
  %v3402 = vsub.f32 %v3357, %v3388
  %v3403 = vsub.f32 %v3362, %v3388
  %v3404 = vsub.f32 %v3365, %v3388
  %v3405 = vmul.f32 %v3389, 1.442695
  %v3406 = vpow.pop %v3405
  %v3407 = vmul.f32 %v3390, 1.442695
  %v3408 = vpow.pop %v3407
  %v3409 = vmul.f32 %v3391, 1.442695
  %v3410 = vpow.pop %v3409
  %v3411 = vmul.f32 %v3392, 1.442695
  %v3412 = vpow.pop %v3411
  %v3413 = vmul.f32 %v3393, 1.442695
  %v3414 = vpow.pop %v3413
  %v3415 = vmul.f32 %v3394, 1.442695
  %v3416 = vpow.pop %v3415
  %v3417 = vmul.f32 %v3395, 1.442695
  %v3418 = vpow.pop %v3417
  %v3419 = vmul.f32 %v3396, 1.442695
  %v3420 = vpow.pop %v3419
  %v3421 = vmul.f32 %v3397, 1.442695
  %v3422 = vpow.pop %v3421
  %v3423 = vmul.f32 %v3398, 1.442695
  %v3424 = vpow.pop %v3423
  %v3425 = vmul.f32 %v3399, 1.442695
  %v3426 = vpow.pop %v3425
  %v3427 = vmul.f32 %v3400, 1.442695
  %v3428 = vpow.pop %v3427
  %v3429 = vmul.f32 %v3401, 1.442695
  %v3430 = vpow.pop %v3429
  %v3431 = vmul.f32 %v3402, 1.442695
  %v3432 = vpow.pop %v3431
  %v3433 = vmul.f32 %v3403, 1.442695
  %v3434 = vpow.pop %v3433
  %v3435 = vmul.f32 %v3404, 1.442695
  %v3436 = vpow.pop %v3435
  %v3437 = vadd.f32 %v3406, %v3408
  %v3438 = vadd.f32 %v3437, %v3410
  %v3439 = vadd.f32 %v3438, %v3412
  %v3440 = vadd.f32 %v3439, %v3414
  %v3441 = vadd.f32 %v3440, %v3416
  %v3442 = vadd.f32 %v3441, %v3418
  %v3443 = vadd.f32 %v3442, %v3420
  %v3444 = vadd.f32 %v3443, %v3422
  %v3445 = vadd.f32 %v3444, %v3424
  %v3446 = vadd.f32 %v3445, %v3426
  %v3447 = vadd.f32 %v3446, %v3428
  %v3448 = vadd.f32 %v3447, %v3430
  %v3449 = vadd.f32 %v3448, %v3432
  %v3450 = vadd.f32 %v3449, %v3434
  %v3451 = vadd.f32 %v3450, %v3436
  %v3452 = vrot.slane %v3451, 4
  %v3453 = vadd.f32 %v3451, %v3452
  %v3454 = vrot.slane %v3453, 2
  %v3455 = vadd.f32 %v3453, %v3454
  %v3456 = vrot.slane %v3455, 1
  %v3457 = vadd.f32 %v3455, %v3456
  %v3458 = vpack.c.bf16 %v3408, %v3406
  %v3459 = vpack.c.bf16 %v3412, %v3410
  %v3460 = vpack.c.bf16 %v3416, %v3414
  %v3461 = vpack.c.bf16 %v3420, %v3418
  %v3462 = vpack.c.bf16 %v3424, %v3422
  %v3463 = vpack.c.bf16 %v3428, %v3426
  %v3464 = vpack.c.bf16 %v3432, %v3430
  %v3465 = vpack.c.bf16 %v3436, %v3434
  %3466 = vmatprep.subr.bf16.mxu0 0
  %3467 = vmatpush1.bf16.msra.mxu0 %v3465
  %3468 = vmatprep.subr.bf16.mxu0 0
  %3469 = vmatpush1.bf16.msra.mxu0 %v3464
  %3470 = vmatprep.subr.bf16.mxu0 0
  %3471 = vmatpush1.bf16.msra.mxu0 %v3463
  %3472 = vmatprep.subr.bf16.mxu0 0
  %3473 = vmatpush1.bf16.msra.mxu0 %v3462
  %3474 = vmatprep.subr.bf16.mxu0 0
  %3475 = vmatpush1.bf16.msra.mxu0 %v3461
  %3476 = vmatprep.subr.bf16.mxu0 0
  %3477 = vmatpush1.bf16.msra.mxu0 %v3460
  %3478 = vmatprep.subr.bf16.mxu0 0
  %3479 = vmatpush1.bf16.msra.mxu0 %v3459
  %3480 = vmatprep.subr.bf16.mxu0 0
  %3481 = vmatpush1.bf16.msra.mxu0 %v3458
  %3482 = vmatprep.subr.bf16.mxu0 0
  %3483 = vmatpush2.bf16.msra.mxu0 0
  %3484 = vmatprep.subr.bf16.mxu0 0
  %3485 = vmatpush2.bf16.msra.mxu0 0
  %3486 = vmatprep.subr.bf16.mxu0 0
  %3487 = vmatpush2.bf16.msra.mxu0 0
  %3488 = vmatprep.subr.bf16.mxu0 0
  %3489 = vmatpush2.bf16.msra.mxu0 0
  %3490 = vmatprep.subr.bf16.mxu0 0
  %3491 = vmatpush2.bf16.msra.mxu0 0
  %3492 = vmatprep.subr.bf16.mxu0 0
  %3493 = vmatpush2.bf16.msra.mxu0 0
  %3494 = vmatprep.subr.bf16.mxu0 0
  %3495 = vmatpush2.bf16.msra.mxu0 0
  %3496 = vmatprep.subr.bf16.mxu0 0
  %3497 = vmatpush2.bf16.msra.mxu0 0
  %3498 = vmatprep.mubr.bf16.mxu0 0
  %3499 = vmatmul.mubr.bf16.gmra.mxu0 %v3227
  %v3500 = vpop.f32.mrf.mxu0
  %v3501 = vadd.f32 0.0, %v3500
  %v3502 = vpop.f32.mrf.mxu0
  %v3503 = vpop.f32.mrf.mxu0
  %v3504 = vpop.f32.mrf.mxu0
  %3505 = vdwg.mxu0
  %v3506 = vrcp.pop %v3457
  %v3507 = vmul.f32 %v3501, %v3506
  %s3508 = scalar_lea.vmem %s6, 28
  %v3509 = vld [vmem:[%s3508] sm:$0xf]
  %v3510 = vpack.c.bf16 %v3507, %v3507
  %3511 = vxpose.xlu0.c.b16.start [1/8] %v3509, 128
  %3512 = vxpose.xlu0.c.b16.cont [2/8] 0, 128
  %3513 = vxpose.xlu0.c.b16.cont [3/8] 0, 128
  %3514 = vxpose.xlu0.c.b16.cont [4/8] 0, 128
  %3515 = vxpose.xlu0.c.b16.cont [5/8] 0, 128
  %3516 = vxpose.xlu0.c.b16.cont [6/8] 0, 128
  %3517 = vxpose.xlu0.c.b16.cont [7/8] 0, 128
  %3518 = vxpose.xlu0.c.b16.end [8/8] 0, 128
  %v3519 = vpop.trf.xlu0
  %v3520 = vpop.trf.xlu0
  %v3521 = vpop.trf.xlu0
  %v3522 = vpop.trf.xlu0
  %v3523 = vpop.trf.xlu0
  %v3524 = vpop.trf.xlu0
  %v3525 = vpop.trf.xlu0
  %v3526 = vpop.trf.xlu0
  %v3528 = vsel %vm387, %v3519, 0
  %v3531 = vsel %vm387, %v3520, 0
  %v3534 = vsel %vm412, %v3510, 0
  %3536 = vmatprep.subr.bf16.mxu0 0
  %3537 = vmatpush1.bf16.msra.mxu0 0
  %3538 = vmatprep.subr.bf16.mxu0 0
  %3539 = vmatpush1.bf16.msra.mxu0 0
  %3540 = vmatprep.subr.bf16.mxu0 0
  %3541 = vmatpush1.bf16.msra.mxu0 0
  %3542 = vmatprep.subr.bf16.mxu0 0
  %3543 = vmatpush1.bf16.msra.mxu0 0
  %3544 = vmatprep.subr.bf16.mxu0 0
  %3545 = vmatpush1.bf16.msra.mxu0 0
  %3546 = vmatprep.subr.bf16.mxu0 0
  %3547 = vmatpush1.bf16.msra.mxu0 0
  %3548 = vmatprep.subr.bf16.mxu0 0
  %3549 = vmatpush1.bf16.msra.mxu0 0
  %3550 = vmatprep.subr.bf16.mxu0 0
  %3551 = vmatpush1.bf16.msra.mxu0 %v3534
  %3552 = vmatprep.subr.bf16.mxu0 0
  %3553 = vmatpush2.bf16.msra.mxu0 0
  %3554 = vmatprep.subr.bf16.mxu0 0
  %3555 = vmatpush2.bf16.msra.mxu0 0
  %3556 = vmatprep.subr.bf16.mxu0 0
  %3557 = vmatpush2.bf16.msra.mxu0 0
  %3558 = vmatprep.subr.bf16.mxu0 0
  %3559 = vmatpush2.bf16.msra.mxu0 0
  %3560 = vmatprep.subr.bf16.mxu0 0
  %3561 = vmatpush2.bf16.msra.mxu0 0
  %3562 = vmatprep.subr.bf16.mxu0 0
  %3563 = vmatpush2.bf16.msra.mxu0 0
  %3564 = vmatprep.subr.bf16.mxu0 0
  %3565 = vmatpush2.bf16.msra.mxu0 0
  %3566 = vmatprep.subr.bf16.mxu0 0
  %3567 = vmatpush2.bf16.msra.mxu0 0
  %3568 = vmatprep.mubr.bf16.mxu0 0
  %3569 = vmatmul.mubr.bf16.gmra.mxu0 %v3528
  %v3570 = vpop.f32.mrf.mxu0
  %v3571 = vadd.f32 0.0, %v3570
  %v3572 = vpop.f32.mrf.mxu0
  %v3573 = vpop.f32.mrf.mxu0
  %v3574 = vadd.f32 0.0, %v3573
  %v3575 = vpop.f32.mrf.mxu0
  %3576 = vmatprep.mubr.bf16.mxu0 0
  %3577 = vmatmul.mubr.bf16.gmra.mxu0 %v3531
  %v3578 = vpop.f32.mrf.mxu0
  %v3579 = vadd.f32 0.0, %v3578
  %v3580 = vpop.f32.mrf.mxu0
  %v3581 = vpop.f32.mrf.mxu0
  %v3582 = vadd.f32 0.0, %v3581
  %v3583 = vpop.f32.mrf.mxu0
  %3584 = vdwg.mxu0
  %v3585 = vadd.f32 %v3221, %v3571
  %v3586 = vadd.f32 %v3222, %v3574
  %v3587 = vadd.f32 %v3223, %v3579
  %v3588 = vadd.f32 %v3224, %v3582
  %v3589 = vadd.f32 %v1920, %v3585
  %v3590 = vadd.f32 %v1921, %v3586
  %v3591 = vadd.f32 %v1922, %v3587
  %v3592 = vadd.f32 %v1923, %v3588
  %s3593 = scalar_lea.vmem %s7, 32
  %v3594 = vld [vmem:[%s3593] sm:$0xff]
  %v3595 = vld [vmem:[%s3593 + $0x8] sm:$0xff]
  %v3596 = vld [vmem:[%s3593 + $0x10] sm:$0xff]
  %v3597 = vld [vmem:[%s3593 + $0x18] sm:$0xff]
  %3599 = vset.pattern.permute.xlu0 0
  %3600 = vperm.xlu0 %3599, %v3594
  %v3601 = vpop.permute.xlu0 %3600
  %3604 = vset.pattern.permute.xlu0 0
  %3605 = vperm.xlu0 %3604, %v3595
  %v3606 = vpop.permute.xlu0 %3605
  %3609 = vset.pattern.permute.xlu0 0
  %3610 = vperm.xlu0 %3609, %v3596
  %v3611 = vpop.permute.xlu0 %3610
  %3614 = vset.pattern.permute.xlu0 0
  %3615 = vperm.xlu0 %3614, %v3597
  %v3616 = vpop.permute.xlu0 %3615
  %v3618 = vadd.f32 %v3589, %v3601
  %v3619 = vadd.f32 %v3590, %v3606
  %v3620 = vadd.f32 %v3591, %v3611
  %v3621 = vadd.f32 %v3592, %v3616
  %s3622 = scalar_lea.vmem %s8, 16
  %v3623 = vld [vmem:[%s3622] sm:$0xf]
  %v3624 = vld [vmem:[%s3622 + $0x4] sm:$0xf]
  %v3625 = vld [vmem:[%s3622 + $0x8] sm:$0xf]
  %v3626 = vld [vmem:[%s3622 + $0xc] sm:$0xf]
  %v3627 = vpack.c.bf16 %v3619, %v3618
  %v3628 = vpack.c.bf16 %v3621, %v3620
  %v3633 = vunpack.c.l.b16 %v3623
  %v3634 = vunpack.c.l.b16 %v3624
  %v3635 = vunpack.c.l.b16 %v3625
  %v3636 = vunpack.c.l.b16 %v3626
  %v3637 = vpack.c.b16 %v3634, %v3633
  %v3638 = vpack.c.b16 %v3636, %v3635
  %v3640 = vsel %vm77, %v3637, 0
  %v3643 = vsel %vm77, %v3638, 0
  %3645 = vmatprep.subr.bf16.mxu0 0
  %3646 = vmatpush1.bf16.msra.mxu0 0
  %3647 = vmatprep.subr.bf16.mxu0 0
  %3648 = vmatpush1.bf16.msra.mxu0 0
  %3649 = vmatprep.subr.bf16.mxu0 0
  %3650 = vmatpush1.bf16.msra.mxu0 0
  %3651 = vmatprep.subr.bf16.mxu0 0
  %3652 = vmatpush1.bf16.msra.mxu0 0
  %3653 = vmatprep.subr.bf16.mxu0 0
  %3654 = vmatpush1.bf16.msra.mxu0 0
  %3655 = vmatprep.subr.bf16.mxu0 0
  %3656 = vmatpush1.bf16.msra.mxu0 0
  %3657 = vmatprep.subr.bf16.mxu0 0
  %3658 = vmatpush1.bf16.msra.mxu0 %v3628
  %3659 = vmatprep.subr.bf16.mxu0 0
  %3660 = vmatpush1.bf16.msra.mxu0 %v3627
  %3661 = vmatprep.subr.bf16.mxu0 0
  %3662 = vmatpush2.bf16.msra.mxu0 0
  %3663 = vmatprep.subr.bf16.mxu0 0
  %3664 = vmatpush2.bf16.msra.mxu0 0
  %3665 = vmatprep.subr.bf16.mxu0 0
  %3666 = vmatpush2.bf16.msra.mxu0 0
  %3667 = vmatprep.subr.bf16.mxu0 0
  %3668 = vmatpush2.bf16.msra.mxu0 0
  %3669 = vmatprep.subr.bf16.mxu0 0
  %3670 = vmatpush2.bf16.msra.mxu0 0
  %3671 = vmatprep.subr.bf16.mxu0 0
  %3672 = vmatpush2.bf16.msra.mxu0 0
  %3673 = vmatprep.subr.bf16.mxu0 0
  %3674 = vmatpush2.bf16.msra.mxu0 0
  %3675 = vmatprep.subr.bf16.mxu0 0
  %3676 = vmatpush2.bf16.msra.mxu0 0
  %3677 = vmatprep.mubr.bf16.mxu0 0
  %3678 = vmatmul.mubr.bf16.gmra.mxu0 %v3640
  %v3679 = vpop.f32.mrf.mxu0
  %v3680 = vadd.f32 0.0, %v3679
  %v3681 = vpop.f32.mrf.mxu0
  %v3682 = vpop.f32.mrf.mxu0
  %v3683 = vadd.f32 0.0, %v3682
  %v3684 = vpop.f32.mrf.mxu0
  %3685 = vmatprep.mubr.bf16.mxu0 0
  %3686 = vmatmul.mubr.bf16.gmra.mxu0 %v3643
  %v3687 = vpop.f32.mrf.mxu0
  %v3688 = vadd.f32 0.0, %v3687
  %v3689 = vpop.f32.mrf.mxu0
  %v3690 = vpop.f32.mrf.mxu0
  %v3691 = vadd.f32 0.0, %v3690
  %v3692 = vpop.f32.mrf.mxu0
  %3693 = vdwg.mxu0
  %v3694 = vadd.f32 %v3618, %v3680
  %v3695 = vadd.f32 %v3619, %v3683
  %v3696 = vadd.f32 %v3620, %v3688
  %v3697 = vadd.f32 %v3621, %v3691
  %3698 = vst [vmem:[%s9] sm:$0xff] %v3694
  %3699 = vst [vmem:[%s9 + $0x8] sm:$0xff] %v3695
  %3700 = vst [vmem:[%s9 + $0x10] sm:$0xff] %v3696
  %3701 = vst [vmem:[%s9 + $0x18] sm:$0xff] %v3697
  // Predicated region
  $region38: #{concat_transformer_forward.1} parent=0 // pred_check
    _
  $region39: #{concat_transformer_forward.1} parent=0 // pred_check_branch
    %3703 = sbr.rel (0) target = $region41
  $region40: #{concat_transformer_forward.1} parent=0 // pred_region
    _
  $region41: #{concat_transformer_forward.1} parent=0 // pred_fallthru
    _
  // Predicated region
  $region42: #{concat_transformer_forward.1} parent=0 // pred_check
    _
  $region43: #{concat_transformer_forward.1} parent=0 // pred_check_branch
    %3705 = sbr.rel (0) target = $region45
  $region44: #{concat_transformer_forward.1} parent=0 // pred_region
    _
  $region45: #{concat_transformer_forward.1} parent=0 // pred_fallthru
    _

</llo_original>
